<compile_context>
chip_gen: v6e
topology: v6e:2x2x1
jax: 0.10.0
libtpu: 0.0.40
codegen_flags: <defaults>
</compile_context>

<pallas_src>
import functools

import jax
import jax.numpy as jnp
from jax.experimental import pallas as pl
from jax.experimental.pallas import tpu as pltpu

_HIGHEST = jax.lax.Precision.HIGHEST     # true-f32 MXU passes (match f32 reference)
_MIN32 = -(2 ** 31)


def _cond_kernel(z_ref, wphi_ref, bphi_ref, wmlp_ref, bmlp_ref, out_ref,
                 srow_ref, ukey_ref, *, beta_rank, s_true, inv_s):
    """One batch element per grid step.

    z_ref    : (C, S_pad) VMEM       wphi_ref: (1, C)    bphi_ref: (1, 1)
    wmlp_ref : (C, C)                bmlp_ref: (1, C)
    out_ref  : (1, C)
    srow_ref : (1, S_pad) f32 scratch (phi scores, lane-dense)
    ukey_ref : (1, S_pad) i32 scratch (order-preserving integer keys)
    """
    s_pad = z_ref.shape[-1]
    min32 = jnp.int32(_MIN32)

    # ---- phi_layer (1x1 conv): scores computed ONCE, true-f32 MXU -------------
    srow = jnp.dot(wphi_ref[...], z_ref[...], precision=_HIGHEST,
                   preferred_element_type=jnp.float32) + bphi_ref[...]  # (1, S_pad)
    if s_pad != s_true:                          # padded lanes can never be selected
        lane = jax.lax.broadcasted_iota(jnp.int32, (1, s_pad), 1)
        srow = jnp.where(lane < s_true, srow, -jnp.inf)
    srow_ref[...] = srow

    # Order-preserving integer key: unsigned(ukey) ordering == float ordering.
    bits = pltpu.bitcast(srow, jnp.int32)
    flip = jnp.where(bits < 0, jnp.int32(-1), min32)
    ukey_ref[...] = jnp.bitwise_xor(bits, flip)

    # ---- k-th largest score: 32-step bit-wise radix select --------------------
    # Per step: one (1, S) compare + lane reduction; carried state is (1, 1).
    # f32 counts are exact for S < 2**24.
    prefix = jnp.zeros((1, 1), jnp.int32)
    kk = jnp.full((1, 1), beta_rank, jnp.float32)
    for bpos in range(31, -1, -1):
        bit = min32 if bpos == 31 else jnp.int32(1 << bpos)
        hi_mask = jnp.int32(-(1 << bpos))                   # bits 31..bpos set
        target = jnp.bitwise_or(prefix, bit)                              # (1, 1)
        match = jnp.bitwise_and(ukey_ref[...], hi_mask) == target         # (1, S_pad)
        cnt = jnp.sum(match.astype(jnp.float32), axis=1, keepdims=True)   # (1, 1)
        take = cnt >= kk
        prefix = jnp.where(take, target, prefix)
        kk = jnp.where(take, kk, kk - cnt)

    # Recover the exact float threshold (value of the k-th largest score) from
    # its key so the strict ">" mask matches torch.topk / float-compare semantics.
    skey = jnp.bitwise_xor(ukey_ref[...], min32)            # signed order == float order
    thr = jnp.max(jnp.where(skey <= jnp.bitwise_xor(prefix, min32),
                            srow_ref[...], -jnp.inf),
                  axis=1, keepdims=True)                                   # (1, 1)

    # ---- mask + masked global average pool (sum / S) on the MXU ---------------
    mask = (srow_ref[...] > thr).astype(jnp.float32)                       # (1, S_pad)
    gap = jax.lax.dot_general(mask, z_ref[...], (((1,), (1,)), ((), ())),
                              precision=_HIGHEST,
                              preferred_element_type=jnp.float32) * inv_s  # (1, C)

    # ---- mlp_layer: out = gap @ W^T + b; one lane-dense (1, C) slab store -----
    out = jax.lax.dot_general(gap, wmlp_ref[...], (((1,), (1,)), ((), ())),
                              precision=_HIGHEST,
                              preferred_element_type=jnp.float32) + bmlp_ref[...]
    out_ref[...] = out.astype(out_ref.dtype)


def conditioning_layer_forward(z_in, w_phi, b_phi, w_mlp, b_mlp,
                               beta_percentage=0.3):
    """z_in: (B, C, H, W) float32.  Returns (B, C) float32."""
    B, C, H, W = z_in.shape
    S = H * W
    beta_rank = int(beta_percentage * W * H)
    if not 1 <= beta_rank <= S:
        # torch.topk with k=0 or k>S would raise in the reference module as well.
        raise ValueError("beta_percentage * H * W must lie in [1, H*W]")

    s_pad = pl.cdiv(S, 128) * 128              # keep all compares / matmuls lane-dense
    z = z_in.reshape(B, C, S).astype(jnp.float32)
    if s_pad != S:
        z = jnp.pad(z, ((0, 0), (0, 0), (0, s_pad - S)))

    wphi = w_phi.reshape(1, C).astype(jnp.float32)
    bphi = b_phi.reshape(1, 1).astype(jnp.float32)
    wmlp = w_mlp.astype(jnp.float32)
    bmlp = b_mlp.reshape(1, C).astype(jnp.float32)

    kernel = functools.partial(_cond_kernel, beta_rank=beta_rank,
                               s_true=S, inv_s=1.0 / S)

    # Per grid step the only large block is z (C, S_pad); it is double-buffered
    # by the pipeline.  Size the scoped-VMEM limit from it (fits every TPU gen).
    z_block_bytes = C * s_pad * 4
    vmem_limit = int(min(56 << 20, max(2 * z_block_bytes + (4 << 20), 32 << 20)))
    # TODO(synk): if 2*C*S*4 ever exceeds ~56 MiB (v7x VMEM), split S across grid
    # steps with a two-pass threshold instead of enlarging the limit.

    out = pl.pallas_call(
        kernel,
        out_shape=jax.ShapeDtypeStruct((B, 1, C), jnp.float32),
        grid_spec=pltpu.PrefetchScalarGridSpec(
            num_scalar_prefetch=0,
            grid=(B,),
            in_specs=[
                pl.BlockSpec((None, C, s_pad), lambda i: (i, 0, 0)),  # z, one element
                pl.BlockSpec((1, C), lambda i: (0, 0)),               # phi weight
                pl.BlockSpec((1, 1), lambda i: (0, 0)),               # phi bias
                pl.BlockSpec((C, C), lambda i: (0, 0)),               # mlp weight
                pl.BlockSpec((1, C), lambda i: (0, 0)),               # mlp bias
            ],
            out_specs=pl.BlockSpec((None, 1, C), lambda i: (i, 0, 0)),
            scratch_shapes=[pltpu.VMEM((1, s_pad), jnp.float32),
                            pltpu.VMEM((1, s_pad), jnp.int32)],
        ),
        compiler_params=pltpu.CompilerParams(
            dimension_semantics=("parallel",),
            vmem_limit_bytes=vmem_limit),
    )(z, wphi, bphi, wmlp, bmlp)
    return out[:, 0, :]


def _ref_forward(z_in, w_phi, b_phi, w_mlp, b_mlp, beta_percentage=0.3):
    """Pure-JAX reference mirroring the PyTorch forward (true-f32 matmuls)."""
    B, C, H, W = z_in.shape
    S = H * W
    zr = z_in.reshape(B, C, S)
    scores = jnp.einsum('oc,bcs->bos', w_phi.reshape(1, C), zr,
                        precision=_HIGHEST) + b_phi                 # (B, 1, S)
    k = int(beta_percentage * H * W)
    thr = jax.lax.top_k(scores, k)[0][..., -1:]                     # (B, 1, 1)
    mask = (scores > thr).astype(zr.dtype)                          # (B, 1, S)
    gap = jnp.mean(zr * mask, axis=-1)                              # (B, C)
    return jnp.matmul(gap, w_mlp.T, precision=_HIGHEST) + b_mlp


if __name__ == "__main__":
    B, C, H, W = 2, 32, 16, 16          # in_dim = 32
    beta_percentage = 0.3

    key = jax.random.PRNGKey(0)
    kz, kw_phi, kb_phi, kw_mlp, kb_mlp = jax.random.split(key, 5)

    z_in = jax.random.normal(kz, (B, C, H, W), jnp.float32)

    # phi_layer: Conv2d(C, 1, k=1), kaiming_normal_(mode='fan_out', relu):
    #   fan_out = out_channels * k * k = 1 -> std = sqrt(2)
    w_phi = jax.random.normal(kw_phi, (1, C, 1, 1), jnp.float32) * jnp.sqrt(2.0)
    # conv bias default init: U(-1/sqrt(fan_in), 1/sqrt(fan_in)), fan_in = C
    bnd_phi = 1.0 / jnp.sqrt(float(C))
    b_phi = jax.random.uniform(kb_phi, (1,), jnp.float32, -bnd_phi, bnd_phi)

    # mlp_layer: Linear(C, C) default init: U(-1/sqrt(C), 1/sqrt(C))
    bnd = 1.0 / jnp.sqrt(float(C))
    w_mlp = jax.random.uniform(kw_mlp, (C, C), jnp.float32, -bnd, bnd)
    b_mlp = jax.random.uniform(kb_mlp, (C,), jnp.float32, -bnd, bnd)

    out = conditioning_layer_forward(z_in, w_phi, b_phi, w_mlp, b_mlp,
                                     beta_percentage)
    out = jax.block_until_ready(out)

    ref = _ref_forward(z_in, w_phi, b_phi, w_mlp, b_mlp, beta_percentage)
    assert out.shape == (B, C)
    assert jnp.allclose(out, ref, rtol=1e-4, atol=1e-4), (
        f"max abs diff = {jnp.max(jnp.abs(out - ref))}")

    print("KERNEL_OK")
</pallas_src>

<mosaic_0001>
module attributes {stable_mosaic.version = 11 : i64} {
  func.func @_cond_kernel(%arg0: i32, %arg1: memref<1x32x256xf32, #tpu.memory_space<vmem>>, %arg2: memref<1x32xf32, #tpu.memory_space<vmem>>, %arg3: memref<1x1xf32, #tpu.memory_space<vmem>>, %arg4: memref<32x32xf32, #tpu.memory_space<vmem>>, %arg5: memref<1x32xf32, #tpu.memory_space<vmem>>, %arg6: memref<1x1x32xf32, #tpu.memory_space<vmem>>, %arg7: memref<1x256xf32, #tpu.memory_space<vmem>>, %arg8: memref<1x256xi32, #tpu.memory_space<vmem>>) attributes {dimension_semantics = [#tpu.dimension_semantics<parallel>], iteration_bounds = array<i64: 2>, scalar_prefetch = 0 : i64, scratch_operands = 2 : i64, tpu.core_type = #tpu.core_type<tc>, window_params = [{transform_indices = @transform_0, window_bounds = array<i64: 1, 32, 256>}, {pipeline_mode = #tpu.pipeline_mode<synchronous>, transform_indices = @transform_1, window_bounds = array<i64: 1, 32>}, {pipeline_mode = #tpu.pipeline_mode<synchronous>, transform_indices = @transform_2, window_bounds = array<i64: 1, 1>}, {pipeline_mode = #tpu.pipeline_mode<synchronous>, transform_indices = @transform_3, window_bounds = array<i64: 32, 32>}, {pipeline_mode = #tpu.pipeline_mode<synchronous>, transform_indices = @transform_4, window_bounds = array<i64: 1, 32>}, {transform_indices = @transform_5, window_bounds = array<i64: 1, 1, 32>}]} {
    %c0 = arith.constant 0 : index
    %c0_0 = arith.constant 0 : index
    %0 = vector.load %arg2[%c0, %c0_0] : memref<1x32xf32, #tpu.memory_space<vmem>>, vector<1x32xf32>
    %c0_1 = arith.constant 0 : index
    %c0_2 = arith.constant 0 : index
    %c0_3 = arith.constant 0 : index
    %1 = vector.load %arg1[%c0_1, %c0_2, %c0_3] : memref<1x32x256xf32, #tpu.memory_space<vmem>>, vector<1x32x256xf32>
    %2 = vector.shape_cast %1 : vector<1x32x256xf32> to vector<32x256xf32>
    %cst = arith.constant dense<0.000000e+00> : vector<1x256xf32>
    %3 = tpu.matmul %0, %2, %cst {dimension_numbers = #tpu.dot_dimension_numbers<[1], [0], [0], [1], [0, 0, 1, 1], [], []>, precision = #tpu.contract_precision<fp32>} : vector<1x32xf32>, vector<32x256xf32>, vector<1x256xf32> -> vector<1x256xf32>
    %c0_4 = arith.constant 0 : index
    %c0_5 = arith.constant 0 : index
    %4 = vector.load %arg3[%c0_4, %c0_5] : memref<1x1xf32, #tpu.memory_space<vmem>>, vector<1x1xf32>
    %5 = vector.broadcast %4 : vector<1x1xf32> to vector<1x256xf32>
    %6 = arith.addf %3, %5 : vector<1x256xf32>
    %c0_6 = arith.constant 0 : index
    %c0_7 = arith.constant 0 : index
    %7 = vector.load %arg7[%c0_6, %c0_7] : memref<1x256xf32, #tpu.memory_space<vmem>>, vector<1x256xf32>
    tpu.vector_store %arg7[%c0_6, %c0_7], %6 {strides = array<i32>} : memref<1x256xf32, #tpu.memory_space<vmem>>, vector<1x256xf32>,
    %8 = tpu.bitcast %6 : vector<1x256xf32> -> vector<1x256xi32>
    %c0_i32 = arith.constant 0 : i32
    %9 = vector.broadcast %c0_i32 : i32 to vector<1x256xi32>
    %10 = arith.cmpi slt, %8, %9 : vector<1x256xi32>
    %c-1_i32 = arith.constant -1 : i32
    %c-2147483648_i32 = arith.constant -2147483648 : i32
    %11 = vector.broadcast %c-1_i32 : i32 to vector<1x256xi32>
    %12 = vector.broadcast %c-2147483648_i32 : i32 to vector<1x256xi32>
    %13 = arith.select %10, %11, %12 : vector<1x256xi1>, vector<1x256xi32>
    %14 = arith.xori %8, %13 : vector<1x256xi32>
    %c0_8 = arith.constant 0 : index
    %c0_9 = arith.constant 0 : index
    %15 = vector.load %arg8[%c0_8, %c0_9] : memref<1x256xi32, #tpu.memory_space<vmem>>, vector<1x256xi32>
    tpu.vector_store %arg8[%c0_8, %c0_9], %14 {strides = array<i32>} : memref<1x256xi32, #tpu.memory_space<vmem>>, vector<1x256xi32>,
    %c0_i32_10 = arith.constant 0 : i32
    %16 = vector.broadcast %c0_i32_10 : i32 to vector<1x1xi32>
    %cst_11 = arith.constant 7.600000e+01 : f32
    %17 = vector.broadcast %cst_11 : f32 to vector<1x1xf32>
    %c-2147483648_i32_12 = arith.constant -2147483648 : i32
    %18 = vector.broadcast %c-2147483648_i32_12 : i32 to vector<1x1xi32>
    %19 = arith.ori %16, %18 : vector<1x1xi32>
    %c0_13 = arith.constant 0 : index
    %c0_14 = arith.constant 0 : index
    %20 = vector.load %arg8[%c0_13, %c0_14] : memref<1x256xi32, #tpu.memory_space<vmem>>, vector<1x256xi32>
    %c-2147483648_i32_15 = arith.constant -2147483648 : i32
    %21 = vector.broadcast %c-2147483648_i32_15 : i32 to vector<1x256xi32>
    %22 = arith.andi %20, %21 : vector<1x256xi32>
    %23 = vector.broadcast %19 : vector<1x1xi32> to vector<1x256xi32>
    %24 = arith.cmpi eq, %22, %23 : vector<1x256xi32>
    %25 = arith.extui %24 : vector<1x256xi1> to vector<1x256xi32>
    %26 = arith.sitofp %25 : vector<1x256xi32> to vector<1x256xf32>
    %cst_16 = arith.constant dense<0.000000e+00> : vector<1xf32>
    %27 = vector.multi_reduction <add>, %26, %cst_16 [1] : vector<1x256xf32> to vector<1xf32>
    %28 = vector.shape_cast %27 : vector<1xf32> to vector<1x1xf32>
    %29 = arith.cmpf oge, %28, %17 : vector<1x1xf32>
    %30 = arith.select %29, %19, %16 : vector<1x1xi1>, vector<1x1xi32>
    %31 = arith.subf %17, %28 : vector<1x1xf32>
    %32 = arith.select %29, %17, %31 : vector<1x1xi1>, vector<1x1xf32>
    %c1073741824_i32 = arith.constant 1073741824 : i32
    %33 = vector.broadcast %c1073741824_i32 : i32 to vector<1x1xi32>
    %34 = arith.ori %30, %33 : vector<1x1xi32>
    %c0_17 = arith.constant 0 : index
    %c0_18 = arith.constant 0 : index
    %35 = vector.load %arg8[%c0_17, %c0_18] : memref<1x256xi32, #tpu.memory_space<vmem>>, vector<1x256xi32>
    %c-1073741824_i32 = arith.constant -1073741824 : i32
    %36 = vector.broadcast %c-1073741824_i32 : i32 to vector<1x256xi32>
    %37 = arith.andi %35, %36 : vector<1x256xi32>
    %38 = vector.broadcast %34 : vector<1x1xi32> to vector<1x256xi32>
    %39 = arith.cmpi eq, %37, %38 : vector<1x256xi32>
    %40 = arith.extui %39 : vector<1x256xi1> to vector<1x256xi32>
    %41 = arith.sitofp %40 : vector<1x256xi32> to vector<1x256xf32>
    %cst_19 = arith.constant dense<0.000000e+00> : vector<1xf32>
    %42 = vector.multi_reduction <add>, %41, %cst_19 [1] : vector<1x256xf32> to vector<1xf32>
    %43 = vector.shape_cast %42 : vector<1xf32> to vector<1x1xf32>
    %44 = arith.cmpf oge, %43, %32 : vector<1x1xf32>
    %45 = arith.select %44, %34, %30 : vector<1x1xi1>, vector<1x1xi32>
    %46 = arith.subf %32, %43 : vector<1x1xf32>
    %47 = arith.select %44, %32, %46 : vector<1x1xi1>, vector<1x1xf32>
    %c536870912_i32 = arith.constant 536870912 : i32
    %48 = vector.broadcast %c536870912_i32 : i32 to vector<1x1xi32>
    %49 = arith.ori %45, %48 : vector<1x1xi32>
    %c0_20 = arith.constant 0 : index
    %c0_21 = arith.constant 0 : index
    %50 = vector.load %arg8[%c0_20, %c0_21] : memref<1x256xi32, #tpu.memory_space<vmem>>, vector<1x256xi32>
    %c-536870912_i32 = arith.constant -536870912 : i32
    %51 = vector.broadcast %c-536870912_i32 : i32 to vector<1x256xi32>
    %52 = arith.andi %50, %51 : vector<1x256xi32>
    %53 = vector.broadcast %49 : vector<1x1xi32> to vector<1x256xi32>
    %54 = arith.cmpi eq, %52, %53 : vector<1x256xi32>
    %55 = arith.extui %54 : vector<1x256xi1> to vector<1x256xi32>
    %56 = arith.sitofp %55 : vector<1x256xi32> to vector<1x256xf32>
    %cst_22 = arith.constant dense<0.000000e+00> : vector<1xf32>
    %57 = vector.multi_reduction <add>, %56, %cst_22 [1] : vector<1x256xf32> to vector<1xf32>
    %58 = vector.shape_cast %57 : vector<1xf32> to vector<1x1xf32>
    %59 = arith.cmpf oge, %58, %47 : vector<1x1xf32>
    %60 = arith.select %59, %49, %45 : vector<1x1xi1>, vector<1x1xi32>
    %61 = arith.subf %47, %58 : vector<1x1xf32>
    %62 = arith.select %59, %47, %61 : vector<1x1xi1>, vector<1x1xf32>
    %c268435456_i32 = arith.constant 268435456 : i32
    %63 = vector.broadcast %c268435456_i32 : i32 to vector<1x1xi32>
    %64 = arith.ori %60, %63 : vector<1x1xi32>
    %c0_23 = arith.constant 0 : index
    %c0_24 = arith.constant 0 : index
    %65 = vector.load %arg8[%c0_23, %c0_24] : memref<1x256xi32, #tpu.memory_space<vmem>>, vector<1x256xi32>
    %c-268435456_i32 = arith.constant -268435456 : i32
    %66 = vector.broadcast %c-268435456_i32 : i32 to vector<1x256xi32>
    %67 = arith.andi %65, %66 : vector<1x256xi32>
    %68 = vector.broadcast %64 : vector<1x1xi32> to vector<1x256xi32>
    %69 = arith.cmpi eq, %67, %68 : vector<1x256xi32>
    %70 = arith.extui %69 : vector<1x256xi1> to vector<1x256xi32>
    %71 = arith.sitofp %70 : vector<1x256xi32> to vector<1x256xf32>
    %cst_25 = arith.constant dense<0.000000e+00> : vector<1xf32>
    %72 = vector.multi_reduction <add>, %71, %cst_25 [1] : vector<1x256xf32> to vector<1xf32>
    %73 = vector.shape_cast %72 : vector<1xf32> to vector<1x1xf32>
    %74 = arith.cmpf oge, %73, %62 : vector<1x1xf32>
    %75 = arith.select %74, %64, %60 : vector<1x1xi1>, vector<1x1xi32>
    %76 = arith.subf %62, %73 : vector<1x1xf32>
    %77 = arith.select %74, %62, %76 : vector<1x1xi1>, vector<1x1xf32>
    %c134217728_i32 = arith.constant 134217728 : i32
    %78 = vector.broadcast %c134217728_i32 : i32 to vector<1x1xi32>
    %79 = arith.ori %75, %78 : vector<1x1xi32>
    %c0_26 = arith.constant 0 : index
    %c0_27 = arith.constant 0 : index
    %80 = vector.load %arg8[%c0_26, %c0_27] : memref<1x256xi32, #tpu.memory_space<vmem>>, vector<1x256xi32>
    %c-134217728_i32 = arith.constant -134217728 : i32
    %81 = vector.broadcast %c-134217728_i32 : i32 to vector<1x256xi32>
    %82 = arith.andi %80, %81 : vector<1x256xi32>
    %83 = vector.broadcast %79 : vector<1x1xi32> to vector<1x256xi32>
    %84 = arith.cmpi eq, %82, %83 : vector<1x256xi32>
    %85 = arith.extui %84 : vector<1x256xi1> to vector<1x256xi32>
    %86 = arith.sitofp %85 : vector<1x256xi32> to vector<1x256xf32>
    %cst_28 = arith.constant dense<0.000000e+00> : vector<1xf32>
    %87 = vector.multi_reduction <add>, %86, %cst_28 [1] : vector<1x256xf32> to vector<1xf32>
    %88 = vector.shape_cast %87 : vector<1xf32> to vector<1x1xf32>
    %89 = arith.cmpf oge, %88, %77 : vector<1x1xf32>
    %90 = arith.select %89, %79, %75 : vector<1x1xi1>, vector<1x1xi32>
    %91 = arith.subf %77, %88 : vector<1x1xf32>
    %92 = arith.select %89, %77, %91 : vector<1x1xi1>, vector<1x1xf32>
    %c67108864_i32 = arith.constant 67108864 : i32
    %93 = vector.broadcast %c67108864_i32 : i32 to vector<1x1xi32>
    %94 = arith.ori %90, %93 : vector<1x1xi32>
    %c0_29 = arith.constant 0 : index
    %c0_30 = arith.constant 0 : index
    %95 = vector.load %arg8[%c0_29, %c0_30] : memref<1x256xi32, #tpu.memory_space<vmem>>, vector<1x256xi32>
    %c-67108864_i32 = arith.constant -67108864 : i32
    %96 = vector.broadcast %c-67108864_i32 : i32 to vector<1x256xi32>
    %97 = arith.andi %95, %96 : vector<1x256xi32>
    %98 = vector.broadcast %94 : vector<1x1xi32> to vector<1x256xi32>
    %99 = arith.cmpi eq, %97, %98 : vector<1x256xi32>
    %100 = arith.extui %99 : vector<1x256xi1> to vector<1x256xi32>
    %101 = arith.sitofp %100 : vector<1x256xi32> to vector<1x256xf32>
    %cst_31 = arith.constant dense<0.000000e+00> : vector<1xf32>
    %102 = vector.multi_reduction <add>, %101, %cst_31 [1] : vector<1x256xf32> to vector<1xf32>
    %103 = vector.shape_cast %102 : vector<1xf32> to vector<1x1xf32>
    %104 = arith.cmpf oge, %103, %92 : vector<1x1xf32>
    %105 = arith.select %104, %94, %90 : vector<1x1xi1>, vector<1x1xi32>
    %106 = arith.subf %92, %103 : vector<1x1xf32>
    %107 = arith.select %104, %92, %106 : vector<1x1xi1>, vector<1x1xf32>
    %c33554432_i32 = arith.constant 33554432 : i32
    %108 = vector.broadcast %c33554432_i32 : i32 to vector<1x1xi32>
    %109 = arith.ori %105, %108 : vector<1x1xi32>
    %c0_32 = arith.constant 0 : index
    %c0_33 = arith.constant 0 : index
    %110 = vector.load %arg8[%c0_32, %c0_33] : memref<1x256xi32, #tpu.memory_space<vmem>>, vector<1x256xi32>
    %c-33554432_i32 = arith.constant -33554432 : i32
    %111 = vector.broadcast %c-33554432_i32 : i32 to vector<1x256xi32>
    %112 = arith.andi %110, %111 : vector<1x256xi32>
    %113 = vector.broadcast %109 : vector<1x1xi32> to vector<1x256xi32>
    %114 = arith.cmpi eq, %112, %113 : vector<1x256xi32>
    %115 = arith.extui %114 : vector<1x256xi1> to vector<1x256xi32>
    %116 = arith.sitofp %115 : vector<1x256xi32> to vector<1x256xf32>
    %cst_34 = arith.constant dense<0.000000e+00> : vector<1xf32>
    %117 = vector.multi_reduction <add>, %116, %cst_34 [1] : vector<1x256xf32> to vector<1xf32>
    %118 = vector.shape_cast %117 : vector<1xf32> to vector<1x1xf32>
    %119 = arith.cmpf oge, %118, %107 : vector<1x1xf32>
    %120 = arith.select %119, %109, %105 : vector<1x1xi1>, vector<1x1xi32>
    %121 = arith.subf %107, %118 : vector<1x1xf32>
    %122 = arith.select %119, %107, %121 : vector<1x1xi1>, vector<1x1xf32>
    %c16777216_i32 = arith.constant 16777216 : i32
    %123 = vector.broadcast %c16777216_i32 : i32 to vector<1x1xi32>
    %124 = arith.ori %120, %123 : vector<1x1xi32>
    %c0_35 = arith.constant 0 : index
    %c0_36 = arith.constant 0 : index
    %125 = vector.load %arg8[%c0_35, %c0_36] : memref<1x256xi32, #tpu.memory_space<vmem>>, vector<1x256xi32>
    %c-16777216_i32 = arith.constant -16777216 : i32
    %126 = vector.broadcast %c-16777216_i32 : i32 to vector<1x256xi32>
    %127 = arith.andi %125, %126 : vector<1x256xi32>
    %128 = vector.broadcast %124 : vector<1x1xi32> to vector<1x256xi32>
    %129 = arith.cmpi eq, %127, %128 : vector<1x256xi32>
    %130 = arith.extui %129 : vector<1x256xi1> to vector<1x256xi32>
    %131 = arith.sitofp %130 : vector<1x256xi32> to vector<1x256xf32>
    %cst_37 = arith.constant dense<0.000000e+00> : vector<1xf32>
    %132 = vector.multi_reduction <add>, %131, %cst_37 [1] : vector<1x256xf32> to vector<1xf32>
    %133 = vector.shape_cast %132 : vector<1xf32> to vector<1x1xf32>
    %134 = arith.cmpf oge, %133, %122 : vector<1x1xf32>
    %135 = arith.select %134, %124, %120 : vector<1x1xi1>, vector<1x1xi32>
    %136 = arith.subf %122, %133 : vector<1x1xf32>
    %137 = arith.select %134, %122, %136 : vector<1x1xi1>, vector<1x1xf32>
    %c8388608_i32 = arith.constant 8388608 : i32
    %138 = vector.broadcast %c8388608_i32 : i32 to vector<1x1xi32>
    %139 = arith.ori %135, %138 : vector<1x1xi32>
    %c0_38 = arith.constant 0 : index
    %c0_39 = arith.constant 0 : index
    %140 = vector.load %arg8[%c0_38, %c0_39] : memref<1x256xi32, #tpu.memory_space<vmem>>, vector<1x256xi32>
    %c-8388608_i32 = arith.constant -8388608 : i32
    %141 = vector.broadcast %c-8388608_i32 : i32 to vector<1x256xi32>
    %142 = arith.andi %140, %141 : vector<1x256xi32>
    %143 = vector.broadcast %139 : vector<1x1xi32> to vector<1x256xi32>
    %144 = arith.cmpi eq, %142, %143 : vector<1x256xi32>
    %145 = arith.extui %144 : vector<1x256xi1> to vector<1x256xi32>
    %146 = arith.sitofp %145 : vector<1x256xi32> to vector<1x256xf32>
    %cst_40 = arith.constant dense<0.000000e+00> : vector<1xf32>
    %147 = vector.multi_reduction <add>, %146, %cst_40 [1] : vector<1x256xf32> to vector<1xf32>
    %148 = vector.shape_cast %147 : vector<1xf32> to vector<1x1xf32>
    %149 = arith.cmpf oge, %148, %137 : vector<1x1xf32>
    %150 = arith.select %149, %139, %135 : vector<1x1xi1>, vector<1x1xi32>
    %151 = arith.subf %137, %148 : vector<1x1xf32>
    %152 = arith.select %149, %137, %151 : vector<1x1xi1>, vector<1x1xf32>
    %c4194304_i32 = arith.constant 4194304 : i32
    %153 = vector.broadcast %c4194304_i32 : i32 to vector<1x1xi32>
    %154 = arith.ori %150, %153 : vector<1x1xi32>
    %c0_41 = arith.constant 0 : index
    %c0_42 = arith.constant 0 : index
    %155 = vector.load %arg8[%c0_41, %c0_42] : memref<1x256xi32, #tpu.memory_space<vmem>>, vector<1x256xi32>
    %c-4194304_i32 = arith.constant -4194304 : i32
    %156 = vector.broadcast %c-4194304_i32 : i32 to vector<1x256xi32>
    %157 = arith.andi %155, %156 : vector<1x256xi32>
    %158 = vector.broadcast %154 : vector<1x1xi32> to vector<1x256xi32>
    %159 = arith.cmpi eq, %157, %158 : vector<1x256xi32>
    %160 = arith.extui %159 : vector<1x256xi1> to vector<1x256xi32>
    %161 = arith.sitofp %160 : vector<1x256xi32> to vector<1x256xf32>
    %cst_43 = arith.constant dense<0.000000e+00> : vector<1xf32>
    %162 = vector.multi_reduction <add>, %161, %cst_43 [1] : vector<1x256xf32> to vector<1xf32>
    %163 = vector.shape_cast %162 : vector<1xf32> to vector<1x1xf32>
    %164 = arith.cmpf oge, %163, %152 : vector<1x1xf32>
    %165 = arith.select %164, %154, %150 : vector<1x1xi1>, vector<1x1xi32>
    %166 = arith.subf %152, %163 : vector<1x1xf32>
    %167 = arith.select %164, %152, %166 : vector<1x1xi1>, vector<1x1xf32>
    %c2097152_i32 = arith.constant 2097152 : i32
    %168 = vector.broadcast %c2097152_i32 : i32 to vector<1x1xi32>
    %169 = arith.ori %165, %168 : vector<1x1xi32>
    %c0_44 = arith.constant 0 : index
    %c0_45 = arith.constant 0 : index
    %170 = vector.load %arg8[%c0_44, %c0_45] : memref<1x256xi32, #tpu.memory_space<vmem>>, vector<1x256xi32>
    %c-2097152_i32 = arith.constant -2097152 : i32
    %171 = vector.broadcast %c-2097152_i32 : i32 to vector<1x256xi32>
    %172 = arith.andi %170, %171 : vector<1x256xi32>
    %173 = vector.broadcast %169 : vector<1x1xi32> to vector<1x256xi32>
    %174 = arith.cmpi eq, %172, %173 : vector<1x256xi32>
    %175 = arith.extui %174 : vector<1x256xi1> to vector<1x256xi32>
    %176 = arith.sitofp %175 : vector<1x256xi32> to vector<1x256xf32>
    %cst_46 = arith.constant dense<0.000000e+00> : vector<1xf32>
    %177 = vector.multi_reduction <add>, %176, %cst_46 [1] : vector<1x256xf32> to vector<1xf32>
    %178 = vector.shape_cast %177 : vector<1xf32> to vector<1x1xf32>
    %179 = arith.cmpf oge, %178, %167 : vector<1x1xf32>
    %180 = arith.select %179, %169, %165 : vector<1x1xi1>, vector<1x1xi32>
    %181 = arith.subf %167, %178 : vector<1x1xf32>
    %182 = arith.select %179, %167, %181 : vector<1x1xi1>, vector<1x1xf32>
    %c1048576_i32 = arith.constant 1048576 : i32
    %183 = vector.broadcast %c1048576_i32 : i32 to vector<1x1xi32>
    %184 = arith.ori %180, %183 : vector<1x1xi32>
    %c0_47 = arith.constant 0 : index
    %c0_48 = arith.constant 0 : index
    %185 = vector.load %arg8[%c0_47, %c0_48] : memref<1x256xi32, #tpu.memory_space<vmem>>, vector<1x256xi32>
    %c-1048576_i32 = arith.constant -1048576 : i32
    %186 = vector.broadcast %c-1048576_i32 : i32 to vector<1x256xi32>
    %187 = arith.andi %185, %186 : vector<1x256xi32>
    %188 = vector.broadcast %184 : vector<1x1xi32> to vector<1x256xi32>
    %189 = arith.cmpi eq, %187, %188 : vector<1x256xi32>
    %190 = arith.extui %189 : vector<1x256xi1> to vector<1x256xi32>
    %191 = arith.sitofp %190 : vector<1x256xi32> to vector<1x256xf32>
    %cst_49 = arith.constant dense<0.000000e+00> : vector<1xf32>
    %192 = vector.multi_reduction <add>, %191, %cst_49 [1] : vector<1x256xf32> to vector<1xf32>
    %193 = vector.shape_cast %192 : vector<1xf32> to vector<1x1xf32>
    %194 = arith.cmpf oge, %193, %182 : vector<1x1xf32>
    %195 = arith.select %194, %184, %180 : vector<1x1xi1>, vector<1x1xi32>
    %196 = arith.subf %182, %193 : vector<1x1xf32>
    %197 = arith.select %194, %182, %196 : vector<1x1xi1>, vector<1x1xf32>
    %c524288_i32 = arith.constant 524288 : i32
    %198 = vector.broadcast %c524288_i32 : i32 to vector<1x1xi32>
    %199 = arith.ori %195, %198 : vector<1x1xi32>
    %c0_50 = arith.constant 0 : index
    %c0_51 = arith.constant 0 : index
    %200 = vector.load %arg8[%c0_50, %c0_51] : memref<1x256xi32, #tpu.memory_space<vmem>>, vector<1x256xi32>
    %c-524288_i32 = arith.constant -524288 : i32
    %201 = vector.broadcast %c-524288_i32 : i32 to vector<1x256xi32>
    %202 = arith.andi %200, %201 : vector<1x256xi32>
    %203 = vector.broadcast %199 : vector<1x1xi32> to vector<1x256xi32>
    %204 = arith.cmpi eq, %202, %203 : vector<1x256xi32>
    %205 = arith.extui %204 : vector<1x256xi1> to vector<1x256xi32>
    %206 = arith.sitofp %205 : vector<1x256xi32> to vector<1x256xf32>
    %cst_52 = arith.constant dense<0.000000e+00> : vector<1xf32>
    %207 = vector.multi_reduction <add>, %206, %cst_52 [1] : vector<1x256xf32> to vector<1xf32>
    %208 = vector.shape_cast %207 : vector<1xf32> to vector<1x1xf32>
    %209 = arith.cmpf oge, %208, %197 : vector<1x1xf32>
    %210 = arith.select %209, %199, %195 : vector<1x1xi1>, vector<1x1xi32>
    %211 = arith.subf %197, %208 : vector<1x1xf32>
    %212 = arith.select %209, %197, %211 : vector<1x1xi1>, vector<1x1xf32>
    %c262144_i32 = arith.constant 262144 : i32
    %213 = vector.broadcast %c262144_i32 : i32 to vector<1x1xi32>
    %214 = arith.ori %210, %213 : vector<1x1xi32>
    %c0_53 = arith.constant 0 : index
    %c0_54 = arith.constant 0 : index
    %215 = vector.load %arg8[%c0_53, %c0_54] : memref<1x256xi32, #tpu.memory_space<vmem>>, vector<1x256xi32>
    %c-262144_i32 = arith.constant -262144 : i32
    %216 = vector.broadcast %c-262144_i32 : i32 to vector<1x256xi32>
    %217 = arith.andi %215, %216 : vector<1x256xi32>
    %218 = vector.broadcast %214 : vector<1x1xi32> to vector<1x256xi32>
    %219 = arith.cmpi eq, %217, %218 : vector<1x256xi32>
    %220 = arith.extui %219 : vector<1x256xi1> to vector<1x256xi32>
    %221 = arith.sitofp %220 : vector<1x256xi32> to vector<1x256xf32>
    %cst_55 = arith.constant dense<0.000000e+00> : vector<1xf32>
    %222 = vector.multi_reduction <add>, %221, %cst_55 [1] : vector<1x256xf32> to vector<1xf32>
    %223 = vector.shape_cast %222 : vector<1xf32> to vector<1x1xf32>
    %224 = arith.cmpf oge, %223, %212 : vector<1x1xf32>
    %225 = arith.select %224, %214, %210 : vector<1x1xi1>, vector<1x1xi32>
    %226 = arith.subf %212, %223 : vector<1x1xf32>
    %227 = arith.select %224, %212, %226 : vector<1x1xi1>, vector<1x1xf32>
    %c131072_i32 = arith.constant 131072 : i32
    %228 = vector.broadcast %c131072_i32 : i32 to vector<1x1xi32>
    %229 = arith.ori %225, %228 : vector<1x1xi32>
    %c0_56 = arith.constant 0 : index
    %c0_57 = arith.constant 0 : index
    %230 = vector.load %arg8[%c0_56, %c0_57] : memref<1x256xi32, #tpu.memory_space<vmem>>, vector<1x256xi32>
    %c-131072_i32 = arith.constant -131072 : i32
    %231 = vector.broadcast %c-131072_i32 : i32 to vector<1x256xi32>
    %232 = arith.andi %230, %231 : vector<1x256xi32>
    %233 = vector.broadcast %229 : vector<1x1xi32> to vector<1x256xi32>
    %234 = arith.cmpi eq, %232, %233 : vector<1x256xi32>
    %235 = arith.extui %234 : vector<1x256xi1> to vector<1x256xi32>
    %236 = arith.sitofp %235 : vector<1x256xi32> to vector<1x256xf32>
    %cst_58 = arith.constant dense<0.000000e+00> : vector<1xf32>
    %237 = vector.multi_reduction <add>, %236, %cst_58 [1] : vector<1x256xf32> to vector<1xf32>
    %238 = vector.shape_cast %237 : vector<1xf32> to vector<1x1xf32>
    %239 = arith.cmpf oge, %238, %227 : vector<1x1xf32>
    %240 = arith.select %239, %229, %225 : vector<1x1xi1>, vector<1x1xi32>
    %241 = arith.subf %227, %238 : vector<1x1xf32>
    %242 = arith.select %239, %227, %241 : vector<1x1xi1>, vector<1x1xf32>
    %c65536_i32 = arith.constant 65536 : i32
    %243 = vector.broadcast %c65536_i32 : i32 to vector<1x1xi32>
    %244 = arith.ori %240, %243 : vector<1x1xi32>
    %c0_59 = arith.constant 0 : index
    %c0_60 = arith.constant 0 : index
    %245 = vector.load %arg8[%c0_59, %c0_60] : memref<1x256xi32, #tpu.memory_space<vmem>>, vector<1x256xi32>
    %c-65536_i32 = arith.constant -65536 : i32
    %246 = vector.broadcast %c-65536_i32 : i32 to vector<1x256xi32>
    %247 = arith.andi %245, %246 : vector<1x256xi32>
    %248 = vector.broadcast %244 : vector<1x1xi32> to vector<1x256xi32>
    %249 = arith.cmpi eq, %247, %248 : vector<1x256xi32>
    %250 = arith.extui %249 : vector<1x256xi1> to vector<1x256xi32>
    %251 = arith.sitofp %250 : vector<1x256xi32> to vector<1x256xf32>
    %cst_61 = arith.constant dense<0.000000e+00> : vector<1xf32>
    %252 = vector.multi_reduction <add>, %251, %cst_61 [1] : vector<1x256xf32> to vector<1xf32>
    %253 = vector.shape_cast %252 : vector<1xf32> to vector<1x1xf32>
    %254 = arith.cmpf oge, %253, %242 : vector<1x1xf32>
    %255 = arith.select %254, %244, %240 : vector<1x1xi1>, vector<1x1xi32>
    %256 = arith.subf %242, %253 : vector<1x1xf32>
    %257 = arith.select %254, %242, %256 : vector<1x1xi1>, vector<1x1xf32>
    %c32768_i32 = arith.constant 32768 : i32
    %258 = vector.broadcast %c32768_i32 : i32 to vector<1x1xi32>
    %259 = arith.ori %255, %258 : vector<1x1xi32>
    %c0_62 = arith.constant 0 : index
    %c0_63 = arith.constant 0 : index
    %260 = vector.load %arg8[%c0_62, %c0_63] : memref<1x256xi32, #tpu.memory_space<vmem>>, vector<1x256xi32>
    %c-32768_i32 = arith.constant -32768 : i32
    %261 = vector.broadcast %c-32768_i32 : i32 to vector<1x256xi32>
    %262 = arith.andi %260, %261 : vector<1x256xi32>
    %263 = vector.broadcast %259 : vector<1x1xi32> to vector<1x256xi32>
    %264 = arith.cmpi eq, %262, %263 : vector<1x256xi32>
    %265 = arith.extui %264 : vector<1x256xi1> to vector<1x256xi32>
    %266 = arith.sitofp %265 : vector<1x256xi32> to vector<1x256xf32>
    %cst_64 = arith.constant dense<0.000000e+00> : vector<1xf32>
    %267 = vector.multi_reduction <add>, %266, %cst_64 [1] : vector<1x256xf32> to vector<1xf32>
    %268 = vector.shape_cast %267 : vector<1xf32> to vector<1x1xf32>
    %269 = arith.cmpf oge, %268, %257 : vector<1x1xf32>
    %270 = arith.select %269, %259, %255 : vector<1x1xi1>, vector<1x1xi32>
    %271 = arith.subf %257, %268 : vector<1x1xf32>
    %272 = arith.select %269, %257, %271 : vector<1x1xi1>, vector<1x1xf32>
    %c16384_i32 = arith.constant 16384 : i32
    %273 = vector.broadcast %c16384_i32 : i32 to vector<1x1xi32>
    %274 = arith.ori %270, %273 : vector<1x1xi32>
    %c0_65 = arith.constant 0 : index
    %c0_66 = arith.constant 0 : index
    %275 = vector.load %arg8[%c0_65, %c0_66] : memref<1x256xi32, #tpu.memory_space<vmem>>, vector<1x256xi32>
    %c-16384_i32 = arith.constant -16384 : i32
    %276 = vector.broadcast %c-16384_i32 : i32 to vector<1x256xi32>
    %277 = arith.andi %275, %276 : vector<1x256xi32>
    %278 = vector.broadcast %274 : vector<1x1xi32> to vector<1x256xi32>
    %279 = arith.cmpi eq, %277, %278 : vector<1x256xi32>
    %280 = arith.extui %279 : vector<1x256xi1> to vector<1x256xi32>
    %281 = arith.sitofp %280 : vector<1x256xi32> to vector<1x256xf32>
    %cst_67 = arith.constant dense<0.000000e+00> : vector<1xf32>
    %282 = vector.multi_reduction <add>, %281, %cst_67 [1] : vector<1x256xf32> to vector<1xf32>
    %283 = vector.shape_cast %282 : vector<1xf32> to vector<1x1xf32>
    %284 = arith.cmpf oge, %283, %272 : vector<1x1xf32>
    %285 = arith.select %284, %274, %270 : vector<1x1xi1>, vector<1x1xi32>
    %286 = arith.subf %272, %283 : vector<1x1xf32>
    %287 = arith.select %284, %272, %286 : vector<1x1xi1>, vector<1x1xf32>
    %c8192_i32 = arith.constant 8192 : i32
    %288 = vector.broadcast %c8192_i32 : i32 to vector<1x1xi32>
    %289 = arith.ori %285, %288 : vector<1x1xi32>
    %c0_68 = arith.constant 0 : index
    %c0_69 = arith.constant 0 : index
    %290 = vector.load %arg8[%c0_68, %c0_69] : memref<1x256xi32, #tpu.memory_space<vmem>>, vector<1x256xi32>
    %c-8192_i32 = arith.constant -8192 : i32
    %291 = vector.broadcast %c-8192_i32 : i32 to vector<1x256xi32>
    %292 = arith.andi %290, %291 : vector<1x256xi32>
    %293 = vector.broadcast %289 : vector<1x1xi32> to vector<1x256xi32>
    %294 = arith.cmpi eq, %292, %293 : vector<1x256xi32>
    %295 = arith.extui %294 : vector<1x256xi1> to vector<1x256xi32>
    %296 = arith.sitofp %295 : vector<1x256xi32> to vector<1x256xf32>
    %cst_70 = arith.constant dense<0.000000e+00> : vector<1xf32>
    %297 = vector.multi_reduction <add>, %296, %cst_70 [1] : vector<1x256xf32> to vector<1xf32>
    %298 = vector.shape_cast %297 : vector<1xf32> to vector<1x1xf32>
    %299 = arith.cmpf oge, %298, %287 : vector<1x1xf32>
    %300 = arith.select %299, %289, %285 : vector<1x1xi1>, vector<1x1xi32>
    %301 = arith.subf %287, %298 : vector<1x1xf32>
    %302 = arith.select %299, %287, %301 : vector<1x1xi1>, vector<1x1xf32>
    %c4096_i32 = arith.constant 4096 : i32
    %303 = vector.broadcast %c4096_i32 : i32 to vector<1x1xi32>
    %304 = arith.ori %300, %303 : vector<1x1xi32>
    %c0_71 = arith.constant 0 : index
    %c0_72 = arith.constant 0 : index
    %305 = vector.load %arg8[%c0_71, %c0_72] : memref<1x256xi32, #tpu.memory_space<vmem>>, vector<1x256xi32>
    %c-4096_i32 = arith.constant -4096 : i32
    %306 = vector.broadcast %c-4096_i32 : i32 to vector<1x256xi32>
    %307 = arith.andi %305, %306 : vector<1x256xi32>
    %308 = vector.broadcast %304 : vector<1x1xi32> to vector<1x256xi32>
    %309 = arith.cmpi eq, %307, %308 : vector<1x256xi32>
    %310 = arith.extui %309 : vector<1x256xi1> to vector<1x256xi32>
    %311 = arith.sitofp %310 : vector<1x256xi32> to vector<1x256xf32>
    %cst_73 = arith.constant dense<0.000000e+00> : vector<1xf32>
    %312 = vector.multi_reduction <add>, %311, %cst_73 [1] : vector<1x256xf32> to vector<1xf32>
    %313 = vector.shape_cast %312 : vector<1xf32> to vector<1x1xf32>
    %314 = arith.cmpf oge, %313, %302 : vector<1x1xf32>
    %315 = arith.select %314, %304, %300 : vector<1x1xi1>, vector<1x1xi32>
    %316 = arith.subf %302, %313 : vector<1x1xf32>
    %317 = arith.select %314, %302, %316 : vector<1x1xi1>, vector<1x1xf32>
    %c2048_i32 = arith.constant 2048 : i32
    %318 = vector.broadcast %c2048_i32 : i32 to vector<1x1xi32>
    %319 = arith.ori %315, %318 : vector<1x1xi32>
    %c0_74 = arith.constant 0 : index
    %c0_75 = arith.constant 0 : index
    %320 = vector.load %arg8[%c0_74, %c0_75] : memref<1x256xi32, #tpu.memory_space<vmem>>, vector<1x256xi32>
    %c-2048_i32 = arith.constant -2048 : i32
    %321 = vector.broadcast %c-2048_i32 : i32 to vector<1x256xi32>
    %322 = arith.andi %320, %321 : vector<1x256xi32>
    %323 = vector.broadcast %319 : vector<1x1xi32> to vector<1x256xi32>
    %324 = arith.cmpi eq, %322, %323 : vector<1x256xi32>
    %325 = arith.extui %324 : vector<1x256xi1> to vector<1x256xi32>
    %326 = arith.sitofp %325 : vector<1x256xi32> to vector<1x256xf32>
    %cst_76 = arith.constant dense<0.000000e+00> : vector<1xf32>
    %327 = vector.multi_reduction <add>, %326, %cst_76 [1] : vector<1x256xf32> to vector<1xf32>
    %328 = vector.shape_cast %327 : vector<1xf32> to vector<1x1xf32>
    %329 = arith.cmpf oge, %328, %317 : vector<1x1xf32>
    %330 = arith.select %329, %319, %315 : vector<1x1xi1>, vector<1x1xi32>
    %331 = arith.subf %317, %328 : vector<1x1xf32>
    %332 = arith.select %329, %317, %331 : vector<1x1xi1>, vector<1x1xf32>
    %c1024_i32 = arith.constant 1024 : i32
    %333 = vector.broadcast %c1024_i32 : i32 to vector<1x1xi32>
    %334 = arith.ori %330, %333 : vector<1x1xi32>
    %c0_77 = arith.constant 0 : index
    %c0_78 = arith.constant 0 : index
    %335 = vector.load %arg8[%c0_77, %c0_78] : memref<1x256xi32, #tpu.memory_space<vmem>>, vector<1x256xi32>
    %c-1024_i32 = arith.constant -1024 : i32
    %336 = vector.broadcast %c-1024_i32 : i32 to vector<1x256xi32>
    %337 = arith.andi %335, %336 : vector<1x256xi32>
    %338 = vector.broadcast %334 : vector<1x1xi32> to vector<1x256xi32>
    %339 = arith.cmpi eq, %337, %338 : vector<1x256xi32>
    %340 = arith.extui %339 : vector<1x256xi1> to vector<1x256xi32>
    %341 = arith.sitofp %340 : vector<1x256xi32> to vector<1x256xf32>
    %cst_79 = arith.constant dense<0.000000e+00> : vector<1xf32>
    %342 = vector.multi_reduction <add>, %341, %cst_79 [1] : vector<1x256xf32> to vector<1xf32>
    %343 = vector.shape_cast %342 : vector<1xf32> to vector<1x1xf32>
    %344 = arith.cmpf oge, %343, %332 : vector<1x1xf32>
    %345 = arith.select %344, %334, %330 : vector<1x1xi1>, vector<1x1xi32>
    %346 = arith.subf %332, %343 : vector<1x1xf32>
    %347 = arith.select %344, %332, %346 : vector<1x1xi1>, vector<1x1xf32>
    %c512_i32 = arith.constant 512 : i32
    %348 = vector.broadcast %c512_i32 : i32 to vector<1x1xi32>
    %349 = arith.ori %345, %348 : vector<1x1xi32>
    %c0_80 = arith.constant 0 : index
    %c0_81 = arith.constant 0 : index
    %350 = vector.load %arg8[%c0_80, %c0_81] : memref<1x256xi32, #tpu.memory_space<vmem>>, vector<1x256xi32>
    %c-512_i32 = arith.constant -512 : i32
    %351 = vector.broadcast %c-512_i32 : i32 to vector<1x256xi32>
    %352 = arith.andi %350, %351 : vector<1x256xi32>
    %353 = vector.broadcast %349 : vector<1x1xi32> to vector<1x256xi32>
    %354 = arith.cmpi eq, %352, %353 : vector<1x256xi32>
    %355 = arith.extui %354 : vector<1x256xi1> to vector<1x256xi32>
    %356 = arith.sitofp %355 : vector<1x256xi32> to vector<1x256xf32>
    %cst_82 = arith.constant dense<0.000000e+00> : vector<1xf32>
    %357 = vector.multi_reduction <add>, %356, %cst_82 [1] : vector<1x256xf32> to vector<1xf32>
    %358 = vector.shape_cast %357 : vector<1xf32> to vector<1x1xf32>
    %359 = arith.cmpf oge, %358, %347 : vector<1x1xf32>
    %360 = arith.select %359, %349, %345 : vector<1x1xi1>, vector<1x1xi32>
    %361 = arith.subf %347, %358 : vector<1x1xf32>
    %362 = arith.select %359, %347, %361 : vector<1x1xi1>, vector<1x1xf32>
    %c256_i32 = arith.constant 256 : i32
    %363 = vector.broadcast %c256_i32 : i32 to vector<1x1xi32>
    %364 = arith.ori %360, %363 : vector<1x1xi32>
    %c0_83 = arith.constant 0 : index
    %c0_84 = arith.constant 0 : index
    %365 = vector.load %arg8[%c0_83, %c0_84] : memref<1x256xi32, #tpu.memory_space<vmem>>, vector<1x256xi32>
    %c-256_i32 = arith.constant -256 : i32
    %366 = vector.broadcast %c-256_i32 : i32 to vector<1x256xi32>
    %367 = arith.andi %365, %366 : vector<1x256xi32>
    %368 = vector.broadcast %364 : vector<1x1xi32> to vector<1x256xi32>
    %369 = arith.cmpi eq, %367, %368 : vector<1x256xi32>
    %370 = arith.extui %369 : vector<1x256xi1> to vector<1x256xi32>
    %371 = arith.sitofp %370 : vector<1x256xi32> to vector<1x256xf32>
    %cst_85 = arith.constant dense<0.000000e+00> : vector<1xf32>
    %372 = vector.multi_reduction <add>, %371, %cst_85 [1] : vector<1x256xf32> to vector<1xf32>
    %373 = vector.shape_cast %372 : vector<1xf32> to vector<1x1xf32>
    %374 = arith.cmpf oge, %373, %362 : vector<1x1xf32>
    %375 = arith.select %374, %364, %360 : vector<1x1xi1>, vector<1x1xi32>
    %376 = arith.subf %362, %373 : vector<1x1xf32>
    %377 = arith.select %374, %362, %376 : vector<1x1xi1>, vector<1x1xf32>
    %c128_i32 = arith.constant 128 : i32
    %378 = vector.broadcast %c128_i32 : i32 to vector<1x1xi32>
    %379 = arith.ori %375, %378 : vector<1x1xi32>
    %c0_86 = arith.constant 0 : index
    %c0_87 = arith.constant 0 : index
    %380 = vector.load %arg8[%c0_86, %c0_87] : memref<1x256xi32, #tpu.memory_space<vmem>>, vector<1x256xi32>
    %c-128_i32 = arith.constant -128 : i32
    %381 = vector.broadcast %c-128_i32 : i32 to vector<1x256xi32>
    %382 = arith.andi %380, %381 : vector<1x256xi32>
    %383 = vector.broadcast %379 : vector<1x1xi32> to vector<1x256xi32>
    %384 = arith.cmpi eq, %382, %383 : vector<1x256xi32>
    %385 = arith.extui %384 : vector<1x256xi1> to vector<1x256xi32>
    %386 = arith.sitofp %385 : vector<1x256xi32> to vector<1x256xf32>
    %cst_88 = arith.constant dense<0.000000e+00> : vector<1xf32>
    %387 = vector.multi_reduction <add>, %386, %cst_88 [1] : vector<1x256xf32> to vector<1xf32>
    %388 = vector.shape_cast %387 : vector<1xf32> to vector<1x1xf32>
    %389 = arith.cmpf oge, %388, %377 : vector<1x1xf32>
    %390 = arith.select %389, %379, %375 : vector<1x1xi1>, vector<1x1xi32>
    %391 = arith.subf %377, %388 : vector<1x1xf32>
    %392 = arith.select %389, %377, %391 : vector<1x1xi1>, vector<1x1xf32>
    %c64_i32 = arith.constant 64 : i32
    %393 = vector.broadcast %c64_i32 : i32 to vector<1x1xi32>
    %394 = arith.ori %390, %393 : vector<1x1xi32>
    %c0_89 = arith.constant 0 : index
    %c0_90 = arith.constant 0 : index
    %395 = vector.load %arg8[%c0_89, %c0_90] : memref<1x256xi32, #tpu.memory_space<vmem>>, vector<1x256xi32>
    %c-64_i32 = arith.constant -64 : i32
    %396 = vector.broadcast %c-64_i32 : i32 to vector<1x256xi32>
    %397 = arith.andi %395, %396 : vector<1x256xi32>
    %398 = vector.broadcast %394 : vector<1x1xi32> to vector<1x256xi32>
    %399 = arith.cmpi eq, %397, %398 : vector<1x256xi32>
    %400 = arith.extui %399 : vector<1x256xi1> to vector<1x256xi32>
    %401 = arith.sitofp %400 : vector<1x256xi32> to vector<1x256xf32>
    %cst_91 = arith.constant dense<0.000000e+00> : vector<1xf32>
    %402 = vector.multi_reduction <add>, %401, %cst_91 [1] : vector<1x256xf32> to vector<1xf32>
    %403 = vector.shape_cast %402 : vector<1xf32> to vector<1x1xf32>
    %404 = arith.cmpf oge, %403, %392 : vector<1x1xf32>
    %405 = arith.select %404, %394, %390 : vector<1x1xi1>, vector<1x1xi32>
    %406 = arith.subf %392, %403 : vector<1x1xf32>
    %407 = arith.select %404, %392, %406 : vector<1x1xi1>, vector<1x1xf32>
    %c32_i32 = arith.constant 32 : i32
    %408 = vector.broadcast %c32_i32 : i32 to vector<1x1xi32>
    %409 = arith.ori %405, %408 : vector<1x1xi32>
    %c0_92 = arith.constant 0 : index
    %c0_93 = arith.constant 0 : index
    %410 = vector.load %arg8[%c0_92, %c0_93] : memref<1x256xi32, #tpu.memory_space<vmem>>, vector<1x256xi32>
    %c-32_i32 = arith.constant -32 : i32
    %411 = vector.broadcast %c-32_i32 : i32 to vector<1x256xi32>
    %412 = arith.andi %410, %411 : vector<1x256xi32>
    %413 = vector.broadcast %409 : vector<1x1xi32> to vector<1x256xi32>
    %414 = arith.cmpi eq, %412, %413 : vector<1x256xi32>
    %415 = arith.extui %414 : vector<1x256xi1> to vector<1x256xi32>
    %416 = arith.sitofp %415 : vector<1x256xi32> to vector<1x256xf32>
    %cst_94 = arith.constant dense<0.000000e+00> : vector<1xf32>
    %417 = vector.multi_reduction <add>, %416, %cst_94 [1] : vector<1x256xf32> to vector<1xf32>
    %418 = vector.shape_cast %417 : vector<1xf32> to vector<1x1xf32>
    %419 = arith.cmpf oge, %418, %407 : vector<1x1xf32>
    %420 = arith.select %419, %409, %405 : vector<1x1xi1>, vector<1x1xi32>
    %421 = arith.subf %407, %418 : vector<1x1xf32>
    %422 = arith.select %419, %407, %421 : vector<1x1xi1>, vector<1x1xf32>
    %c16_i32 = arith.constant 16 : i32
    %423 = vector.broadcast %c16_i32 : i32 to vector<1x1xi32>
    %424 = arith.ori %420, %423 : vector<1x1xi32>
    %c0_95 = arith.constant 0 : index
    %c0_96 = arith.constant 0 : index
    %425 = vector.load %arg8[%c0_95, %c0_96] : memref<1x256xi32, #tpu.memory_space<vmem>>, vector<1x256xi32>
    %c-16_i32 = arith.constant -16 : i32
    %426 = vector.broadcast %c-16_i32 : i32 to vector<1x256xi32>
    %427 = arith.andi %425, %426 : vector<1x256xi32>
    %428 = vector.broadcast %424 : vector<1x1xi32> to vector<1x256xi32>
    %429 = arith.cmpi eq, %427, %428 : vector<1x256xi32>
    %430 = arith.extui %429 : vector<1x256xi1> to vector<1x256xi32>
    %431 = arith.sitofp %430 : vector<1x256xi32> to vector<1x256xf32>
    %cst_97 = arith.constant dense<0.000000e+00> : vector<1xf32>
    %432 = vector.multi_reduction <add>, %431, %cst_97 [1] : vector<1x256xf32> to vector<1xf32>
    %433 = vector.shape_cast %432 : vector<1xf32> to vector<1x1xf32>
    %434 = arith.cmpf oge, %433, %422 : vector<1x1xf32>
    %435 = arith.select %434, %424, %420 : vector<1x1xi1>, vector<1x1xi32>
    %436 = arith.subf %422, %433 : vector<1x1xf32>
    %437 = arith.select %434, %422, %436 : vector<1x1xi1>, vector<1x1xf32>
    %c8_i32 = arith.constant 8 : i32
    %438 = vector.broadcast %c8_i32 : i32 to vector<1x1xi32>
    %439 = arith.ori %435, %438 : vector<1x1xi32>
    %c0_98 = arith.constant 0 : index
    %c0_99 = arith.constant 0 : index
    %440 = vector.load %arg8[%c0_98, %c0_99] : memref<1x256xi32, #tpu.memory_space<vmem>>, vector<1x256xi32>
    %c-8_i32 = arith.constant -8 : i32
    %441 = vector.broadcast %c-8_i32 : i32 to vector<1x256xi32>
    %442 = arith.andi %440, %441 : vector<1x256xi32>
    %443 = vector.broadcast %439 : vector<1x1xi32> to vector<1x256xi32>
    %444 = arith.cmpi eq, %442, %443 : vector<1x256xi32>
    %445 = arith.extui %444 : vector<1x256xi1> to vector<1x256xi32>
    %446 = arith.sitofp %445 : vector<1x256xi32> to vector<1x256xf32>
    %cst_100 = arith.constant dense<0.000000e+00> : vector<1xf32>
    %447 = vector.multi_reduction <add>, %446, %cst_100 [1] : vector<1x256xf32> to vector<1xf32>
    %448 = vector.shape_cast %447 : vector<1xf32> to vector<1x1xf32>
    %449 = arith.cmpf oge, %448, %437 : vector<1x1xf32>
    %450 = arith.select %449, %439, %435 : vector<1x1xi1>, vector<1x1xi32>
    %451 = arith.subf %437, %448 : vector<1x1xf32>
    %452 = arith.select %449, %437, %451 : vector<1x1xi1>, vector<1x1xf32>
    %c4_i32 = arith.constant 4 : i32
    %453 = vector.broadcast %c4_i32 : i32 to vector<1x1xi32>
    %454 = arith.ori %450, %453 : vector<1x1xi32>
    %c0_101 = arith.constant 0 : index
    %c0_102 = arith.constant 0 : index
    %455 = vector.load %arg8[%c0_101, %c0_102] : memref<1x256xi32, #tpu.memory_space<vmem>>, vector<1x256xi32>
    %c-4_i32 = arith.constant -4 : i32
    %456 = vector.broadcast %c-4_i32 : i32 to vector<1x256xi32>
    %457 = arith.andi %455, %456 : vector<1x256xi32>
    %458 = vector.broadcast %454 : vector<1x1xi32> to vector<1x256xi32>
    %459 = arith.cmpi eq, %457, %458 : vector<1x256xi32>
    %460 = arith.extui %459 : vector<1x256xi1> to vector<1x256xi32>
    %461 = arith.sitofp %460 : vector<1x256xi32> to vector<1x256xf32>
    %cst_103 = arith.constant dense<0.000000e+00> : vector<1xf32>
    %462 = vector.multi_reduction <add>, %461, %cst_103 [1] : vector<1x256xf32> to vector<1xf32>
    %463 = vector.shape_cast %462 : vector<1xf32> to vector<1x1xf32>
    %464 = arith.cmpf oge, %463, %452 : vector<1x1xf32>
    %465 = arith.select %464, %454, %450 : vector<1x1xi1>, vector<1x1xi32>
    %466 = arith.subf %452, %463 : vector<1x1xf32>
    %467 = arith.select %464, %452, %466 : vector<1x1xi1>, vector<1x1xf32>
    %c2_i32 = arith.constant 2 : i32
    %468 = vector.broadcast %c2_i32 : i32 to vector<1x1xi32>
    %469 = arith.ori %465, %468 : vector<1x1xi32>
    %c0_104 = arith.constant 0 : index
    %c0_105 = arith.constant 0 : index
    %470 = vector.load %arg8[%c0_104, %c0_105] : memref<1x256xi32, #tpu.memory_space<vmem>>, vector<1x256xi32>
    %c-2_i32 = arith.constant -2 : i32
    %471 = vector.broadcast %c-2_i32 : i32 to vector<1x256xi32>
    %472 = arith.andi %470, %471 : vector<1x256xi32>
    %473 = vector.broadcast %469 : vector<1x1xi32> to vector<1x256xi32>
    %474 = arith.cmpi eq, %472, %473 : vector<1x256xi32>
    %475 = arith.extui %474 : vector<1x256xi1> to vector<1x256xi32>
    %476 = arith.sitofp %475 : vector<1x256xi32> to vector<1x256xf32>
    %cst_106 = arith.constant dense<0.000000e+00> : vector<1xf32>
    %477 = vector.multi_reduction <add>, %476, %cst_106 [1] : vector<1x256xf32> to vector<1xf32>
    %478 = vector.shape_cast %477 : vector<1xf32> to vector<1x1xf32>
    %479 = arith.cmpf oge, %478, %467 : vector<1x1xf32>
    %480 = arith.select %479, %469, %465 : vector<1x1xi1>, vector<1x1xi32>
    %481 = arith.subf %467, %478 : vector<1x1xf32>
    %482 = arith.select %479, %467, %481 : vector<1x1xi1>, vector<1x1xf32>
    %c1_i32 = arith.constant 1 : i32
    %483 = vector.broadcast %c1_i32 : i32 to vector<1x1xi32>
    %484 = arith.ori %480, %483 : vector<1x1xi32>
    %c0_107 = arith.constant 0 : index
    %c0_108 = arith.constant 0 : index
    %485 = vector.load %arg8[%c0_107, %c0_108] : memref<1x256xi32, #tpu.memory_space<vmem>>, vector<1x256xi32>
    %c-1_i32_109 = arith.constant -1 : i32
    %486 = vector.broadcast %c-1_i32_109 : i32 to vector<1x256xi32>
    %487 = arith.andi %485, %486 : vector<1x256xi32>
    %488 = vector.broadcast %484 : vector<1x1xi32> to vector<1x256xi32>
    %489 = arith.cmpi eq, %487, %488 : vector<1x256xi32>
    %490 = arith.extui %489 : vector<1x256xi1> to vector<1x256xi32>
    %491 = arith.sitofp %490 : vector<1x256xi32> to vector<1x256xf32>
    %cst_110 = arith.constant dense<0.000000e+00> : vector<1xf32>
    %492 = vector.multi_reduction <add>, %491, %cst_110 [1] : vector<1x256xf32> to vector<1xf32>
    %493 = vector.shape_cast %492 : vector<1xf32> to vector<1x1xf32>
    %494 = arith.cmpf oge, %493, %482 : vector<1x1xf32>
    %495 = arith.select %494, %484, %480 : vector<1x1xi1>, vector<1x1xi32>
    %c0_111 = arith.constant 0 : index
    %c0_112 = arith.constant 0 : index
    %496 = vector.load %arg8[%c0_111, %c0_112] : memref<1x256xi32, #tpu.memory_space<vmem>>, vector<1x256xi32>
    %c-2147483648_i32_113 = arith.constant -2147483648 : i32
    %497 = vector.broadcast %c-2147483648_i32_113 : i32 to vector<1x256xi32>
    %498 = arith.xori %496, %497 : vector<1x256xi32>
    %c-2147483648_i32_114 = arith.constant -2147483648 : i32
    %499 = vector.broadcast %c-2147483648_i32_114 : i32 to vector<1x1xi32>
    %500 = arith.xori %495, %499 : vector<1x1xi32>
    %501 = vector.broadcast %500 : vector<1x1xi32> to vector<1x256xi32>
    %502 = arith.cmpi sle, %498, %501 : vector<1x256xi32>
    %c0_115 = arith.constant 0 : index
    %c0_116 = arith.constant 0 : index
    %503 = vector.load %arg7[%c0_115, %c0_116] : memref<1x256xf32, #tpu.memory_space<vmem>>, vector<1x256xf32>
    %cst_117 = arith.constant 0xFF800000 : f32
    %504 = vector.broadcast %cst_117 : f32 to vector<1x256xf32>
    %505 = arith.select %502, %503, %504 : vector<1x256xi1>, vector<1x256xf32>
    %cst_118 = arith.constant dense<0xFF800000> : vector<1xf32>
    %506 = vector.multi_reduction <maximumf>, %505, %cst_118 [1] : vector<1x256xf32> to vector<1xf32>
    %507 = vector.shape_cast %506 : vector<1xf32> to vector<1x1xf32>
    %c0_119 = arith.constant 0 : index
    %c0_120 = arith.constant 0 : index
    %508 = vector.load %arg7[%c0_119, %c0_120] : memref<1x256xf32, #tpu.memory_space<vmem>>, vector<1x256xf32>
    %509 = vector.broadcast %507 : vector<1x1xf32> to vector<1x256xf32>
    %510 = arith.cmpf ogt, %508, %509 : vector<1x256xf32>
    %511 = arith.extui %510 : vector<1x256xi1> to vector<1x256xi32>
    %512 = arith.sitofp %511 : vector<1x256xi32> to vector<1x256xf32>
    %c0_121 = arith.constant 0 : index
    %c0_122 = arith.constant 0 : index
    %c0_123 = arith.constant 0 : index
    %513 = vector.load %arg1[%c0_121, %c0_122, %c0_123] : memref<1x32x256xf32, #tpu.memory_space<vmem>>, vector<1x32x256xf32>
    %514 = vector.shape_cast %513 : vector<1x32x256xf32> to vector<32x256xf32>
    %cst_124 = arith.constant dense<0.000000e+00> : vector<1x32xf32>
    %515 = tpu.matmul %512, %514, %cst_124 {dimension_numbers = #tpu.dot_dimension_numbers<[1], [1], [0], [0], [0, 0, 1, 0], [], []>, precision = #tpu.contract_precision<fp32>} : vector<1x256xf32>, vector<32x256xf32>, vector<1x32xf32> -> vector<1x32xf32>
    %cst_125 = arith.constant 3.906250e-03 : f32
    %516 = vector.broadcast %cst_125 : f32 to vector<1x32xf32>
    %517 = arith.mulf %515, %516 : vector<1x32xf32>
    %c0_126 = arith.constant 0 : index
    %c0_127 = arith.constant 0 : index
    %518 = vector.load %arg4[%c0_126, %c0_127] : memref<32x32xf32, #tpu.memory_space<vmem>>, vector<32x32xf32>
    %cst_128 = arith.constant dense<0.000000e+00> : vector<1x32xf32>
    %519 = tpu.matmul %517, %518, %cst_128 {dimension_numbers = #tpu.dot_dimension_numbers<[1], [1], [0], [0], [0, 0, 1, 0], [], []>, precision = #tpu.contract_precision<fp32>} : vector<1x32xf32>, vector<32x32xf32>, vector<1x32xf32> -> vector<1x32xf32>
    %c0_129 = arith.constant 0 : index
    %c0_130 = arith.constant 0 : index
    %520 = vector.load %arg5[%c0_129, %c0_130] : memref<1x32xf32, #tpu.memory_space<vmem>>, vector<1x32xf32>
    %521 = arith.addf %519, %520 : vector<1x32xf32>
    %c0_131 = arith.constant 0 : index
    %c0_132 = arith.constant 0 : index
    %c0_133 = arith.constant 0 : index
    %522 = vector.load %arg6[%c0_131, %c0_132, %c0_133] : memref<1x1x32xf32, #tpu.memory_space<vmem>>, vector<1x1x32xf32>
    %523 = vector.shape_cast %522 : vector<1x1x32xf32> to vector<1x32xf32>
    %524 = vector.shape_cast %521 : vector<1x32xf32> to vector<1x1x32xf32>
    tpu.vector_store %arg6[%c0_131, %c0_132, %c0_133], %524 {strides = array<i32>} : memref<1x1x32xf32, #tpu.memory_space<vmem>>, vector<1x1x32xf32>,
    return
  }
  func.func @transform_0(%arg0: i32) -> (i32, i32, i32) {
    %c0_i32 = arith.constant 0 : i32
    %c0_i32_0 = arith.constant 0 : i32
    %c0_i32_1 = arith.constant 0 : i32
    return %arg0, %c0_i32, %c0_i32_0 : i32, i32, i32
  }
  func.func @transform_1(%arg0: i32) -> (i32, i32) {
    %c0_i32 = arith.constant 0 : i32
    %c0_i32_0 = arith.constant 0 : i32
    %c0_i32_1 = arith.constant 0 : i32
    return %c0_i32, %c0_i32_0 : i32, i32
  }
  func.func @transform_2(%arg0: i32) -> (i32, i32) {
    %c0_i32 = arith.constant 0 : i32
    %c0_i32_0 = arith.constant 0 : i32
    %c0_i32_1 = arith.constant 0 : i32
    return %c0_i32, %c0_i32_0 : i32, i32
  }
  func.func @transform_3(%arg0: i32) -> (i32, i32) {
    %c0_i32 = arith.constant 0 : i32
    %c0_i32_0 = arith.constant 0 : i32
    %c0_i32_1 = arith.constant 0 : i32
    return %c0_i32, %c0_i32_0 : i32, i32
  }
  func.func @transform_4(%arg0: i32) -> (i32, i32) {
    %c0_i32 = arith.constant 0 : i32
    %c0_i32_0 = arith.constant 0 : i32
    %c0_i32_1 = arith.constant 0 : i32
    return %c0_i32, %c0_i32_0 : i32, i32
  }
  func.func @transform_5(%arg0: i32) -> (i32, i32, i32) {
    %c0_i32 = arith.constant 0 : i32
    %c0_i32_0 = arith.constant 0 : i32
    %c0_i32_1 = arith.constant 0 : i32
    return %arg0, %c0_i32, %c0_i32_0 : i32, i32, i32
  }
}

</mosaic_0001>

<llo_original>
// kernel: tpu_custom_call.1
$region0: #{tpu_custom_call.1}
  #allocation0 [shape = 'u32[]', space=smem, size = 0x4, offset = 0x4, fixed_abs, tag = 'smem constant byte address 0x4 - core index']
  #allocation1 [shape = 'u32[144,128]{1,0:T(1,128)}', space=vmem, size = 0x12000, scoped, tag = 'internal scratch']
  #allocation2 [shape = 'f32[1,256]{1,0:T(1,128)}', space=vmem, size = 0x400, scoped, tag = 'scratch operand']
  #allocation3 [shape = 's32[1,256]{1,0:T(1,128)}', space=vmem, size = 0x400, scoped, tag = 'scratch operand']
  #allocation4 [shape = 'f32[1,1]{1,0:T(1,128)S(1)}', space=vmem, size = 0x200, scoped, tag = 'scoped memory for tpu_custom_call.1']
  %s0 = inlined_call_operand.hbm [shape: f32[2,32,256], index: 0, kind: input, shape index: {}]
  %s1 = inlined_call_operand.vmem [shape: f32[1,32], index: 1, kind: input, shape index: {}]
  %s2 = inlined_call_operand.<no memory space> [shape: f32[1,1], index: 2, kind: input, shape index: {}]
  %s3 = inlined_call_operand.hbm [shape: f32[32,32], index: 3, kind: input, shape index: {}]
  %s4 = inlined_call_operand.vmem [shape: f32[1,32], index: 4, kind: input, shape index: {}]
  %s5 = inlined_call_operand.hbm [shape: f32[2,1,32], index: 5, kind: output, shape index: {}]
  %s6 = sld [smem:[#allocation0]]
  $region61: #{tpu_custom_call.1} parent=0
    _
  %s8 = ssub.s32 1, %s6
  %s9 = scalar_select 0, %s8, %s6
  %v10 = vstv %s2
  %11 = vst [vmem:[#allocation4] sm:$0x1] %v10
  $region1: #{tpu_custom_call.1} parent=0
    #allocation5 [shape = 'u8[65536]{0}', space=vmem, size = 0x10000, scoped, tag = 'input window, operand 0']
    #allocation6 [shape = 's32[2]{0}', space=sflag, size = 0x8, scoped, tag = 'scoped memory for tpu_custom_call.1']
    #allocation7 [shape = 's32[2]{0}', space=sflag, size = 0x8, scoped, tag = 'scoped memory for tpu_custom_call.1']
    #allocation8 [shape = 'u8[16384]{0}', space=vmem, size = 0x4000, scoped, tag = 'input window, operand 3, single buffered']
    #allocation9 [shape = 's32[1]{0}', space=sflag, size = 0x4, scoped, tag = 'scoped memory for tpu_custom_call.1']
    #allocation10 [shape = 'u8[1024]{0}', space=vmem, size = 0x400, scoped, tag = 'output window, operand 0']
    %12 = vsyncpa [#allocation6], 0
    %s13 = scalar_lea.sflag [#allocation6], 1
    %14 = vsyncpa %s13, 0
    %15 = vsyncpa [#allocation9], 0
    %16 = vsyncpa [#allocation7], 0
    %s17 = scalar_lea.sflag [#allocation7], 1
    %18 = vsyncpa %s17, 0
    loop: start=0, step=1, limit=4
    $region2: #{tpu_custom_call.1} parent=1 // loop_pre_header
      _
    $region3: #{tpu_custom_call.1} parent=1 // loop_header
      %s20 = sphi 0, %s24
      %p21 = scmp.ge.s32.totalorder %s20, 4
      %s30 = sphi 0, %s32
      %s33 = sphi 0, %s30
      %s34 = sphi 0, %s33
      %s50 = sphi 0, %s34
      %s54 = sphi 0, %s54
      %s56 = sphi 0, %s54
      %s57 = sphi 0, %s56
      %s71 = sphi 0, %s57
      %s75 = sphi 0, %s75
      %s77 = sphi 0, %s75
      %s78 = sphi 0, %s77
      %s92 = sphi 0, %s78
      %s96 = sphi 0, %s96
      %s98 = sphi 0, %s96
      %s99 = sphi 0, %s98
      %s113 = sphi 0, %s99
      %s117 = sphi 0, %s117
      %s119 = sphi 0, %s117
      %s120 = sphi 0, %s119
      %s134 = sphi 0, %s120
      %s140 = sphi 0, %s142
      %s143 = sphi 0, %s140
      %s144 = sphi 0, %s143
      %s160 = sphi 0, %s144
    $region4: #{tpu_custom_call.1} parent=1 // loop_header_branch
      %23 = sbr.rel (%p21) target = $region8
    $region5: #{tpu_custom_call.1} parent=1 // loop_body
      %s25 = ssub.s32 %s20, 1
      %s26 = ssub.s32 %s20, 2
      %s27 = sadd.s32 %s20, 1
      %s28 = ssub.s32 %s20, %s27
      %p29 = scmp.eq.s32.totalorder %s28, 0
      %s31 = sadd.s32 %s30, 1
      %s32 = scalar_select %p29, %s30, %s31
      %p35 = pneg %p29
      %p36 = scmp.eq.s32.totalorder %s20, 1
      %p37 = por %p35, %p36
      %p38 = scmp.ne.s32.totalorder %s30, %s33
      %p39 = scmp.eq.s32.totalorder %s20, 0
      %p40 = por %p38, %p39
      %p41 = scmp.ne.s32.totalorder %s30, %s33
      %p42 = scmp.eq.s32.totalorder %s25, 1
      %p43 = por %p41, %p42
      %p44 = scmp.ne.s32.totalorder %s33, %s34
      %p45 = scmp.eq.s32.totalorder %s25, 0
      %p46 = por %p44, %p45
      %p47 = scmp.ne.s32.totalorder %s33, %s34
      %p48 = scmp.eq.s32.totalorder %s26, 1
      %p49 = por %p47, %p48
      %p51 = scmp.ne.s32.totalorder %s34, %s50
      %p52 = scmp.eq.s32.totalorder %s26, 0
      %p53 = por %p51, %p52
      %s55 = sadd.s32 %s54, 1
      %p58 = scmp.eq.s32.totalorder %s20, 1
      %p59 = scmp.ne.s32.totalorder %s54, %s56
      %p60 = scmp.eq.s32.totalorder %s20, 0
      %p61 = por %p59, %p60
      %p62 = scmp.ne.s32.totalorder %s54, %s56
      %p63 = scmp.eq.s32.totalorder %s25, 1
      %p64 = por %p62, %p63
      %p65 = scmp.ne.s32.totalorder %s56, %s57
      %p66 = scmp.eq.s32.totalorder %s25, 0
      %p67 = por %p65, %p66
      %p68 = scmp.ne.s32.totalorder %s56, %s57
      %p69 = scmp.eq.s32.totalorder %s26, 1
      %p70 = por %p68, %p69
      %p72 = scmp.ne.s32.totalorder %s57, %s71
      %p73 = scmp.eq.s32.totalorder %s26, 0
      %p74 = por %p72, %p73
      %s76 = sadd.s32 %s75, 1
      %p79 = scmp.eq.s32.totalorder %s20, 1
      %p80 = scmp.ne.s32.totalorder %s75, %s77
      %p81 = scmp.eq.s32.totalorder %s20, 0
      %p82 = por %p80, %p81
      %p83 = scmp.ne.s32.totalorder %s75, %s77
      %p84 = scmp.eq.s32.totalorder %s25, 1
      %p85 = por %p83, %p84
      %p86 = scmp.ne.s32.totalorder %s77, %s78
      %p87 = scmp.eq.s32.totalorder %s25, 0
      %p88 = por %p86, %p87
      %p89 = scmp.ne.s32.totalorder %s77, %s78
      %p90 = scmp.eq.s32.totalorder %s26, 1
      %p91 = por %p89, %p90
      %p93 = scmp.ne.s32.totalorder %s78, %s92
      %p94 = scmp.eq.s32.totalorder %s26, 0
      %p95 = por %p93, %p94
      %s97 = sadd.s32 %s96, 1
      %p100 = scmp.eq.s32.totalorder %s20, 1
      %p101 = scmp.ne.s32.totalorder %s96, %s98
      %p102 = scmp.eq.s32.totalorder %s20, 0
      %p103 = por %p101, %p102
      %p104 = scmp.ne.s32.totalorder %s96, %s98
      %p105 = scmp.eq.s32.totalorder %s25, 1
      %p106 = por %p104, %p105
      %p107 = scmp.ne.s32.totalorder %s98, %s99
      %p108 = scmp.eq.s32.totalorder %s25, 0
      %p109 = por %p107, %p108
      %p110 = scmp.ne.s32.totalorder %s98, %s99
      %p111 = scmp.eq.s32.totalorder %s26, 1
      %p112 = por %p110, %p111
      %p114 = scmp.ne.s32.totalorder %s99, %s113
      %p115 = scmp.eq.s32.totalorder %s26, 0
      %p116 = por %p114, %p115
      %s118 = sadd.s32 %s117, 1
      %p121 = scmp.eq.s32.totalorder %s20, 1
      %p122 = scmp.ne.s32.totalorder %s117, %s119
      %p123 = scmp.eq.s32.totalorder %s20, 0
      %p124 = por %p122, %p123
      %p125 = scmp.ne.s32.totalorder %s117, %s119
      %p126 = scmp.eq.s32.totalorder %s25, 1
      %p127 = por %p125, %p126
      %p128 = scmp.ne.s32.totalorder %s119, %s120
      %p129 = scmp.eq.s32.totalorder %s25, 0
      %p130 = por %p128, %p129
      %p131 = scmp.ne.s32.totalorder %s119, %s120
      %p132 = scmp.eq.s32.totalorder %s26, 1
      %p133 = por %p131, %p132
      %p135 = scmp.ne.s32.totalorder %s120, %s134
      %p136 = scmp.eq.s32.totalorder %s26, 0
      %p137 = por %p135, %p136
      %s138 = ssub.s32 %s20, %s27
      %p139 = scmp.eq.s32.totalorder %s138, 0
      %s141 = sadd.s32 %s140, 1
      %s142 = scalar_select %p139, %s140, %s141
      %p145 = pneg %p139
      %p146 = scmp.eq.s32.totalorder %s20, 1
      %p147 = por %p145, %p146
      %p148 = scmp.ne.s32.totalorder %s140, %s143
      %p149 = scmp.eq.s32.totalorder %s20, 0
      %p150 = por %p148, %p149
      %p151 = scmp.ne.s32.totalorder %s140, %s143
      %p152 = scmp.eq.s32.totalorder %s25, 1
      %p153 = por %p151, %p152
      %p154 = scmp.ne.s32.totalorder %s143, %s144
      %p155 = scmp.eq.s32.totalorder %s25, 0
      %p156 = por %p154, %p155
      %p157 = scmp.ne.s32.totalorder %s143, %s144
      %p158 = scmp.eq.s32.totalorder %s26, 1
      %p159 = por %p157, %p158
      %p161 = scmp.ne.s32.totalorder %s144, %s160
      %p162 = scmp.eq.s32.totalorder %s26, 0
      %p163 = por %p161, %p162
      %p164 = scmp.le.s32.totalorder 1, %s20
      %p165 = scmp.lt.s32.totalorder %s20, 3
      %p166 = pnand %p164, %p165
      %p167 = pneg %p166
      // Predicated region
      $region9: #{tpu_custom_call.1} parent=5 // pred_check
        _
      $region10: #{tpu_custom_call.1} parent=5 // pred_check_branch
        %169 = sbr.rel (%p166) target = $region12
      $region11: #{tpu_custom_call.1} parent=5 // pred_region
        %s170 = ssub.s32 %s20, 1
        // Predicated region
        $region13: #{tpu_custom_call.1} parent=11 // pred_check
          %p171 = pneg %p67
        $region14: #{tpu_custom_call.1} parent=11 // pred_check_branch
          %173 = sbr.rel (%p171) target = $region16
        $region15: #{tpu_custom_call.1} parent=11 // pred_region
          _
        $region16: #{tpu_custom_call.1} parent=11 // pred_fallthru
          _
        // Predicated region
        $region17: #{tpu_custom_call.1} parent=11 // pred_check
          %p174 = pneg %p88
        $region18: #{tpu_custom_call.1} parent=11 // pred_check_branch
          %176 = sbr.rel (%p174) target = $region20
        $region19: #{tpu_custom_call.1} parent=11 // pred_region
          _
        $region20: #{tpu_custom_call.1} parent=11 // pred_fallthru
          _
        // Predicated region
        $region21: #{tpu_custom_call.1} parent=11 // pred_check
          %p177 = pneg %p109
        $region22: #{tpu_custom_call.1} parent=11 // pred_check_branch
          %179 = sbr.rel (%p177) target = $region24
        $region23: #{tpu_custom_call.1} parent=11 // pred_region
          %s181 = ssub.s32 512, 512
          %182 = vsyncadd [#allocation9], %s181
          %s183 = sshll.u32 [#allocation8], 4
          %s184 = int_to_ptr.vmem [resolvable:$true] %s183
          %189 = dma.hbm_to_vmem [thread:$0]  %s3, 512, %s184, [#allocation9], 128, 128, 8
        $region24: #{tpu_custom_call.1} parent=11 // pred_fallthru
          _
        // Predicated region
        $region25: #{tpu_custom_call.1} parent=11 // pred_check
          %p190 = pneg %p130
        $region26: #{tpu_custom_call.1} parent=11 // pred_check_branch
          %192 = sbr.rel (%p190) target = $region28
        $region27: #{tpu_custom_call.1} parent=11 // pred_region
          _
        $region28: #{tpu_custom_call.1} parent=11 // pred_fallthru
          _
      $region12: #{tpu_custom_call.1} parent=5 // pred_fallthru
        _
      %p193 = scmp.lt.s32.totalorder %s20, 2
      // Predicated region
      $region29: #{tpu_custom_call.1} parent=5 // pred_check
        %p194 = pneg %p193
      $region30: #{tpu_custom_call.1} parent=5 // pred_check_branch
        %196 = sbr.rel (%p194) target = $region32
      $region31: #{tpu_custom_call.1} parent=5 // pred_region
        // Predicated region
        $region33: #{tpu_custom_call.1} parent=31 // pred_check
          %p197 = pneg %p40
        $region34: #{tpu_custom_call.1} parent=31 // pred_check_branch
          %199 = sbr.rel (%p197) target = $region36
        $region35: #{tpu_custom_call.1} parent=31 // pred_region
          %s200 = sand.u32 %s30, 1
          %s201 = scalar_lea.sflag [#allocation6], %s200
          %s202 = sand.u32 %s30, 1
          %s203 = smul.addr %s202, 64
          %s204 = scalar_lea.vmem [#allocation5], %s203
          %s206 = ssub.s32 1024, 1024
          %207 = vsyncadd %s201, %s206
          %s208 = smul.addr %s20, 8
          %s209 = smul.addr %s208, 128
          %s210 = scalar_lea.hbm %s0, %s209
          %s211 = sshll.u32 %s204, 4
          %s212 = int_to_ptr.vmem [resolvable:$true] %s211
          %217 = dma.hbm_to_vmem [thread:$0]  %s210, 1024, %s212, %s201, 256, 256, 16
        $region36: #{tpu_custom_call.1} parent=31 // pred_fallthru
          _
      $region32: #{tpu_custom_call.1} parent=5 // pred_fallthru
        _
      %p218 = scmp.le.s32.totalorder 1, %s20
      %p219 = scmp.lt.s32.totalorder %s20, 3
      %p220 = pnand %p218, %p219
      %p221 = pneg %p220
      // Predicated region
      $region37: #{tpu_custom_call.1} parent=5 // pred_check
        _
      $region38: #{tpu_custom_call.1} parent=5 // pred_check_branch
        %223 = sbr.rel (%p220) target = $region40
      $region39: #{tpu_custom_call.1} parent=5 // pred_region
        %s224 = ssub.s32 %s20, 1
        %s225 = sand.u32 %s33, 1
        %s226 = scalar_lea.sflag [#allocation6], %s225
        %s227 = sand.u32 %s33, 1
        %s228 = smul.addr %s227, 64
        %s229 = scalar_lea.vmem [#allocation5], %s228
        // Predicated region
        $region41: #{tpu_custom_call.1} parent=39 // pred_check
          %p230 = pneg %p46
        $region42: #{tpu_custom_call.1} parent=39 // pred_check_branch
          %232 = sbr.rel (%p230) target = $region44
        $region43: #{tpu_custom_call.1} parent=39 // pred_region
          %233 = dma.done %s226, 1024
        $region44: #{tpu_custom_call.1} parent=39 // pred_fallthru
          _
        // Predicated region
        $region45: #{tpu_custom_call.1} parent=39 // pred_check
          %p234 = pneg %p109
        $region46: #{tpu_custom_call.1} parent=39 // pred_check_branch
          %236 = sbr.rel (%p234) target = $region48
        $region47: #{tpu_custom_call.1} parent=39 // pred_region
          %237 = dma.done [#allocation9], 512
        $region48: #{tpu_custom_call.1} parent=39 // pred_fallthru
          _
        %s238 = sand.u32 %s33, 1
        %s239 = scalar_lea.sflag [#allocation6], %s238
        %s240 = sand.u32 %s33, 1
        %s241 = smul.addr %s240, 64
        %s242 = scalar_lea.vmem [#allocation5], %s241
        %p243 = pneg %p46
        %p244 = pneg %p43
        %p245 = pneg %p67
        %p246 = pneg %p64
        %p247 = pneg %p88
        %p248 = pneg %p85
        %p249 = pneg %p109
        %p250 = pneg %p106
        %p251 = pneg %p130
        %p252 = pneg %p127
        %p253 = pneg %p156
        %p254 = pneg %p153
        %s255 = sand.u32 %s143, 1
        %s256 = scalar_lea.sflag [#allocation7], %s255
        %s257 = sand.u32 %s143, 1
        %s258 = scalar_lea.vmem [#allocation10], %s257
        %v259 = vld [vmem:[%s1] sm:$0x1]
        %v260 = vld [vmem:[%s229] sm:$0xff]
        %v261 = vld [vmem:[%s229 + $0x8] sm:$0xff]
        %v262 = vld [vmem:[%s229 + $0x10] sm:$0xff]
        %v263 = vld [vmem:[%s229 + $0x18] sm:$0xff]
        %v264 = vld [vmem:[%s229 + $0x20] sm:$0xff]
        %v265 = vld [vmem:[%s229 + $0x28] sm:$0xff]
        %v266 = vld [vmem:[%s229 + $0x30] sm:$0xff]
        %v267 = vld [vmem:[%s229 + $0x38] sm:$0xff]
        %v268 = vld [vmem:[#allocation4] sm:$0x1]
        %270 = vset.pattern.permute.xlu0 0
        %271 = vperm.xlu0 %270, %v268
        %v272 = vpop.permute.xlu0 %271
        %v274 = vlaneseq
        %v275 = vshrl.u32 %v274, 7
        %v276 = vsub.s32 0, %v275
        %v277 = vrot.slane %v272, %v276
        %vm278 = vcmask 261120
        %v280 = vsel %vm278, %v259, 0
        %282 = vmatprep.subr.mxu0 0.0
        %283 = vmatpush1.msra.mxu0 0.0
        %284 = vmatprep.subr.mxu0 0.0
        %285 = vmatpush1.msra.mxu0 0.0
        %286 = vmatprep.subr.mxu0 0.0
        %287 = vmatpush1.msra.mxu0 0.0
        %288 = vmatprep.subr.mxu0 0.0
        %289 = vmatpush1.msra.mxu0 0.0
        %290 = vmatprep.subr.mxu0 0.0
        %291 = vmatpush1.msra.mxu0 0.0
        %292 = vmatprep.subr.mxu0 0.0
        %293 = vmatpush1.msra.mxu0 0.0
        %294 = vmatprep.subr.mxu0 0.0
        %295 = vmatpush1.msra.mxu0 0.0
        %296 = vmatprep.subr.mxu0 0.0
        %297 = vmatpush1.msra.mxu0 0.0
        %298 = vmatprep.subr.mxu0 0.0
        %299 = vmatpush1.msra.mxu0 0.0
        %300 = vmatprep.subr.mxu0 0.0
        %301 = vmatpush1.msra.mxu0 0.0
        %302 = vmatprep.subr.mxu0 0.0
        %303 = vmatpush1.msra.mxu0 0.0
        %304 = vmatprep.subr.mxu0 0.0
        %305 = vmatpush1.msra.mxu0 0.0
        %v306 = vand.u32 %v267, 4294901760
        %307 = vmatprep.subr.mxu0 %v306
        %v308 = vand.u32 %v266, 4294901760
        %309 = vmatpush1.msra.mxu0 %v308
        %v310 = vand.u32 %v265, 4294901760
        %311 = vmatprep.subr.mxu0 %v310
        %v312 = vand.u32 %v264, 4294901760
        %313 = vmatpush1.msra.mxu0 %v312
        %v314 = vand.u32 %v263, 4294901760
        %315 = vmatprep.subr.mxu0 %v314
        %v316 = vand.u32 %v262, 4294901760
        %317 = vmatpush1.msra.mxu0 %v316
        %v318 = vand.u32 %v261, 4294901760
        %319 = vmatprep.subr.mxu0 %v318
        %v320 = vand.u32 %v260, 4294901760
        %321 = vmatpush1.msra.mxu0 %v320
        %322 = vmatprep.subr.mxu0 0.0
        %323 = vmatpush2.msra.mxu0 0.0
        %324 = vmatprep.subr.mxu0 0.0
        %325 = vmatpush2.msra.mxu0 0.0
        %326 = vmatprep.subr.mxu0 0.0
        %327 = vmatpush2.msra.mxu0 0.0
        %328 = vmatprep.subr.mxu0 0.0
        %329 = vmatpush2.msra.mxu0 0.0
        %330 = vmatprep.subr.mxu0 0.0
        %331 = vmatpush2.msra.mxu0 0.0
        %332 = vmatprep.subr.mxu0 0.0
        %333 = vmatpush2.msra.mxu0 0.0
        %334 = vmatprep.subr.mxu0 0.0
        %335 = vmatpush2.msra.mxu0 0.0
        %336 = vmatprep.subr.mxu0 0.0
        %337 = vmatpush2.msra.mxu0 0.0
        %338 = vmatprep.subr.mxu0 0.0
        %339 = vmatpush2.msra.mxu0 0.0
        %340 = vmatprep.subr.mxu0 0.0
        %341 = vmatpush2.msra.mxu0 0.0
        %342 = vmatprep.subr.mxu0 0.0
        %343 = vmatpush2.msra.mxu0 0.0
        %344 = vmatprep.subr.mxu0 0.0
        %345 = vmatpush2.msra.mxu0 0.0
        %346 = vmatprep.subr.mxu0 0.0
        %347 = vmatpush2.msra.mxu0 0.0
        %348 = vmatprep.subr.mxu0 0.0
        %349 = vmatpush2.msra.mxu0 0.0
        %350 = vmatprep.subr.mxu0 0.0
        %351 = vmatpush2.msra.mxu0 0.0
        %352 = vmatprep.subr.mxu0 0.0
        %353 = vmatpush2.msra.mxu0 0.0
        %354 = vmatprep.mubr.f32.mxu0 0.0
        %v355 = vand.u32 %v280, 4294901760
        %v356 = vsub.f32 %v280, %v355
        %v357 = vand.u32 %v356, 4294901760
        %v358 = vsub.f32 %v356, %v357
        %v359 = vand.u32 %v358, 4294901760
        %360 = vmatmul.mubr.f32.gmra.mxu0 %v359
        %v361 = vpop.f32.mrf.mxu0
        %v362 = vadd.f32 %v277, %v361
        %v363 = vpop.f32.mrf.mxu0
        %v364 = vadd.f32 %v277, %v363
        %365 = vdwg.mxu0
        %366 = vmatprep.subr.mxu0 0.0
        %367 = vmatpush1.msra.mxu0 0.0
        %368 = vmatprep.subr.mxu0 0.0
        %369 = vmatpush1.msra.mxu0 0.0
        %370 = vmatprep.subr.mxu0 0.0
        %371 = vmatpush1.msra.mxu0 0.0
        %372 = vmatprep.subr.mxu0 0.0
        %373 = vmatpush1.msra.mxu0 0.0
        %374 = vmatprep.subr.mxu0 0.0
        %375 = vmatpush1.msra.mxu0 0.0
        %376 = vmatprep.subr.mxu0 0.0
        %377 = vmatpush1.msra.mxu0 0.0
        %378 = vmatprep.subr.mxu0 0.0
        %379 = vmatpush1.msra.mxu0 0.0
        %380 = vmatprep.subr.mxu0 0.0
        %381 = vmatpush1.msra.mxu0 0.0
        %382 = vmatprep.subr.mxu0 0.0
        %383 = vmatpush1.msra.mxu0 0.0
        %384 = vmatprep.subr.mxu0 0.0
        %385 = vmatpush1.msra.mxu0 0.0
        %386 = vmatprep.subr.mxu0 0.0
        %387 = vmatpush1.msra.mxu0 0.0
        %388 = vmatprep.subr.mxu0 0.0
        %389 = vmatpush1.msra.mxu0 0.0
        %v390 = vand.u32 %v267, 4294901760
        %v391 = vsub.f32 %v267, %v390
        %v392 = vand.u32 %v391, 4294901760
        %v393 = vsub.f32 %v391, %v392
        %v394 = vand.u32 %v393, 4294901760
        %395 = vmatprep.subr.mxu0 %v394
        %v396 = vand.u32 %v266, 4294901760
        %v397 = vsub.f32 %v266, %v396
        %v398 = vand.u32 %v397, 4294901760
        %v399 = vsub.f32 %v397, %v398
        %v400 = vand.u32 %v399, 4294901760
        %401 = vmatpush1.msra.mxu0 %v400
        %v402 = vand.u32 %v265, 4294901760
        %v403 = vsub.f32 %v265, %v402
        %v404 = vand.u32 %v403, 4294901760
        %v405 = vsub.f32 %v403, %v404
        %v406 = vand.u32 %v405, 4294901760
        %407 = vmatprep.subr.mxu0 %v406
        %v408 = vand.u32 %v264, 4294901760
        %v409 = vsub.f32 %v264, %v408
        %v410 = vand.u32 %v409, 4294901760
        %v411 = vsub.f32 %v409, %v410
        %v412 = vand.u32 %v411, 4294901760
        %413 = vmatpush1.msra.mxu0 %v412
        %v414 = vand.u32 %v263, 4294901760
        %v415 = vsub.f32 %v263, %v414
        %v416 = vand.u32 %v415, 4294901760
        %v417 = vsub.f32 %v415, %v416
        %v418 = vand.u32 %v417, 4294901760
        %419 = vmatprep.subr.mxu0 %v418
        %v420 = vand.u32 %v262, 4294901760
        %v421 = vsub.f32 %v262, %v420
        %v422 = vand.u32 %v421, 4294901760
        %v423 = vsub.f32 %v421, %v422
        %v424 = vand.u32 %v423, 4294901760
        %425 = vmatpush1.msra.mxu0 %v424
        %v426 = vand.u32 %v261, 4294901760
        %v427 = vsub.f32 %v261, %v426
        %v428 = vand.u32 %v427, 4294901760
        %v429 = vsub.f32 %v427, %v428
        %v430 = vand.u32 %v429, 4294901760
        %431 = vmatprep.subr.mxu0 %v430
        %v432 = vand.u32 %v260, 4294901760
        %v433 = vsub.f32 %v260, %v432
        %v434 = vand.u32 %v433, 4294901760
        %v435 = vsub.f32 %v433, %v434
        %v436 = vand.u32 %v435, 4294901760
        %437 = vmatpush1.msra.mxu0 %v436
        %438 = vmatprep.subr.mxu0 0.0
        %439 = vmatpush2.msra.mxu0 0.0
        %440 = vmatprep.subr.mxu0 0.0
        %441 = vmatpush2.msra.mxu0 0.0
        %442 = vmatprep.subr.mxu0 0.0
        %443 = vmatpush2.msra.mxu0 0.0
        %444 = vmatprep.subr.mxu0 0.0
        %445 = vmatpush2.msra.mxu0 0.0
        %446 = vmatprep.subr.mxu0 0.0
        %447 = vmatpush2.msra.mxu0 0.0
        %448 = vmatprep.subr.mxu0 0.0
        %449 = vmatpush2.msra.mxu0 0.0
        %450 = vmatprep.subr.mxu0 0.0
        %451 = vmatpush2.msra.mxu0 0.0
        %452 = vmatprep.subr.mxu0 0.0
        %453 = vmatpush2.msra.mxu0 0.0
        %454 = vmatprep.subr.mxu0 0.0
        %455 = vmatpush2.msra.mxu0 0.0
        %456 = vmatprep.subr.mxu0 0.0
        %457 = vmatpush2.msra.mxu0 0.0
        %458 = vmatprep.subr.mxu0 0.0
        %459 = vmatpush2.msra.mxu0 0.0
        %460 = vmatprep.subr.mxu0 0.0
        %461 = vmatpush2.msra.mxu0 0.0
        %462 = vmatprep.subr.mxu0 0.0
        %463 = vmatpush2.msra.mxu0 0.0
        %464 = vmatprep.subr.mxu0 0.0
        %465 = vmatpush2.msra.mxu0 0.0
        %466 = vmatprep.subr.mxu0 0.0
        %467 = vmatpush2.msra.mxu0 0.0
        %468 = vmatprep.subr.mxu0 0.0
        %469 = vmatpush2.msra.mxu0 0.0
        %470 = vmatprep.mubr.f32.mxu0 0.0
        %v471 = vand.u32 %v280, 4294901760
        %472 = vmatmul.mubr.f32.gmra.mxu0 %v471
        %v473 = vpop.f32.mrf.mxu0
        %v474 = vadd.f32 %v362, %v473
        %v475 = vpop.f32.mrf.mxu0
        %v476 = vadd.f32 %v364, %v475
        %477 = vdwg.mxu0
        %478 = vmatprep.subr.mxu0 0.0
        %479 = vmatpush1.msra.mxu0 0.0
        %480 = vmatprep.subr.mxu0 0.0
        %481 = vmatpush1.msra.mxu0 0.0
        %482 = vmatprep.subr.mxu0 0.0
        %483 = vmatpush1.msra.mxu0 0.0
        %484 = vmatprep.subr.mxu0 0.0
        %485 = vmatpush1.msra.mxu0 0.0
        %486 = vmatprep.subr.mxu0 0.0
        %487 = vmatpush1.msra.mxu0 0.0
        %488 = vmatprep.subr.mxu0 0.0
        %489 = vmatpush1.msra.mxu0 0.0
        %490 = vmatprep.subr.mxu0 0.0
        %491 = vmatpush1.msra.mxu0 0.0
        %492 = vmatprep.subr.mxu0 0.0
        %493 = vmatpush1.msra.mxu0 0.0
        %494 = vmatprep.subr.mxu0 0.0
        %495 = vmatpush1.msra.mxu0 0.0
        %496 = vmatprep.subr.mxu0 0.0
        %497 = vmatpush1.msra.mxu0 0.0
        %498 = vmatprep.subr.mxu0 0.0
        %499 = vmatpush1.msra.mxu0 0.0
        %500 = vmatprep.subr.mxu0 0.0
        %501 = vmatpush1.msra.mxu0 0.0
        %v502 = vand.u32 %v267, 4294901760
        %v503 = vsub.f32 %v267, %v502
        %504 = vmatprep.subr.mxu0 %v503
        %v505 = vand.u32 %v266, 4294901760
        %v506 = vsub.f32 %v266, %v505
        %507 = vmatpush1.msra.mxu0 %v506
        %v508 = vand.u32 %v265, 4294901760
        %v509 = vsub.f32 %v265, %v508
        %510 = vmatprep.subr.mxu0 %v509
        %v511 = vand.u32 %v264, 4294901760
        %v512 = vsub.f32 %v264, %v511
        %513 = vmatpush1.msra.mxu0 %v512
        %v514 = vand.u32 %v263, 4294901760
        %v515 = vsub.f32 %v263, %v514
        %516 = vmatprep.subr.mxu0 %v515
        %v517 = vand.u32 %v262, 4294901760
        %v518 = vsub.f32 %v262, %v517
        %519 = vmatpush1.msra.mxu0 %v518
        %v520 = vand.u32 %v261, 4294901760
        %v521 = vsub.f32 %v261, %v520
        %522 = vmatprep.subr.mxu0 %v521
        %v523 = vand.u32 %v260, 4294901760
        %v524 = vsub.f32 %v260, %v523
        %525 = vmatpush1.msra.mxu0 %v524
        %526 = vmatprep.subr.mxu0 0.0
        %527 = vmatpush2.msra.mxu0 0.0
        %528 = vmatprep.subr.mxu0 0.0
        %529 = vmatpush2.msra.mxu0 0.0
        %530 = vmatprep.subr.mxu0 0.0
        %531 = vmatpush2.msra.mxu0 0.0
        %532 = vmatprep.subr.mxu0 0.0
        %533 = vmatpush2.msra.mxu0 0.0
        %534 = vmatprep.subr.mxu0 0.0
        %535 = vmatpush2.msra.mxu0 0.0
        %536 = vmatprep.subr.mxu0 0.0
        %537 = vmatpush2.msra.mxu0 0.0
        %538 = vmatprep.subr.mxu0 0.0
        %539 = vmatpush2.msra.mxu0 0.0
        %540 = vmatprep.subr.mxu0 0.0
        %541 = vmatpush2.msra.mxu0 0.0
        %542 = vmatprep.subr.mxu0 0.0
        %543 = vmatpush2.msra.mxu0 0.0
        %544 = vmatprep.subr.mxu0 0.0
        %545 = vmatpush2.msra.mxu0 0.0
        %546 = vmatprep.subr.mxu0 0.0
        %547 = vmatpush2.msra.mxu0 0.0
        %548 = vmatprep.subr.mxu0 0.0
        %549 = vmatpush2.msra.mxu0 0.0
        %550 = vmatprep.subr.mxu0 0.0
        %551 = vmatpush2.msra.mxu0 0.0
        %552 = vmatprep.subr.mxu0 0.0
        %553 = vmatpush2.msra.mxu0 0.0
        %554 = vmatprep.subr.mxu0 0.0
        %555 = vmatpush2.msra.mxu0 0.0
        %556 = vmatprep.subr.mxu0 0.0
        %557 = vmatpush2.msra.mxu0 0.0
        %558 = vmatprep.mubr.f32.mxu0 0.0
        %v559 = vand.u32 %v280, 4294901760
        %v560 = vsub.f32 %v280, %v559
        %561 = vmatmul.mubr.f32.gmra.mxu0 %v560
        %v562 = vpop.f32.mrf.mxu0
        %v563 = vadd.f32 %v474, %v562
        %v564 = vpop.f32.mrf.mxu0
        %v565 = vadd.f32 %v476, %v564
        %566 = vdwg.mxu0
        %567 = vmatprep.subr.mxu0 0.0
        %568 = vmatpush1.msra.mxu0 0.0
        %569 = vmatprep.subr.mxu0 0.0
        %570 = vmatpush1.msra.mxu0 0.0
        %571 = vmatprep.subr.mxu0 0.0
        %572 = vmatpush1.msra.mxu0 0.0
        %573 = vmatprep.subr.mxu0 0.0
        %574 = vmatpush1.msra.mxu0 0.0
        %575 = vmatprep.subr.mxu0 0.0
        %576 = vmatpush1.msra.mxu0 0.0
        %577 = vmatprep.subr.mxu0 0.0
        %578 = vmatpush1.msra.mxu0 0.0
        %579 = vmatprep.subr.mxu0 0.0
        %580 = vmatpush1.msra.mxu0 0.0
        %581 = vmatprep.subr.mxu0 0.0
        %582 = vmatpush1.msra.mxu0 0.0
        %583 = vmatprep.subr.mxu0 0.0
        %584 = vmatpush1.msra.mxu0 0.0
        %585 = vmatprep.subr.mxu0 0.0
        %586 = vmatpush1.msra.mxu0 0.0
        %587 = vmatprep.subr.mxu0 0.0
        %588 = vmatpush1.msra.mxu0 0.0
        %589 = vmatprep.subr.mxu0 0.0
        %590 = vmatpush1.msra.mxu0 0.0
        %v591 = vand.u32 %v267, 4294901760
        %592 = vmatprep.subr.mxu0 %v591
        %v593 = vand.u32 %v266, 4294901760
        %594 = vmatpush1.msra.mxu0 %v593
        %v595 = vand.u32 %v265, 4294901760
        %596 = vmatprep.subr.mxu0 %v595
        %v597 = vand.u32 %v264, 4294901760
        %598 = vmatpush1.msra.mxu0 %v597
        %v599 = vand.u32 %v263, 4294901760
        %600 = vmatprep.subr.mxu0 %v599
        %v601 = vand.u32 %v262, 4294901760
        %602 = vmatpush1.msra.mxu0 %v601
        %v603 = vand.u32 %v261, 4294901760
        %604 = vmatprep.subr.mxu0 %v603
        %v605 = vand.u32 %v260, 4294901760
        %606 = vmatpush1.msra.mxu0 %v605
        %607 = vmatprep.subr.mxu0 0.0
        %608 = vmatpush2.msra.mxu0 0.0
        %609 = vmatprep.subr.mxu0 0.0
        %610 = vmatpush2.msra.mxu0 0.0
        %611 = vmatprep.subr.mxu0 0.0
        %612 = vmatpush2.msra.mxu0 0.0
        %613 = vmatprep.subr.mxu0 0.0
        %614 = vmatpush2.msra.mxu0 0.0
        %615 = vmatprep.subr.mxu0 0.0
        %616 = vmatpush2.msra.mxu0 0.0
        %617 = vmatprep.subr.mxu0 0.0
        %618 = vmatpush2.msra.mxu0 0.0
        %619 = vmatprep.subr.mxu0 0.0
        %620 = vmatpush2.msra.mxu0 0.0
        %621 = vmatprep.subr.mxu0 0.0
        %622 = vmatpush2.msra.mxu0 0.0
        %623 = vmatprep.subr.mxu0 0.0
        %624 = vmatpush2.msra.mxu0 0.0
        %625 = vmatprep.subr.mxu0 0.0
        %626 = vmatpush2.msra.mxu0 0.0
        %627 = vmatprep.subr.mxu0 0.0
        %628 = vmatpush2.msra.mxu0 0.0
        %629 = vmatprep.subr.mxu0 0.0
        %630 = vmatpush2.msra.mxu0 0.0
        %631 = vmatprep.subr.mxu0 0.0
        %632 = vmatpush2.msra.mxu0 0.0
        %633 = vmatprep.subr.mxu0 0.0
        %634 = vmatpush2.msra.mxu0 0.0
        %635 = vmatprep.subr.mxu0 0.0
        %636 = vmatpush2.msra.mxu0 0.0
        %637 = vmatprep.subr.mxu0 0.0
        %638 = vmatpush2.msra.mxu0 0.0
        %639 = vmatprep.mubr.f32.mxu0 0.0
        %v640 = vand.u32 %v280, 4294901760
        %v641 = vsub.f32 %v280, %v640
        %v642 = vand.u32 %v641, 4294901760
        %643 = vmatmul.mubr.f32.gmra.mxu0 %v642
        %v644 = vpop.f32.mrf.mxu0
        %v645 = vadd.f32 %v563, %v644
        %v646 = vpop.f32.mrf.mxu0
        %v647 = vadd.f32 %v565, %v646
        %648 = vdwg.mxu0
        %649 = vmatprep.subr.mxu0 0.0
        %650 = vmatpush1.msra.mxu0 0.0
        %651 = vmatprep.subr.mxu0 0.0
        %652 = vmatpush1.msra.mxu0 0.0
        %653 = vmatprep.subr.mxu0 0.0
        %654 = vmatpush1.msra.mxu0 0.0
        %655 = vmatprep.subr.mxu0 0.0
        %656 = vmatpush1.msra.mxu0 0.0
        %657 = vmatprep.subr.mxu0 0.0
        %658 = vmatpush1.msra.mxu0 0.0
        %659 = vmatprep.subr.mxu0 0.0
        %660 = vmatpush1.msra.mxu0 0.0
        %661 = vmatprep.subr.mxu0 0.0
        %662 = vmatpush1.msra.mxu0 0.0
        %663 = vmatprep.subr.mxu0 0.0
        %664 = vmatpush1.msra.mxu0 0.0
        %665 = vmatprep.subr.mxu0 0.0
        %666 = vmatpush1.msra.mxu0 0.0
        %667 = vmatprep.subr.mxu0 0.0
        %668 = vmatpush1.msra.mxu0 0.0
        %669 = vmatprep.subr.mxu0 0.0
        %670 = vmatpush1.msra.mxu0 0.0
        %671 = vmatprep.subr.mxu0 0.0
        %672 = vmatpush1.msra.mxu0 0.0
        %v673 = vand.u32 %v267, 4294901760
        %v674 = vsub.f32 %v267, %v673
        %v675 = vand.u32 %v674, 4294901760
        %676 = vmatprep.subr.mxu0 %v675
        %v677 = vand.u32 %v266, 4294901760
        %v678 = vsub.f32 %v266, %v677
        %v679 = vand.u32 %v678, 4294901760
        %680 = vmatpush1.msra.mxu0 %v679
        %v681 = vand.u32 %v265, 4294901760
        %v682 = vsub.f32 %v265, %v681
        %v683 = vand.u32 %v682, 4294901760
        %684 = vmatprep.subr.mxu0 %v683
        %v685 = vand.u32 %v264, 4294901760
        %v686 = vsub.f32 %v264, %v685
        %v687 = vand.u32 %v686, 4294901760
        %688 = vmatpush1.msra.mxu0 %v687
        %v689 = vand.u32 %v263, 4294901760
        %v690 = vsub.f32 %v263, %v689
        %v691 = vand.u32 %v690, 4294901760
        %692 = vmatprep.subr.mxu0 %v691
        %v693 = vand.u32 %v262, 4294901760
        %v694 = vsub.f32 %v262, %v693
        %v695 = vand.u32 %v694, 4294901760
        %696 = vmatpush1.msra.mxu0 %v695
        %v697 = vand.u32 %v261, 4294901760
        %v698 = vsub.f32 %v261, %v697
        %v699 = vand.u32 %v698, 4294901760
        %700 = vmatprep.subr.mxu0 %v699
        %v701 = vand.u32 %v260, 4294901760
        %v702 = vsub.f32 %v260, %v701
        %v703 = vand.u32 %v702, 4294901760
        %704 = vmatpush1.msra.mxu0 %v703
        %705 = vmatprep.subr.mxu0 0.0
        %706 = vmatpush2.msra.mxu0 0.0
        %707 = vmatprep.subr.mxu0 0.0
        %708 = vmatpush2.msra.mxu0 0.0
        %709 = vmatprep.subr.mxu0 0.0
        %710 = vmatpush2.msra.mxu0 0.0
        %711 = vmatprep.subr.mxu0 0.0
        %712 = vmatpush2.msra.mxu0 0.0
        %713 = vmatprep.subr.mxu0 0.0
        %714 = vmatpush2.msra.mxu0 0.0
        %715 = vmatprep.subr.mxu0 0.0
        %716 = vmatpush2.msra.mxu0 0.0
        %717 = vmatprep.subr.mxu0 0.0
        %718 = vmatpush2.msra.mxu0 0.0
        %719 = vmatprep.subr.mxu0 0.0
        %720 = vmatpush2.msra.mxu0 0.0
        %721 = vmatprep.subr.mxu0 0.0
        %722 = vmatpush2.msra.mxu0 0.0
        %723 = vmatprep.subr.mxu0 0.0
        %724 = vmatpush2.msra.mxu0 0.0
        %725 = vmatprep.subr.mxu0 0.0
        %726 = vmatpush2.msra.mxu0 0.0
        %727 = vmatprep.subr.mxu0 0.0
        %728 = vmatpush2.msra.mxu0 0.0
        %729 = vmatprep.subr.mxu0 0.0
        %730 = vmatpush2.msra.mxu0 0.0
        %731 = vmatprep.subr.mxu0 0.0
        %732 = vmatpush2.msra.mxu0 0.0
        %733 = vmatprep.subr.mxu0 0.0
        %734 = vmatpush2.msra.mxu0 0.0
        %735 = vmatprep.subr.mxu0 0.0
        %736 = vmatpush2.msra.mxu0 0.0
        %737 = vmatprep.mubr.f32.mxu0 0.0
        %v738 = vand.u32 %v280, 4294901760
        %739 = vmatmul.mubr.f32.gmra.mxu0 %v738
        %v740 = vpop.f32.mrf.mxu0
        %v741 = vadd.f32 %v645, %v740
        %v742 = vpop.f32.mrf.mxu0
        %v743 = vadd.f32 %v647, %v742
        %744 = vdwg.mxu0
        %745 = vmatprep.subr.mxu0 0.0
        %746 = vmatpush1.msra.mxu0 0.0
        %747 = vmatprep.subr.mxu0 0.0
        %748 = vmatpush1.msra.mxu0 0.0
        %749 = vmatprep.subr.mxu0 0.0
        %750 = vmatpush1.msra.mxu0 0.0
        %751 = vmatprep.subr.mxu0 0.0
        %752 = vmatpush1.msra.mxu0 0.0
        %753 = vmatprep.subr.mxu0 0.0
        %754 = vmatpush1.msra.mxu0 0.0
        %755 = vmatprep.subr.mxu0 0.0
        %756 = vmatpush1.msra.mxu0 0.0
        %757 = vmatprep.subr.mxu0 0.0
        %758 = vmatpush1.msra.mxu0 0.0
        %759 = vmatprep.subr.mxu0 0.0
        %760 = vmatpush1.msra.mxu0 0.0
        %761 = vmatprep.subr.mxu0 0.0
        %762 = vmatpush1.msra.mxu0 0.0
        %763 = vmatprep.subr.mxu0 0.0
        %764 = vmatpush1.msra.mxu0 0.0
        %765 = vmatprep.subr.mxu0 0.0
        %766 = vmatpush1.msra.mxu0 0.0
        %767 = vmatprep.subr.mxu0 0.0
        %768 = vmatpush1.msra.mxu0 0.0
        %v769 = vand.u32 %v267, 4294901760
        %770 = vmatprep.subr.mxu0 %v769
        %v771 = vand.u32 %v266, 4294901760
        %772 = vmatpush1.msra.mxu0 %v771
        %v773 = vand.u32 %v265, 4294901760
        %774 = vmatprep.subr.mxu0 %v773
        %v775 = vand.u32 %v264, 4294901760
        %776 = vmatpush1.msra.mxu0 %v775
        %v777 = vand.u32 %v263, 4294901760
        %778 = vmatprep.subr.mxu0 %v777
        %v779 = vand.u32 %v262, 4294901760
        %780 = vmatpush1.msra.mxu0 %v779
        %v781 = vand.u32 %v261, 4294901760
        %782 = vmatprep.subr.mxu0 %v781
        %v783 = vand.u32 %v260, 4294901760
        %784 = vmatpush1.msra.mxu0 %v783
        %785 = vmatprep.subr.mxu0 0.0
        %786 = vmatpush2.msra.mxu0 0.0
        %787 = vmatprep.subr.mxu0 0.0
        %788 = vmatpush2.msra.mxu0 0.0
        %789 = vmatprep.subr.mxu0 0.0
        %790 = vmatpush2.msra.mxu0 0.0
        %791 = vmatprep.subr.mxu0 0.0
        %792 = vmatpush2.msra.mxu0 0.0
        %793 = vmatprep.subr.mxu0 0.0
        %794 = vmatpush2.msra.mxu0 0.0
        %795 = vmatprep.subr.mxu0 0.0
        %796 = vmatpush2.msra.mxu0 0.0
        %797 = vmatprep.subr.mxu0 0.0
        %798 = vmatpush2.msra.mxu0 0.0
        %799 = vmatprep.subr.mxu0 0.0
        %800 = vmatpush2.msra.mxu0 0.0
        %801 = vmatprep.subr.mxu0 0.0
        %802 = vmatpush2.msra.mxu0 0.0
        %803 = vmatprep.subr.mxu0 0.0
        %804 = vmatpush2.msra.mxu0 0.0
        %805 = vmatprep.subr.mxu0 0.0
        %806 = vmatpush2.msra.mxu0 0.0
        %807 = vmatprep.subr.mxu0 0.0
        %808 = vmatpush2.msra.mxu0 0.0
        %809 = vmatprep.subr.mxu0 0.0
        %810 = vmatpush2.msra.mxu0 0.0
        %811 = vmatprep.subr.mxu0 0.0
        %812 = vmatpush2.msra.mxu0 0.0
        %813 = vmatprep.subr.mxu0 0.0
        %814 = vmatpush2.msra.mxu0 0.0
        %815 = vmatprep.subr.mxu0 0.0
        %816 = vmatpush2.msra.mxu0 0.0
        %817 = vmatprep.mubr.f32.mxu0 0.0
        %v818 = vand.u32 %v280, 4294901760
        %819 = vmatmul.mubr.f32.gmra.mxu0 %v818
        %v820 = vpop.f32.mrf.mxu0
        %v821 = vadd.f32 %v741, %v820
        %v822 = vpop.f32.mrf.mxu0
        %v823 = vadd.f32 %v743, %v822
        %824 = vdwg.mxu0
        %v827 = vcombine.low %v821, %v823
        %v829 = vunpack.c.l.s4 1966171168
        %v830 = vunpack.c.0.s8 %v829
        %v831 = vlaneseq
        %v832 = vshrl.u32 %v831, 7
        %v833 = vsub.s32 %v830, %v832
        %v834 = vrot.slane %v827, %v833
        %v836 = vunpack.c.l.s4 1966171168
        %v837 = vunpack.c.0.s8 %v836
        %v838 = vlaneseq
        %v839 = vshrl.u32 %v838, 7
        %v840 = vsub.s32 %v837, %v839
        %v841 = vrot.slane %v834, %v840
        %v843 = vlaneseq
        %vm844 = vcmp.ge.s32.totalorder %v843, 0
        %vm845 = vcmp.lt.s32.totalorder %v843, 256
        %vm846 = vmand %vm844, %vm845
        %847 = vst.msk [vmem:[#allocation2] sm:$0x3] %vm846, %v841
        %vm848 = vcmp.lt.s32.totalorder %v821, 0
        %vm849 = vcmp.lt.s32.totalorder %v823, 0
        %v850 = vsel %vm848, 4294967295, 2147483648
        %v851 = vsel %vm849, 4294967295, 2147483648
        %v852 = vxor.u32 %v821, %v850
        %v853 = vxor.u32 %v823, %v851
        %v854 = vcombine.low %v852, %v853
        %v856 = vunpack.c.l.s4 1966171168
        %v857 = vunpack.c.0.s8 %v856
        %v858 = vlaneseq
        %v859 = vshrl.u32 %v858, 7
        %v860 = vsub.s32 %v857, %v859
        %v861 = vrot.slane %v854, %v860
        %v863 = vunpack.c.l.s4 1966171168
        %v864 = vunpack.c.0.s8 %v863
        %v865 = vlaneseq
        %v866 = vshrl.u32 %v865, 7
        %v867 = vsub.s32 %v864, %v866
        %v868 = vrot.slane %v861, %v867
        %869 = vst.msk [vmem:[#allocation3] sm:$0x3] %vm846, %v868
        %v870 = vld [vmem:[#allocation3] sm:$0x3]
        %v871 = vand.u32 %v870, 2147483648
        %vm872 = vcmp.eq.s32.totalorder %v871, 2147483648
        %v873 = vsel %vm872, 1, 0
        %v874 = vcvt.s32.f32 %v873
        %v876 = vlaneseq
        %v877 = vshrl.u32 %v876, 7
        %v878 = vsub.s32 0, %v877
        %v879 = vrot.slane %v874, %v878
        %v880 = vlaneseq
        %v881 = vshrl.u32 %v880, 7
        %v882 = vsub.s32 1, %v881
        %v883 = vrot.slane %v874, %v882
        %vm886 = vcmask 1040384
        %v887 = vsel %vm886, %v879, 0.0
        %v888 = vsel %vm886, %v883, 0.0
        %v889 = vadd.f32 %v887, %v888
        %890 = vadd.xlane.f32.xlu0 %v889
        %v891 = vpop.xlane.xlu0 %890
        %vm892 = vcmp.ge.f32.partialorder %v891, 76.0
        %v893 = vsel %vm892, 2147483648, 0
        %v894 = vsub.f32 76.0, %v891
        %v895 = vsel %vm892, 76.0, %v894
        %v896 = vor.u32 %v893, 1073741824
        %v897 = vand.u32 %v870, 3221225472
        %v898 = vlaneseq
        %v899 = vshrl.u32 %v898, 7
        %v900 = vsub.s32 0, %v899
        %v901 = vrot.slane %v896, %v900
        %vm902 = vcmp.eq.s32.totalorder %v897, %v901
        %v903 = vsel %vm902, 1, 0
        %v904 = vcvt.s32.f32 %v903
        %v906 = vlaneseq
        %v907 = vshrl.u32 %v906, 7
        %v908 = vsub.s32 0, %v907
        %v909 = vrot.slane %v904, %v908
        %v910 = vlaneseq
        %v911 = vshrl.u32 %v910, 7
        %v912 = vsub.s32 1, %v911
        %v913 = vrot.slane %v904, %v912
        %v916 = vsel %vm886, %v909, 0.0
        %v917 = vsel %vm886, %v913, 0.0
        %v918 = vadd.f32 %v916, %v917
        %919 = vadd.xlane.f32.xlu0 %v918
        %v920 = vpop.xlane.xlu0 %919
        %vm921 = vcmp.ge.f32.partialorder %v920, %v895
        %v922 = vsel %vm921, %v896, %v893
        %v923 = vsub.f32 %v895, %v920
        %v924 = vsel %vm921, %v895, %v923
        %v925 = vor.u32 %v922, 536870912
        %v926 = vand.u32 %v870, 3758096384
        %v927 = vlaneseq
        %v928 = vshrl.u32 %v927, 7
        %v929 = vsub.s32 0, %v928
        %v930 = vrot.slane %v925, %v929
        %vm931 = vcmp.eq.s32.totalorder %v926, %v930
        %v932 = vsel %vm931, 1, 0
        %v933 = vcvt.s32.f32 %v932
        %v935 = vlaneseq
        %v936 = vshrl.u32 %v935, 7
        %v937 = vsub.s32 0, %v936
        %v938 = vrot.slane %v933, %v937
        %v939 = vlaneseq
        %v940 = vshrl.u32 %v939, 7
        %v941 = vsub.s32 1, %v940
        %v942 = vrot.slane %v933, %v941
        %v945 = vsel %vm886, %v938, 0.0
        %v946 = vsel %vm886, %v942, 0.0
        %v947 = vadd.f32 %v945, %v946
        %948 = vadd.xlane.f32.xlu0 %v947
        %v949 = vpop.xlane.xlu0 %948
        %vm950 = vcmp.ge.f32.partialorder %v949, %v924
        %v951 = vsel %vm950, %v925, %v922
        %v952 = vsub.f32 %v924, %v949
        %v953 = vsel %vm950, %v924, %v952
        %v954 = vor.u32 %v951, 268435456
        %v955 = vand.u32 %v870, 4026531840
        %v956 = vlaneseq
        %v957 = vshrl.u32 %v956, 7
        %v958 = vsub.s32 0, %v957
        %v959 = vrot.slane %v954, %v958
        %vm960 = vcmp.eq.s32.totalorder %v955, %v959
        %v961 = vsel %vm960, 1, 0
        %v962 = vcvt.s32.f32 %v961
        %v964 = vlaneseq
        %v965 = vshrl.u32 %v964, 7
        %v966 = vsub.s32 0, %v965
        %v967 = vrot.slane %v962, %v966
        %v968 = vlaneseq
        %v969 = vshrl.u32 %v968, 7
        %v970 = vsub.s32 1, %v969
        %v971 = vrot.slane %v962, %v970
        %v974 = vsel %vm886, %v967, 0.0
        %v975 = vsel %vm886, %v971, 0.0
        %v976 = vadd.f32 %v974, %v975
        %977 = vadd.xlane.f32.xlu0 %v976
        %v978 = vpop.xlane.xlu0 %977
        %vm979 = vcmp.ge.f32.partialorder %v978, %v953
        %v980 = vsel %vm979, %v954, %v951
        %v981 = vsub.f32 %v953, %v978
        %v982 = vsel %vm979, %v953, %v981
        %v983 = vor.u32 %v980, 134217728
        %v984 = vand.u32 %v870, 4160749568
        %v985 = vlaneseq
        %v986 = vshrl.u32 %v985, 7
        %v987 = vsub.s32 0, %v986
        %v988 = vrot.slane %v983, %v987
        %vm989 = vcmp.eq.s32.totalorder %v984, %v988
        %v990 = vsel %vm989, 1, 0
        %v991 = vcvt.s32.f32 %v990
        %v993 = vlaneseq
        %v994 = vshrl.u32 %v993, 7
        %v995 = vsub.s32 0, %v994
        %v996 = vrot.slane %v991, %v995
        %v997 = vlaneseq
        %v998 = vshrl.u32 %v997, 7
        %v999 = vsub.s32 1, %v998
        %v1000 = vrot.slane %v991, %v999
        %v1003 = vsel %vm886, %v996, 0.0
        %v1004 = vsel %vm886, %v1000, 0.0
        %v1005 = vadd.f32 %v1003, %v1004
        %1006 = vadd.xlane.f32.xlu0 %v1005
        %v1007 = vpop.xlane.xlu0 %1006
        %vm1008 = vcmp.ge.f32.partialorder %v1007, %v982
        %v1009 = vsel %vm1008, %v983, %v980
        %v1010 = vsub.f32 %v982, %v1007
        %v1011 = vsel %vm1008, %v982, %v1010
        %v1012 = vor.u32 %v1009, 67108864
        %v1013 = vand.u32 %v870, 4227858432
        %v1014 = vlaneseq
        %v1015 = vshrl.u32 %v1014, 7
        %v1016 = vsub.s32 0, %v1015
        %v1017 = vrot.slane %v1012, %v1016
        %vm1018 = vcmp.eq.s32.totalorder %v1013, %v1017
        %v1019 = vsel %vm1018, 1, 0
        %v1020 = vcvt.s32.f32 %v1019
        %v1022 = vlaneseq
        %v1023 = vshrl.u32 %v1022, 7
        %v1024 = vsub.s32 0, %v1023
        %v1025 = vrot.slane %v1020, %v1024
        %v1026 = vlaneseq
        %v1027 = vshrl.u32 %v1026, 7
        %v1028 = vsub.s32 1, %v1027
        %v1029 = vrot.slane %v1020, %v1028
        %v1032 = vsel %vm886, %v1025, 0.0
        %v1033 = vsel %vm886, %v1029, 0.0
        %v1034 = vadd.f32 %v1032, %v1033
        %1035 = vadd.xlane.f32.xlu0 %v1034
        %v1036 = vpop.xlane.xlu0 %1035
        %vm1037 = vcmp.ge.f32.partialorder %v1036, %v1011
        %v1038 = vsel %vm1037, %v1012, %v1009
        %v1039 = vsub.f32 %v1011, %v1036
        %v1040 = vsel %vm1037, %v1011, %v1039
        %v1041 = vor.u32 %v1038, 33554432
        %v1042 = vand.u32 %v870, 4261412864
        %v1043 = vlaneseq
        %v1044 = vshrl.u32 %v1043, 7
        %v1045 = vsub.s32 0, %v1044
        %v1046 = vrot.slane %v1041, %v1045
        %vm1047 = vcmp.eq.s32.totalorder %v1042, %v1046
        %v1048 = vsel %vm1047, 1, 0
        %v1049 = vcvt.s32.f32 %v1048
        %v1051 = vlaneseq
        %v1052 = vshrl.u32 %v1051, 7
        %v1053 = vsub.s32 0, %v1052
        %v1054 = vrot.slane %v1049, %v1053
        %v1055 = vlaneseq
        %v1056 = vshrl.u32 %v1055, 7
        %v1057 = vsub.s32 1, %v1056
        %v1058 = vrot.slane %v1049, %v1057
        %v1061 = vsel %vm886, %v1054, 0.0
        %v1062 = vsel %vm886, %v1058, 0.0
        %v1063 = vadd.f32 %v1061, %v1062
        %1064 = vadd.xlane.f32.xlu0 %v1063
        %v1065 = vpop.xlane.xlu0 %1064
        %vm1066 = vcmp.ge.f32.partialorder %v1065, %v1040
        %v1067 = vsel %vm1066, %v1041, %v1038
        %v1068 = vsub.f32 %v1040, %v1065
        %v1069 = vsel %vm1066, %v1040, %v1068
        %v1070 = vor.u32 %v1067, 16777216
        %v1071 = vand.u32 %v870, 4278190080
        %v1072 = vlaneseq
        %v1073 = vshrl.u32 %v1072, 7
        %v1074 = vsub.s32 0, %v1073
        %v1075 = vrot.slane %v1070, %v1074
        %vm1076 = vcmp.eq.s32.totalorder %v1071, %v1075
        %v1077 = vsel %vm1076, 1, 0
        %v1078 = vcvt.s32.f32 %v1077
        %v1080 = vlaneseq
        %v1081 = vshrl.u32 %v1080, 7
        %v1082 = vsub.s32 0, %v1081
        %v1083 = vrot.slane %v1078, %v1082
        %v1084 = vlaneseq
        %v1085 = vshrl.u32 %v1084, 7
        %v1086 = vsub.s32 1, %v1085
        %v1087 = vrot.slane %v1078, %v1086
        %v1090 = vsel %vm886, %v1083, 0.0
        %v1091 = vsel %vm886, %v1087, 0.0
        %v1092 = vadd.f32 %v1090, %v1091
        %1093 = vadd.xlane.f32.xlu0 %v1092
        %v1094 = vpop.xlane.xlu0 %1093
        %vm1095 = vcmp.ge.f32.partialorder %v1094, %v1069
        %v1096 = vsel %vm1095, %v1070, %v1067
        %v1097 = vsub.f32 %v1069, %v1094
        %v1098 = vsel %vm1095, %v1069, %v1097
        %v1099 = vor.u32 %v1096, 8388608
        %v1100 = vand.u32 %v870, 4286578688
        %v1101 = vlaneseq
        %v1102 = vshrl.u32 %v1101, 7
        %v1103 = vsub.s32 0, %v1102
        %v1104 = vrot.slane %v1099, %v1103
        %vm1105 = vcmp.eq.s32.totalorder %v1100, %v1104
        %v1106 = vsel %vm1105, 1, 0
        %v1107 = vcvt.s32.f32 %v1106
        %v1109 = vlaneseq
        %v1110 = vshrl.u32 %v1109, 7
        %v1111 = vsub.s32 0, %v1110
        %v1112 = vrot.slane %v1107, %v1111
        %v1113 = vlaneseq
        %v1114 = vshrl.u32 %v1113, 7
        %v1115 = vsub.s32 1, %v1114
        %v1116 = vrot.slane %v1107, %v1115
        %v1119 = vsel %vm886, %v1112, 0.0
        %v1120 = vsel %vm886, %v1116, 0.0
        %v1121 = vadd.f32 %v1119, %v1120
        %1122 = vadd.xlane.f32.xlu0 %v1121
        %v1123 = vpop.xlane.xlu0 %1122
        %vm1124 = vcmp.ge.f32.partialorder %v1123, %v1098
        %v1125 = vsel %vm1124, %v1099, %v1096
        %v1126 = vsub.f32 %v1098, %v1123
        %v1127 = vsel %vm1124, %v1098, %v1126
        %v1128 = vor.u32 %v1125, 4194304
        %v1129 = vand.u32 %v870, 4290772992
        %v1130 = vlaneseq
        %v1131 = vshrl.u32 %v1130, 7
        %v1132 = vsub.s32 0, %v1131
        %v1133 = vrot.slane %v1128, %v1132
        %vm1134 = vcmp.eq.s32.totalorder %v1129, %v1133
        %v1135 = vsel %vm1134, 1, 0
        %v1136 = vcvt.s32.f32 %v1135
        %v1138 = vlaneseq
        %v1139 = vshrl.u32 %v1138, 7
        %v1140 = vsub.s32 0, %v1139
        %v1141 = vrot.slane %v1136, %v1140
        %v1142 = vlaneseq
        %v1143 = vshrl.u32 %v1142, 7
        %v1144 = vsub.s32 1, %v1143
        %v1145 = vrot.slane %v1136, %v1144
        %v1148 = vsel %vm886, %v1141, 0.0
        %v1149 = vsel %vm886, %v1145, 0.0
        %v1150 = vadd.f32 %v1148, %v1149
        %1151 = vadd.xlane.f32.xlu0 %v1150
        %v1152 = vpop.xlane.xlu0 %1151
        %vm1153 = vcmp.ge.f32.partialorder %v1152, %v1127
        %v1154 = vsel %vm1153, %v1128, %v1125
        %v1155 = vsub.f32 %v1127, %v1152
        %v1156 = vsel %vm1153, %v1127, %v1155
        %v1157 = vor.u32 %v1154, 2097152
        %v1158 = vand.u32 %v870, 4292870144
        %v1159 = vlaneseq
        %v1160 = vshrl.u32 %v1159, 7
        %v1161 = vsub.s32 0, %v1160
        %v1162 = vrot.slane %v1157, %v1161
        %vm1163 = vcmp.eq.s32.totalorder %v1158, %v1162
        %v1164 = vsel %vm1163, 1, 0
        %v1165 = vcvt.s32.f32 %v1164
        %v1167 = vlaneseq
        %v1168 = vshrl.u32 %v1167, 7
        %v1169 = vsub.s32 0, %v1168
        %v1170 = vrot.slane %v1165, %v1169
        %v1171 = vlaneseq
        %v1172 = vshrl.u32 %v1171, 7
        %v1173 = vsub.s32 1, %v1172
        %v1174 = vrot.slane %v1165, %v1173
        %v1177 = vsel %vm886, %v1170, 0.0
        %v1178 = vsel %vm886, %v1174, 0.0
        %v1179 = vadd.f32 %v1177, %v1178
        %1180 = vadd.xlane.f32.xlu0 %v1179
        %v1181 = vpop.xlane.xlu0 %1180
        %vm1182 = vcmp.ge.f32.partialorder %v1181, %v1156
        %v1183 = vsel %vm1182, %v1157, %v1154
        %v1184 = vsub.f32 %v1156, %v1181
        %v1185 = vsel %vm1182, %v1156, %v1184
        %v1186 = vor.u32 %v1183, 1048576
        %v1187 = vand.u32 %v870, 4293918720
        %v1188 = vlaneseq
        %v1189 = vshrl.u32 %v1188, 7
        %v1190 = vsub.s32 0, %v1189
        %v1191 = vrot.slane %v1186, %v1190
        %vm1192 = vcmp.eq.s32.totalorder %v1187, %v1191
        %v1193 = vsel %vm1192, 1, 0
        %v1194 = vcvt.s32.f32 %v1193
        %v1196 = vlaneseq
        %v1197 = vshrl.u32 %v1196, 7
        %v1198 = vsub.s32 0, %v1197
        %v1199 = vrot.slane %v1194, %v1198
        %v1200 = vlaneseq
        %v1201 = vshrl.u32 %v1200, 7
        %v1202 = vsub.s32 1, %v1201
        %v1203 = vrot.slane %v1194, %v1202
        %v1206 = vsel %vm886, %v1199, 0.0
        %v1207 = vsel %vm886, %v1203, 0.0
        %v1208 = vadd.f32 %v1206, %v1207
        %1209 = vadd.xlane.f32.xlu0 %v1208
        %v1210 = vpop.xlane.xlu0 %1209
        %vm1211 = vcmp.ge.f32.partialorder %v1210, %v1185
        %v1212 = vsel %vm1211, %v1186, %v1183
        %v1213 = vsub.f32 %v1185, %v1210
        %v1214 = vsel %vm1211, %v1185, %v1213
        %v1215 = vor.u32 %v1212, 524288
        %v1216 = vand.u32 %v870, 4294443008
        %v1217 = vlaneseq
        %v1218 = vshrl.u32 %v1217, 7
        %v1219 = vsub.s32 0, %v1218
        %v1220 = vrot.slane %v1215, %v1219
        %vm1221 = vcmp.eq.s32.totalorder %v1216, %v1220
        %v1222 = vsel %vm1221, 1, 0
        %v1223 = vcvt.s32.f32 %v1222
        %v1225 = vlaneseq
        %v1226 = vshrl.u32 %v1225, 7
        %v1227 = vsub.s32 0, %v1226
        %v1228 = vrot.slane %v1223, %v1227
        %v1229 = vlaneseq
        %v1230 = vshrl.u32 %v1229, 7
        %v1231 = vsub.s32 1, %v1230
        %v1232 = vrot.slane %v1223, %v1231
        %v1235 = vsel %vm886, %v1228, 0.0
        %v1236 = vsel %vm886, %v1232, 0.0
        %v1237 = vadd.f32 %v1235, %v1236
        %1238 = vadd.xlane.f32.xlu0 %v1237
        %v1239 = vpop.xlane.xlu0 %1238
        %vm1240 = vcmp.ge.f32.partialorder %v1239, %v1214
        %v1241 = vsel %vm1240, %v1215, %v1212
        %v1242 = vsub.f32 %v1214, %v1239
        %v1243 = vsel %vm1240, %v1214, %v1242
        %v1244 = vor.u32 %v1241, 262144
        %v1245 = vand.u32 %v870, 4294705152
        %v1246 = vlaneseq
        %v1247 = vshrl.u32 %v1246, 7
        %v1248 = vsub.s32 0, %v1247
        %v1249 = vrot.slane %v1244, %v1248
        %vm1250 = vcmp.eq.s32.totalorder %v1245, %v1249
        %v1251 = vsel %vm1250, 1, 0
        %v1252 = vcvt.s32.f32 %v1251
        %v1254 = vlaneseq
        %v1255 = vshrl.u32 %v1254, 7
        %v1256 = vsub.s32 0, %v1255
        %v1257 = vrot.slane %v1252, %v1256
        %v1258 = vlaneseq
        %v1259 = vshrl.u32 %v1258, 7
        %v1260 = vsub.s32 1, %v1259
        %v1261 = vrot.slane %v1252, %v1260
        %v1264 = vsel %vm886, %v1257, 0.0
        %v1265 = vsel %vm886, %v1261, 0.0
        %v1266 = vadd.f32 %v1264, %v1265
        %1267 = vadd.xlane.f32.xlu0 %v1266
        %v1268 = vpop.xlane.xlu0 %1267
        %vm1269 = vcmp.ge.f32.partialorder %v1268, %v1243
        %v1270 = vsel %vm1269, %v1244, %v1241
        %v1271 = vsub.f32 %v1243, %v1268
        %v1272 = vsel %vm1269, %v1243, %v1271
        %v1273 = vor.u32 %v1270, 131072
        %v1274 = vand.u32 %v870, 4294836224
        %v1275 = vlaneseq
        %v1276 = vshrl.u32 %v1275, 7
        %v1277 = vsub.s32 0, %v1276
        %v1278 = vrot.slane %v1273, %v1277
        %vm1279 = vcmp.eq.s32.totalorder %v1274, %v1278
        %v1280 = vsel %vm1279, 1, 0
        %v1281 = vcvt.s32.f32 %v1280
        %v1283 = vlaneseq
        %v1284 = vshrl.u32 %v1283, 7
        %v1285 = vsub.s32 0, %v1284
        %v1286 = vrot.slane %v1281, %v1285
        %v1287 = vlaneseq
        %v1288 = vshrl.u32 %v1287, 7
        %v1289 = vsub.s32 1, %v1288
        %v1290 = vrot.slane %v1281, %v1289
        %v1293 = vsel %vm886, %v1286, 0.0
        %v1294 = vsel %vm886, %v1290, 0.0
        %v1295 = vadd.f32 %v1293, %v1294
        %1296 = vadd.xlane.f32.xlu0 %v1295
        %v1297 = vpop.xlane.xlu0 %1296
        %vm1298 = vcmp.ge.f32.partialorder %v1297, %v1272
        %v1299 = vsel %vm1298, %v1273, %v1270
        %v1300 = vsub.f32 %v1272, %v1297
        %v1301 = vsel %vm1298, %v1272, %v1300
        %v1302 = vor.u32 %v1299, 65536
        %v1303 = vand.u32 %v870, 4294901760
        %v1304 = vlaneseq
        %v1305 = vshrl.u32 %v1304, 7
        %v1306 = vsub.s32 0, %v1305
        %v1307 = vrot.slane %v1302, %v1306
        %vm1308 = vcmp.eq.s32.totalorder %v1303, %v1307
        %v1309 = vsel %vm1308, 1, 0
        %v1310 = vcvt.s32.f32 %v1309
        %v1312 = vlaneseq
        %v1313 = vshrl.u32 %v1312, 7
        %v1314 = vsub.s32 0, %v1313
        %v1315 = vrot.slane %v1310, %v1314
        %v1316 = vlaneseq
        %v1317 = vshrl.u32 %v1316, 7
        %v1318 = vsub.s32 1, %v1317
        %v1319 = vrot.slane %v1310, %v1318
        %v1322 = vsel %vm886, %v1315, 0.0
        %v1323 = vsel %vm886, %v1319, 0.0
        %v1324 = vadd.f32 %v1322, %v1323
        %1325 = vadd.xlane.f32.xlu0 %v1324
        %v1326 = vpop.xlane.xlu0 %1325
        %vm1327 = vcmp.ge.f32.partialorder %v1326, %v1301
        %v1328 = vsel %vm1327, %v1302, %v1299
        %v1329 = vsub.f32 %v1301, %v1326
        %v1330 = vsel %vm1327, %v1301, %v1329
        %v1331 = vor.u32 %v1328, 32768
        %v1332 = vand.u32 %v870, 4294934528
        %v1333 = vlaneseq
        %v1334 = vshrl.u32 %v1333, 7
        %v1335 = vsub.s32 0, %v1334
        %v1336 = vrot.slane %v1331, %v1335
        %vm1337 = vcmp.eq.s32.totalorder %v1332, %v1336
        %v1338 = vsel %vm1337, 1, 0
        %v1339 = vcvt.s32.f32 %v1338
        %v1341 = vlaneseq
        %v1342 = vshrl.u32 %v1341, 7
        %v1343 = vsub.s32 0, %v1342
        %v1344 = vrot.slane %v1339, %v1343
        %v1345 = vlaneseq
        %v1346 = vshrl.u32 %v1345, 7
        %v1347 = vsub.s32 1, %v1346
        %v1348 = vrot.slane %v1339, %v1347
        %v1351 = vsel %vm886, %v1344, 0.0
        %v1352 = vsel %vm886, %v1348, 0.0
        %v1353 = vadd.f32 %v1351, %v1352
        %1354 = vadd.xlane.f32.xlu0 %v1353
        %v1355 = vpop.xlane.xlu0 %1354
        %vm1356 = vcmp.ge.f32.partialorder %v1355, %v1330
        %v1357 = vsel %vm1356, %v1331, %v1328
        %v1358 = vsub.f32 %v1330, %v1355
        %v1359 = vsel %vm1356, %v1330, %v1358
        %v1360 = vor.u32 %v1357, 16384
        %v1361 = vand.u32 %v870, 4294950912
        %v1362 = vlaneseq
        %v1363 = vshrl.u32 %v1362, 7
        %v1364 = vsub.s32 0, %v1363
        %v1365 = vrot.slane %v1360, %v1364
        %vm1366 = vcmp.eq.s32.totalorder %v1361, %v1365
        %v1367 = vsel %vm1366, 1, 0
        %v1368 = vcvt.s32.f32 %v1367
        %v1370 = vlaneseq
        %v1371 = vshrl.u32 %v1370, 7
        %v1372 = vsub.s32 0, %v1371
        %v1373 = vrot.slane %v1368, %v1372
        %v1374 = vlaneseq
        %v1375 = vshrl.u32 %v1374, 7
        %v1376 = vsub.s32 1, %v1375
        %v1377 = vrot.slane %v1368, %v1376
        %v1380 = vsel %vm886, %v1373, 0.0
        %v1381 = vsel %vm886, %v1377, 0.0
        %v1382 = vadd.f32 %v1380, %v1381
        %1383 = vadd.xlane.f32.xlu0 %v1382
        %v1384 = vpop.xlane.xlu0 %1383
        %vm1385 = vcmp.ge.f32.partialorder %v1384, %v1359
        %v1386 = vsel %vm1385, %v1360, %v1357
        %v1387 = vsub.f32 %v1359, %v1384
        %v1388 = vsel %vm1385, %v1359, %v1387
        %v1389 = vor.u32 %v1386, 8192
        %v1390 = vand.u32 %v870, 4294959104
        %v1391 = vlaneseq
        %v1392 = vshrl.u32 %v1391, 7
        %v1393 = vsub.s32 0, %v1392
        %v1394 = vrot.slane %v1389, %v1393
        %vm1395 = vcmp.eq.s32.totalorder %v1390, %v1394
        %v1396 = vsel %vm1395, 1, 0
        %v1397 = vcvt.s32.f32 %v1396
        %v1399 = vlaneseq
        %v1400 = vshrl.u32 %v1399, 7
        %v1401 = vsub.s32 0, %v1400
        %v1402 = vrot.slane %v1397, %v1401
        %v1403 = vlaneseq
        %v1404 = vshrl.u32 %v1403, 7
        %v1405 = vsub.s32 1, %v1404
        %v1406 = vrot.slane %v1397, %v1405
        %v1409 = vsel %vm886, %v1402, 0.0
        %v1410 = vsel %vm886, %v1406, 0.0
        %v1411 = vadd.f32 %v1409, %v1410
        %1412 = vadd.xlane.f32.xlu0 %v1411
        %v1413 = vpop.xlane.xlu0 %1412
        %vm1414 = vcmp.ge.f32.partialorder %v1413, %v1388
        %v1415 = vsel %vm1414, %v1389, %v1386
        %v1416 = vsub.f32 %v1388, %v1413
        %v1417 = vsel %vm1414, %v1388, %v1416
        %v1418 = vor.u32 %v1415, 4096
        %v1419 = vand.u32 %v870, 4294963200
        %v1420 = vlaneseq
        %v1421 = vshrl.u32 %v1420, 7
        %v1422 = vsub.s32 0, %v1421
        %v1423 = vrot.slane %v1418, %v1422
        %vm1424 = vcmp.eq.s32.totalorder %v1419, %v1423
        %v1425 = vsel %vm1424, 1, 0
        %v1426 = vcvt.s32.f32 %v1425
        %v1428 = vlaneseq
        %v1429 = vshrl.u32 %v1428, 7
        %v1430 = vsub.s32 0, %v1429
        %v1431 = vrot.slane %v1426, %v1430
        %v1432 = vlaneseq
        %v1433 = vshrl.u32 %v1432, 7
        %v1434 = vsub.s32 1, %v1433
        %v1435 = vrot.slane %v1426, %v1434
        %v1438 = vsel %vm886, %v1431, 0.0
        %v1439 = vsel %vm886, %v1435, 0.0
        %v1440 = vadd.f32 %v1438, %v1439
        %1441 = vadd.xlane.f32.xlu0 %v1440
        %v1442 = vpop.xlane.xlu0 %1441
        %vm1443 = vcmp.ge.f32.partialorder %v1442, %v1417
        %v1444 = vsel %vm1443, %v1418, %v1415
        %v1445 = vsub.f32 %v1417, %v1442
        %v1446 = vsel %vm1443, %v1417, %v1445
        %v1447 = vor.u32 %v1444, 2048
        %v1448 = vand.u32 %v870, 4294965248
        %v1449 = vlaneseq
        %v1450 = vshrl.u32 %v1449, 7
        %v1451 = vsub.s32 0, %v1450
        %v1452 = vrot.slane %v1447, %v1451
        %vm1453 = vcmp.eq.s32.totalorder %v1448, %v1452
        %v1454 = vsel %vm1453, 1, 0
        %v1455 = vcvt.s32.f32 %v1454
        %v1457 = vlaneseq
        %v1458 = vshrl.u32 %v1457, 7
        %v1459 = vsub.s32 0, %v1458
        %v1460 = vrot.slane %v1455, %v1459
        %v1461 = vlaneseq
        %v1462 = vshrl.u32 %v1461, 7
        %v1463 = vsub.s32 1, %v1462
        %v1464 = vrot.slane %v1455, %v1463
        %v1467 = vsel %vm886, %v1460, 0.0
        %v1468 = vsel %vm886, %v1464, 0.0
        %v1469 = vadd.f32 %v1467, %v1468
        %1470 = vadd.xlane.f32.xlu0 %v1469
        %v1471 = vpop.xlane.xlu0 %1470
        %vm1472 = vcmp.ge.f32.partialorder %v1471, %v1446
        %v1473 = vsel %vm1472, %v1447, %v1444
        %v1474 = vsub.f32 %v1446, %v1471
        %v1475 = vsel %vm1472, %v1446, %v1474
        %v1476 = vor.u32 %v1473, 1024
        %v1477 = vand.u32 %v870, 4294966272
        %v1478 = vlaneseq
        %v1479 = vshrl.u32 %v1478, 7
        %v1480 = vsub.s32 0, %v1479
        %v1481 = vrot.slane %v1476, %v1480
        %vm1482 = vcmp.eq.s32.totalorder %v1477, %v1481
        %v1483 = vsel %vm1482, 1, 0
        %v1484 = vcvt.s32.f32 %v1483
        %v1486 = vlaneseq
        %v1487 = vshrl.u32 %v1486, 7
        %v1488 = vsub.s32 0, %v1487
        %v1489 = vrot.slane %v1484, %v1488
        %v1490 = vlaneseq
        %v1491 = vshrl.u32 %v1490, 7
        %v1492 = vsub.s32 1, %v1491
        %v1493 = vrot.slane %v1484, %v1492
        %v1496 = vsel %vm886, %v1489, 0.0
        %v1497 = vsel %vm886, %v1493, 0.0
        %v1498 = vadd.f32 %v1496, %v1497
        %1499 = vadd.xlane.f32.xlu0 %v1498
        %v1500 = vpop.xlane.xlu0 %1499
        %vm1501 = vcmp.ge.f32.partialorder %v1500, %v1475
        %v1502 = vsel %vm1501, %v1476, %v1473
        %v1503 = vsub.f32 %v1475, %v1500
        %v1504 = vsel %vm1501, %v1475, %v1503
        %v1505 = vor.u32 %v1502, 512
        %v1506 = vand.u32 %v870, 4294966784
        %v1507 = vlaneseq
        %v1508 = vshrl.u32 %v1507, 7
        %v1509 = vsub.s32 0, %v1508
        %v1510 = vrot.slane %v1505, %v1509
        %vm1511 = vcmp.eq.s32.totalorder %v1506, %v1510
        %v1512 = vsel %vm1511, 1, 0
        %v1513 = vcvt.s32.f32 %v1512
        %v1515 = vlaneseq
        %v1516 = vshrl.u32 %v1515, 7
        %v1517 = vsub.s32 0, %v1516
        %v1518 = vrot.slane %v1513, %v1517
        %v1519 = vlaneseq
        %v1520 = vshrl.u32 %v1519, 7
        %v1521 = vsub.s32 1, %v1520
        %v1522 = vrot.slane %v1513, %v1521
        %v1525 = vsel %vm886, %v1518, 0.0
        %v1526 = vsel %vm886, %v1522, 0.0
        %v1527 = vadd.f32 %v1525, %v1526
        %1528 = vadd.xlane.f32.xlu0 %v1527
        %v1529 = vpop.xlane.xlu0 %1528
        %vm1530 = vcmp.ge.f32.partialorder %v1529, %v1504
        %v1531 = vsel %vm1530, %v1505, %v1502
        %v1532 = vsub.f32 %v1504, %v1529
        %v1533 = vsel %vm1530, %v1504, %v1532
        %v1534 = vor.u32 %v1531, 256
        %v1535 = vand.u32 %v870, 4294967040
        %v1536 = vlaneseq
        %v1537 = vshrl.u32 %v1536, 7
        %v1538 = vsub.s32 0, %v1537
        %v1539 = vrot.slane %v1534, %v1538
        %vm1540 = vcmp.eq.s32.totalorder %v1535, %v1539
        %v1541 = vsel %vm1540, 1, 0
        %v1542 = vcvt.s32.f32 %v1541
        %v1544 = vlaneseq
        %v1545 = vshrl.u32 %v1544, 7
        %v1546 = vsub.s32 0, %v1545
        %v1547 = vrot.slane %v1542, %v1546
        %v1548 = vlaneseq
        %v1549 = vshrl.u32 %v1548, 7
        %v1550 = vsub.s32 1, %v1549
        %v1551 = vrot.slane %v1542, %v1550
        %v1554 = vsel %vm886, %v1547, 0.0
        %v1555 = vsel %vm886, %v1551, 0.0
        %v1556 = vadd.f32 %v1554, %v1555
        %1557 = vadd.xlane.f32.xlu0 %v1556
        %v1558 = vpop.xlane.xlu0 %1557
        %vm1559 = vcmp.ge.f32.partialorder %v1558, %v1533
        %v1560 = vsel %vm1559, %v1534, %v1531
        %v1561 = vsub.f32 %v1533, %v1558
        %v1562 = vsel %vm1559, %v1533, %v1561
        %v1563 = vor.u32 %v1560, 128
        %v1564 = vand.u32 %v870, 4294967168
        %v1565 = vlaneseq
        %v1566 = vshrl.u32 %v1565, 7
        %v1567 = vsub.s32 0, %v1566
        %v1568 = vrot.slane %v1563, %v1567
        %vm1569 = vcmp.eq.s32.totalorder %v1564, %v1568
        %v1570 = vsel %vm1569, 1, 0
        %v1571 = vcvt.s32.f32 %v1570
        %v1573 = vlaneseq
        %v1574 = vshrl.u32 %v1573, 7
        %v1575 = vsub.s32 0, %v1574
        %v1576 = vrot.slane %v1571, %v1575
        %v1577 = vlaneseq
        %v1578 = vshrl.u32 %v1577, 7
        %v1579 = vsub.s32 1, %v1578
        %v1580 = vrot.slane %v1571, %v1579
        %v1583 = vsel %vm886, %v1576, 0.0
        %v1584 = vsel %vm886, %v1580, 0.0
        %v1585 = vadd.f32 %v1583, %v1584
        %1586 = vadd.xlane.f32.xlu0 %v1585
        %v1587 = vpop.xlane.xlu0 %1586
        %vm1588 = vcmp.ge.f32.partialorder %v1587, %v1562
        %v1589 = vsel %vm1588, %v1563, %v1560
        %v1590 = vsub.f32 %v1562, %v1587
        %v1591 = vsel %vm1588, %v1562, %v1590
        %v1592 = vor.u32 %v1589, 64
        %v1593 = vand.u32 %v870, 4294967232
        %v1594 = vlaneseq
        %v1595 = vshrl.u32 %v1594, 7
        %v1596 = vsub.s32 0, %v1595
        %v1597 = vrot.slane %v1592, %v1596
        %vm1598 = vcmp.eq.s32.totalorder %v1593, %v1597
        %v1599 = vsel %vm1598, 1, 0
        %v1600 = vcvt.s32.f32 %v1599
        %v1602 = vlaneseq
        %v1603 = vshrl.u32 %v1602, 7
        %v1604 = vsub.s32 0, %v1603
        %v1605 = vrot.slane %v1600, %v1604
        %v1606 = vlaneseq
        %v1607 = vshrl.u32 %v1606, 7
        %v1608 = vsub.s32 1, %v1607
        %v1609 = vrot.slane %v1600, %v1608
        %v1612 = vsel %vm886, %v1605, 0.0
        %v1613 = vsel %vm886, %v1609, 0.0
        %v1614 = vadd.f32 %v1612, %v1613
        %1615 = vadd.xlane.f32.xlu0 %v1614
        %v1616 = vpop.xlane.xlu0 %1615
        %vm1617 = vcmp.ge.f32.partialorder %v1616, %v1591
        %v1618 = vsel %vm1617, %v1592, %v1589
        %v1619 = vsub.f32 %v1591, %v1616
        %v1620 = vsel %vm1617, %v1591, %v1619
        %v1621 = vor.u32 %v1618, 32
        %v1622 = vand.u32 %v870, 4294967264
        %v1623 = vlaneseq
        %v1624 = vshrl.u32 %v1623, 7
        %v1625 = vsub.s32 0, %v1624
        %v1626 = vrot.slane %v1621, %v1625
        %vm1627 = vcmp.eq.s32.totalorder %v1622, %v1626
        %v1628 = vsel %vm1627, 1, 0
        %v1629 = vcvt.s32.f32 %v1628
        %v1631 = vlaneseq
        %v1632 = vshrl.u32 %v1631, 7
        %v1633 = vsub.s32 0, %v1632
        %v1634 = vrot.slane %v1629, %v1633
        %v1635 = vlaneseq
        %v1636 = vshrl.u32 %v1635, 7
        %v1637 = vsub.s32 1, %v1636
        %v1638 = vrot.slane %v1629, %v1637
        %v1641 = vsel %vm886, %v1634, 0.0
        %v1642 = vsel %vm886, %v1638, 0.0
        %v1643 = vadd.f32 %v1641, %v1642
        %1644 = vadd.xlane.f32.xlu0 %v1643
        %v1645 = vpop.xlane.xlu0 %1644
        %vm1646 = vcmp.ge.f32.partialorder %v1645, %v1620
        %v1647 = vsel %vm1646, %v1621, %v1618
        %v1648 = vsub.f32 %v1620, %v1645
        %v1649 = vsel %vm1646, %v1620, %v1648
        %v1650 = vor.u32 %v1647, 16
        %v1651 = vand.u32 %v870, 4294967280
        %v1652 = vlaneseq
        %v1653 = vshrl.u32 %v1652, 7
        %v1654 = vsub.s32 0, %v1653
        %v1655 = vrot.slane %v1650, %v1654
        %vm1656 = vcmp.eq.s32.totalorder %v1651, %v1655
        %v1657 = vsel %vm1656, 1, 0
        %v1658 = vcvt.s32.f32 %v1657
        %v1660 = vlaneseq
        %v1661 = vshrl.u32 %v1660, 7
        %v1662 = vsub.s32 0, %v1661
        %v1663 = vrot.slane %v1658, %v1662
        %v1664 = vlaneseq
        %v1665 = vshrl.u32 %v1664, 7
        %v1666 = vsub.s32 1, %v1665
        %v1667 = vrot.slane %v1658, %v1666
        %v1670 = vsel %vm886, %v1663, 0.0
        %v1671 = vsel %vm886, %v1667, 0.0
        %v1672 = vadd.f32 %v1670, %v1671
        %1673 = vadd.xlane.f32.xlu0 %v1672
        %v1674 = vpop.xlane.xlu0 %1673
        %vm1675 = vcmp.ge.f32.partialorder %v1674, %v1649
        %v1676 = vsel %vm1675, %v1650, %v1647
        %v1677 = vsub.f32 %v1649, %v1674
        %v1678 = vsel %vm1675, %v1649, %v1677
        %v1679 = vor.u32 %v1676, 8
        %v1680 = vand.u32 %v870, 4294967288
        %v1681 = vlaneseq
        %v1682 = vshrl.u32 %v1681, 7
        %v1683 = vsub.s32 0, %v1682
        %v1684 = vrot.slane %v1679, %v1683
        %vm1685 = vcmp.eq.s32.totalorder %v1680, %v1684
        %v1686 = vsel %vm1685, 1, 0
        %v1687 = vcvt.s32.f32 %v1686
        %v1689 = vlaneseq
        %v1690 = vshrl.u32 %v1689, 7
        %v1691 = vsub.s32 0, %v1690
        %v1692 = vrot.slane %v1687, %v1691
        %v1693 = vlaneseq
        %v1694 = vshrl.u32 %v1693, 7
        %v1695 = vsub.s32 1, %v1694
        %v1696 = vrot.slane %v1687, %v1695
        %v1699 = vsel %vm886, %v1692, 0.0
        %v1700 = vsel %vm886, %v1696, 0.0
        %v1701 = vadd.f32 %v1699, %v1700
        %1702 = vadd.xlane.f32.xlu0 %v1701
        %v1703 = vpop.xlane.xlu0 %1702
        %vm1704 = vcmp.ge.f32.partialorder %v1703, %v1678
        %v1705 = vsel %vm1704, %v1679, %v1676
        %v1706 = vsub.f32 %v1678, %v1703
        %v1707 = vsel %vm1704, %v1678, %v1706
        %v1708 = vor.u32 %v1705, 4
        %v1709 = vand.u32 %v870, 4294967292
        %v1710 = vlaneseq
        %v1711 = vshrl.u32 %v1710, 7
        %v1712 = vsub.s32 0, %v1711
        %v1713 = vrot.slane %v1708, %v1712
        %vm1714 = vcmp.eq.s32.totalorder %v1709, %v1713
        %v1715 = vsel %vm1714, 1, 0
        %v1716 = vcvt.s32.f32 %v1715
        %v1718 = vlaneseq
        %v1719 = vshrl.u32 %v1718, 7
        %v1720 = vsub.s32 0, %v1719
        %v1721 = vrot.slane %v1716, %v1720
        %v1722 = vlaneseq
        %v1723 = vshrl.u32 %v1722, 7
        %v1724 = vsub.s32 1, %v1723
        %v1725 = vrot.slane %v1716, %v1724
        %v1728 = vsel %vm886, %v1721, 0.0
        %v1729 = vsel %vm886, %v1725, 0.0
        %v1730 = vadd.f32 %v1728, %v1729
        %1731 = vadd.xlane.f32.xlu0 %v1730
        %v1732 = vpop.xlane.xlu0 %1731
        %vm1733 = vcmp.ge.f32.partialorder %v1732, %v1707
        %v1734 = vsel %vm1733, %v1708, %v1705
        %v1735 = vsub.f32 %v1707, %v1732
        %v1736 = vsel %vm1733, %v1707, %v1735
        %v1737 = vor.u32 %v1734, 2
        %v1738 = vand.u32 %v870, 4294967294
        %v1739 = vlaneseq
        %v1740 = vshrl.u32 %v1739, 7
        %v1741 = vsub.s32 0, %v1740
        %v1742 = vrot.slane %v1737, %v1741
        %vm1743 = vcmp.eq.s32.totalorder %v1738, %v1742
        %v1744 = vsel %vm1743, 1, 0
        %v1745 = vcvt.s32.f32 %v1744
        %v1747 = vlaneseq
        %v1748 = vshrl.u32 %v1747, 7
        %v1749 = vsub.s32 0, %v1748
        %v1750 = vrot.slane %v1745, %v1749
        %v1751 = vlaneseq
        %v1752 = vshrl.u32 %v1751, 7
        %v1753 = vsub.s32 1, %v1752
        %v1754 = vrot.slane %v1745, %v1753
        %v1757 = vsel %vm886, %v1750, 0.0
        %v1758 = vsel %vm886, %v1754, 0.0
        %v1759 = vadd.f32 %v1757, %v1758
        %1760 = vadd.xlane.f32.xlu0 %v1759
        %v1761 = vpop.xlane.xlu0 %1760
        %vm1762 = vcmp.ge.f32.partialorder %v1761, %v1736
        %v1763 = vsel %vm1762, %v1737, %v1734
        %v1764 = vsub.f32 %v1736, %v1761
        %v1765 = vsel %vm1762, %v1736, %v1764
        %v1766 = vor.u32 %v1763, 1
        %v1767 = vlaneseq
        %v1768 = vshrl.u32 %v1767, 7
        %v1769 = vsub.s32 0, %v1768
        %v1770 = vrot.slane %v1766, %v1769
        %vm1771 = vcmp.eq.s32.totalorder %v870, %v1770
        %v1772 = vsel %vm1771, 1, 0
        %v1773 = vcvt.s32.f32 %v1772
        %v1775 = vlaneseq
        %v1776 = vshrl.u32 %v1775, 7
        %v1777 = vsub.s32 0, %v1776
        %v1778 = vrot.slane %v1773, %v1777
        %v1779 = vlaneseq
        %v1780 = vshrl.u32 %v1779, 7
        %v1781 = vsub.s32 1, %v1780
        %v1782 = vrot.slane %v1773, %v1781
        %v1785 = vsel %vm886, %v1778, 0.0
        %v1786 = vsel %vm886, %v1782, 0.0
        %v1787 = vadd.f32 %v1785, %v1786
        %1788 = vadd.xlane.f32.xlu0 %v1787
        %v1789 = vpop.xlane.xlu0 %1788
        %vm1790 = vcmp.ge.f32.partialorder %v1789, %v1765
        %v1791 = vsel %vm1790, %v1766, %v1763
        %v1792 = vxor.u32 %v870, 2147483648
        %v1793 = vxor.u32 %v1791, 2147483648
        %v1794 = vlaneseq
        %v1795 = vshrl.u32 %v1794, 7
        %v1796 = vsub.s32 0, %v1795
        %v1797 = vrot.slane %v1793, %v1796
        %vm1798 = vcmp.le.s32.totalorder %v1792, %v1797
        %v1799 = vld [vmem:[#allocation2] sm:$0x3]
        %v1800 = vsel %vm1798, %v1799, -inf
        %v1802 = vlaneseq
        %v1803 = vshrl.u32 %v1802, 7
        %v1804 = vsub.s32 0, %v1803
        %v1805 = vrot.slane %v1800, %v1804
        %v1806 = vlaneseq
        %v1807 = vshrl.u32 %v1806, 7
        %v1808 = vsub.s32 1, %v1807
        %v1809 = vrot.slane %v1800, %v1808
        %v1812 = vsel %vm886, %v1805, -inf
        %v1813 = vsel %vm886, %v1809, -inf
        %v1814 = vmax.f32 %v1812, %v1813
        %1815 = vmax.xlane.f32.xlu0 %v1814
        %v1816 = vpop.xlane.xlu0 %1815
        %v1818 = vlaneseq
        %v1819 = vshrl.u32 %v1818, 7
        %v1820 = vsub.s32 0, %v1819
        %v1821 = vrot.slane %v1816, %v1820
        %vm1823 = vcmp.gt.f32.partialorder %v1799, %v1821
        %v1824 = vsel %vm1823, 1, 0
        %v1825 = vcvt.s32.f32 %v1824
        %v1826 = vld [vmem:[%s229] sm:$0xff]
        %v1827 = vld [vmem:[%s229 + $0x8] sm:$0xff]
        %v1828 = vld [vmem:[%s229 + $0x10] sm:$0xff]
        %v1829 = vld [vmem:[%s229 + $0x18] sm:$0xff]
        %v1830 = vld [vmem:[%s229 + $0x20] sm:$0xff]
        %v1831 = vld [vmem:[%s229 + $0x28] sm:$0xff]
        %v1832 = vld [vmem:[%s229 + $0x30] sm:$0xff]
        %v1833 = vld [vmem:[%s229 + $0x38] sm:$0xff]
        %v1835 = vlaneseq
        %v1836 = vshrl.u32 %v1835, 7
        %v1837 = vsub.s32 0, %v1836
        %v1838 = vrot.slane %v1825, %v1837
        %v1839 = vlaneseq
        %v1840 = vshrl.u32 %v1839, 7
        %v1841 = vsub.s32 1, %v1840
        %v1842 = vrot.slane %v1825, %v1841
        %1845 = vmatprep.subr.mxu0 0.0
        %1846 = vmatpush1.xpose.msra.mxu0 0.0
        %1847 = vmatprep.subr.mxu0 0.0
        %1848 = vmatpush1.xpose.msra.mxu0 0.0
        %1849 = vmatprep.subr.mxu0 0.0
        %1850 = vmatpush1.xpose.msra.mxu0 0.0
        %1851 = vmatprep.subr.mxu0 0.0
        %1852 = vmatpush1.xpose.msra.mxu0 0.0
        %1853 = vmatprep.subr.mxu0 0.0
        %1854 = vmatpush1.xpose.msra.mxu0 0.0
        %1855 = vmatprep.subr.mxu0 0.0
        %1856 = vmatpush1.xpose.msra.mxu0 0.0
        %1857 = vmatprep.subr.mxu0 0.0
        %1858 = vmatpush1.xpose.msra.mxu0 0.0
        %1859 = vmatprep.subr.mxu0 0.0
        %1860 = vmatpush1.xpose.msra.mxu0 0.0
        %1861 = vmatprep.subr.mxu0 0.0
        %1862 = vmatpush1.xpose.msra.mxu0 0.0
        %1863 = vmatprep.subr.mxu0 0.0
        %1864 = vmatpush1.xpose.msra.mxu0 0.0
        %1865 = vmatprep.subr.mxu0 0.0
        %1866 = vmatpush1.xpose.msra.mxu0 0.0
        %1867 = vmatprep.subr.mxu0 0.0
        %1868 = vmatpush1.xpose.msra.mxu0 0.0
        %v1869 = vand.u32 %v1833, 4294901760
        %1870 = vmatprep.subr.mxu0 %v1869
        %v1871 = vand.u32 %v1832, 4294901760
        %1872 = vmatpush1.xpose.msra.mxu0 %v1871
        %v1873 = vand.u32 %v1831, 4294901760
        %1874 = vmatprep.subr.mxu0 %v1873
        %v1875 = vand.u32 %v1830, 4294901760
        %1876 = vmatpush1.xpose.msra.mxu0 %v1875
        %v1877 = vand.u32 %v1829, 4294901760
        %1878 = vmatprep.subr.mxu0 %v1877
        %v1879 = vand.u32 %v1828, 4294901760
        %1880 = vmatpush1.xpose.msra.mxu0 %v1879
        %v1881 = vand.u32 %v1827, 4294901760
        %1882 = vmatprep.subr.mxu0 %v1881
        %v1883 = vand.u32 %v1826, 4294901760
        %1884 = vmatpush1.xpose.msra.mxu0 %v1883
        %1885 = vmatprep.subr.mxu0 0.0
        %1886 = vmatpush2.xpose.msra.mxu0 0.0
        %1887 = vmatprep.subr.mxu0 0.0
        %1888 = vmatpush2.xpose.msra.mxu0 0.0
        %1889 = vmatprep.subr.mxu0 0.0
        %1890 = vmatpush2.xpose.msra.mxu0 0.0
        %1891 = vmatprep.subr.mxu0 0.0
        %1892 = vmatpush2.xpose.msra.mxu0 0.0
        %1893 = vmatprep.subr.mxu0 0.0
        %1894 = vmatpush2.xpose.msra.mxu0 0.0
        %1895 = vmatprep.subr.mxu0 0.0
        %1896 = vmatpush2.xpose.msra.mxu0 0.0
        %1897 = vmatprep.subr.mxu0 0.0
        %1898 = vmatpush2.xpose.msra.mxu0 0.0
        %1899 = vmatprep.subr.mxu0 0.0
        %1900 = vmatpush2.xpose.msra.mxu0 0.0
        %1901 = vmatprep.subr.mxu0 0.0
        %1902 = vmatpush2.xpose.msra.mxu0 0.0
        %1903 = vmatprep.subr.mxu0 0.0
        %1904 = vmatpush2.xpose.msra.mxu0 0.0
        %1905 = vmatprep.subr.mxu0 0.0
        %1906 = vmatpush2.xpose.msra.mxu0 0.0
        %1907 = vmatprep.subr.mxu0 0.0
        %1908 = vmatpush2.xpose.msra.mxu0 0.0
        %1909 = vmatprep.subr.mxu0 0.0
        %1910 = vmatpush2.xpose.msra.mxu0 0.0
        %1911 = vmatprep.subr.mxu0 0.0
        %1912 = vmatpush2.xpose.msra.mxu0 0.0
        %1913 = vmatprep.subr.mxu0 0.0
        %1914 = vmatpush2.xpose.msra.mxu0 0.0
        %1915 = vmatprep.subr.mxu0 0.0
        %1916 = vmatpush2.xpose.msra.mxu0 0.0
        %v1917 = vand.u32 %v1842, 4294901760
        %v1918 = vsub.f32 %v1842, %v1917
        %v1919 = vand.u32 %v1918, 4294901760
        %v1920 = vsub.f32 %v1918, %v1919
        %v1921 = vand.u32 %v1920, 4294901760
        %1922 = vmatprep.mubr.f32.mxu0 %v1921
        %v1923 = vand.u32 %v1838, 4294901760
        %v1924 = vsub.f32 %v1838, %v1923
        %v1925 = vand.u32 %v1924, 4294901760
        %v1926 = vsub.f32 %v1924, %v1925
        %v1927 = vand.u32 %v1926, 4294901760
        %1928 = vmatmul.mubr.f32.gmra.mxu0 %v1927
        %v1929 = vpop.f32.mrf.mxu0
        %v1930 = vadd.f32 0.0, %v1929
        %v1931 = vpop.f32.mrf.mxu0
        %1932 = vdwg.mxu0
        %1933 = vmatprep.subr.mxu0 0.0
        %1934 = vmatpush1.xpose.msra.mxu0 0.0
        %1935 = vmatprep.subr.mxu0 0.0
        %1936 = vmatpush1.xpose.msra.mxu0 0.0
        %1937 = vmatprep.subr.mxu0 0.0
        %1938 = vmatpush1.xpose.msra.mxu0 0.0
        %1939 = vmatprep.subr.mxu0 0.0
        %1940 = vmatpush1.xpose.msra.mxu0 0.0
        %1941 = vmatprep.subr.mxu0 0.0
        %1942 = vmatpush1.xpose.msra.mxu0 0.0
        %1943 = vmatprep.subr.mxu0 0.0
        %1944 = vmatpush1.xpose.msra.mxu0 0.0
        %1945 = vmatprep.subr.mxu0 0.0
        %1946 = vmatpush1.xpose.msra.mxu0 0.0
        %1947 = vmatprep.subr.mxu0 0.0
        %1948 = vmatpush1.xpose.msra.mxu0 0.0
        %1949 = vmatprep.subr.mxu0 0.0
        %1950 = vmatpush1.xpose.msra.mxu0 0.0
        %1951 = vmatprep.subr.mxu0 0.0
        %1952 = vmatpush1.xpose.msra.mxu0 0.0
        %1953 = vmatprep.subr.mxu0 0.0
        %1954 = vmatpush1.xpose.msra.mxu0 0.0
        %1955 = vmatprep.subr.mxu0 0.0
        %1956 = vmatpush1.xpose.msra.mxu0 0.0
        %v1957 = vand.u32 %v1833, 4294901760
        %v1958 = vsub.f32 %v1833, %v1957
        %v1959 = vand.u32 %v1958, 4294901760
        %v1960 = vsub.f32 %v1958, %v1959
        %v1961 = vand.u32 %v1960, 4294901760
        %1962 = vmatprep.subr.mxu0 %v1961
        %v1963 = vand.u32 %v1832, 4294901760
        %v1964 = vsub.f32 %v1832, %v1963
        %v1965 = vand.u32 %v1964, 4294901760
        %v1966 = vsub.f32 %v1964, %v1965
        %v1967 = vand.u32 %v1966, 4294901760
        %1968 = vmatpush1.xpose.msra.mxu0 %v1967
        %v1969 = vand.u32 %v1831, 4294901760
        %v1970 = vsub.f32 %v1831, %v1969
        %v1971 = vand.u32 %v1970, 4294901760
        %v1972 = vsub.f32 %v1970, %v1971
        %v1973 = vand.u32 %v1972, 4294901760
        %1974 = vmatprep.subr.mxu0 %v1973
        %v1975 = vand.u32 %v1830, 4294901760
        %v1976 = vsub.f32 %v1830, %v1975
        %v1977 = vand.u32 %v1976, 4294901760
        %v1978 = vsub.f32 %v1976, %v1977
        %v1979 = vand.u32 %v1978, 4294901760
        %1980 = vmatpush1.xpose.msra.mxu0 %v1979
        %v1981 = vand.u32 %v1829, 4294901760
        %v1982 = vsub.f32 %v1829, %v1981
        %v1983 = vand.u32 %v1982, 4294901760
        %v1984 = vsub.f32 %v1982, %v1983
        %v1985 = vand.u32 %v1984, 4294901760
        %1986 = vmatprep.subr.mxu0 %v1985
        %v1987 = vand.u32 %v1828, 4294901760
        %v1988 = vsub.f32 %v1828, %v1987
        %v1989 = vand.u32 %v1988, 4294901760
        %v1990 = vsub.f32 %v1988, %v1989
        %v1991 = vand.u32 %v1990, 4294901760
        %1992 = vmatpush1.xpose.msra.mxu0 %v1991
        %v1993 = vand.u32 %v1827, 4294901760
        %v1994 = vsub.f32 %v1827, %v1993
        %v1995 = vand.u32 %v1994, 4294901760
        %v1996 = vsub.f32 %v1994, %v1995
        %v1997 = vand.u32 %v1996, 4294901760
        %1998 = vmatprep.subr.mxu0 %v1997
        %v1999 = vand.u32 %v1826, 4294901760
        %v2000 = vsub.f32 %v1826, %v1999
        %v2001 = vand.u32 %v2000, 4294901760
        %v2002 = vsub.f32 %v2000, %v2001
        %v2003 = vand.u32 %v2002, 4294901760
        %2004 = vmatpush1.xpose.msra.mxu0 %v2003
        %2005 = vmatprep.subr.mxu0 0.0
        %2006 = vmatpush2.xpose.msra.mxu0 0.0
        %2007 = vmatprep.subr.mxu0 0.0
        %2008 = vmatpush2.xpose.msra.mxu0 0.0
        %2009 = vmatprep.subr.mxu0 0.0
        %2010 = vmatpush2.xpose.msra.mxu0 0.0
        %2011 = vmatprep.subr.mxu0 0.0
        %2012 = vmatpush2.xpose.msra.mxu0 0.0
        %2013 = vmatprep.subr.mxu0 0.0
        %2014 = vmatpush2.xpose.msra.mxu0 0.0
        %2015 = vmatprep.subr.mxu0 0.0
        %2016 = vmatpush2.xpose.msra.mxu0 0.0
        %2017 = vmatprep.subr.mxu0 0.0
        %2018 = vmatpush2.xpose.msra.mxu0 0.0
        %2019 = vmatprep.subr.mxu0 0.0
        %2020 = vmatpush2.xpose.msra.mxu0 0.0
        %2021 = vmatprep.subr.mxu0 0.0
        %2022 = vmatpush2.xpose.msra.mxu0 0.0
        %2023 = vmatprep.subr.mxu0 0.0
        %2024 = vmatpush2.xpose.msra.mxu0 0.0
        %2025 = vmatprep.subr.mxu0 0.0
        %2026 = vmatpush2.xpose.msra.mxu0 0.0
        %2027 = vmatprep.subr.mxu0 0.0
        %2028 = vmatpush2.xpose.msra.mxu0 0.0
        %2029 = vmatprep.subr.mxu0 0.0
        %2030 = vmatpush2.xpose.msra.mxu0 0.0
        %2031 = vmatprep.subr.mxu0 0.0
        %2032 = vmatpush2.xpose.msra.mxu0 0.0
        %2033 = vmatprep.subr.mxu0 0.0
        %2034 = vmatpush2.xpose.msra.mxu0 0.0
        %2035 = vmatprep.subr.mxu0 0.0
        %2036 = vmatpush2.xpose.msra.mxu0 0.0
        %v2037 = vand.u32 %v1842, 4294901760
        %2038 = vmatprep.mubr.f32.mxu0 %v2037
        %v2039 = vand.u32 %v1838, 4294901760
        %2040 = vmatmul.mubr.f32.gmra.mxu0 %v2039
        %v2041 = vpop.f32.mrf.mxu0
        %v2042 = vadd.f32 %v1930, %v2041
        %v2043 = vpop.f32.mrf.mxu0
        %2044 = vdwg.mxu0
        %2045 = vmatprep.subr.mxu0 0.0
        %2046 = vmatpush1.xpose.msra.mxu0 0.0
        %2047 = vmatprep.subr.mxu0 0.0
        %2048 = vmatpush1.xpose.msra.mxu0 0.0
        %2049 = vmatprep.subr.mxu0 0.0
        %2050 = vmatpush1.xpose.msra.mxu0 0.0
        %2051 = vmatprep.subr.mxu0 0.0
        %2052 = vmatpush1.xpose.msra.mxu0 0.0
        %2053 = vmatprep.subr.mxu0 0.0
        %2054 = vmatpush1.xpose.msra.mxu0 0.0
        %2055 = vmatprep.subr.mxu0 0.0
        %2056 = vmatpush1.xpose.msra.mxu0 0.0
        %2057 = vmatprep.subr.mxu0 0.0
        %2058 = vmatpush1.xpose.msra.mxu0 0.0
        %2059 = vmatprep.subr.mxu0 0.0
        %2060 = vmatpush1.xpose.msra.mxu0 0.0
        %2061 = vmatprep.subr.mxu0 0.0
        %2062 = vmatpush1.xpose.msra.mxu0 0.0
        %2063 = vmatprep.subr.mxu0 0.0
        %2064 = vmatpush1.xpose.msra.mxu0 0.0
        %2065 = vmatprep.subr.mxu0 0.0
        %2066 = vmatpush1.xpose.msra.mxu0 0.0
        %2067 = vmatprep.subr.mxu0 0.0
        %2068 = vmatpush1.xpose.msra.mxu0 0.0
        %v2069 = vand.u32 %v1833, 4294901760
        %v2070 = vsub.f32 %v1833, %v2069
        %2071 = vmatprep.subr.mxu0 %v2070
        %v2072 = vand.u32 %v1832, 4294901760
        %v2073 = vsub.f32 %v1832, %v2072
        %2074 = vmatpush1.xpose.msra.mxu0 %v2073
        %v2075 = vand.u32 %v1831, 4294901760
        %v2076 = vsub.f32 %v1831, %v2075
        %2077 = vmatprep.subr.mxu0 %v2076
        %v2078 = vand.u32 %v1830, 4294901760
        %v2079 = vsub.f32 %v1830, %v2078
        %2080 = vmatpush1.xpose.msra.mxu0 %v2079
        %v2081 = vand.u32 %v1829, 4294901760
        %v2082 = vsub.f32 %v1829, %v2081
        %2083 = vmatprep.subr.mxu0 %v2082
        %v2084 = vand.u32 %v1828, 4294901760
        %v2085 = vsub.f32 %v1828, %v2084
        %2086 = vmatpush1.xpose.msra.mxu0 %v2085
        %v2087 = vand.u32 %v1827, 4294901760
        %v2088 = vsub.f32 %v1827, %v2087
        %2089 = vmatprep.subr.mxu0 %v2088
        %v2090 = vand.u32 %v1826, 4294901760
        %v2091 = vsub.f32 %v1826, %v2090
        %2092 = vmatpush1.xpose.msra.mxu0 %v2091
        %2093 = vmatprep.subr.mxu0 0.0
        %2094 = vmatpush2.xpose.msra.mxu0 0.0
        %2095 = vmatprep.subr.mxu0 0.0
        %2096 = vmatpush2.xpose.msra.mxu0 0.0
        %2097 = vmatprep.subr.mxu0 0.0
        %2098 = vmatpush2.xpose.msra.mxu0 0.0
        %2099 = vmatprep.subr.mxu0 0.0
        %2100 = vmatpush2.xpose.msra.mxu0 0.0
        %2101 = vmatprep.subr.mxu0 0.0
        %2102 = vmatpush2.xpose.msra.mxu0 0.0
        %2103 = vmatprep.subr.mxu0 0.0
        %2104 = vmatpush2.xpose.msra.mxu0 0.0
        %2105 = vmatprep.subr.mxu0 0.0
        %2106 = vmatpush2.xpose.msra.mxu0 0.0
        %2107 = vmatprep.subr.mxu0 0.0
        %2108 = vmatpush2.xpose.msra.mxu0 0.0
        %2109 = vmatprep.subr.mxu0 0.0
        %2110 = vmatpush2.xpose.msra.mxu0 0.0
        %2111 = vmatprep.subr.mxu0 0.0
        %2112 = vmatpush2.xpose.msra.mxu0 0.0
        %2113 = vmatprep.subr.mxu0 0.0
        %2114 = vmatpush2.xpose.msra.mxu0 0.0
        %2115 = vmatprep.subr.mxu0 0.0
        %2116 = vmatpush2.xpose.msra.mxu0 0.0
        %2117 = vmatprep.subr.mxu0 0.0
        %2118 = vmatpush2.xpose.msra.mxu0 0.0
        %2119 = vmatprep.subr.mxu0 0.0
        %2120 = vmatpush2.xpose.msra.mxu0 0.0
        %2121 = vmatprep.subr.mxu0 0.0
        %2122 = vmatpush2.xpose.msra.mxu0 0.0
        %2123 = vmatprep.subr.mxu0 0.0
        %2124 = vmatpush2.xpose.msra.mxu0 0.0
        %v2125 = vand.u32 %v1842, 4294901760
        %v2126 = vsub.f32 %v1842, %v2125
        %2127 = vmatprep.mubr.f32.mxu0 %v2126
        %v2128 = vand.u32 %v1838, 4294901760
        %v2129 = vsub.f32 %v1838, %v2128
        %2130 = vmatmul.mubr.f32.gmra.mxu0 %v2129
        %v2131 = vpop.f32.mrf.mxu0
        %v2132 = vadd.f32 %v2042, %v2131
        %v2133 = vpop.f32.mrf.mxu0
        %2134 = vdwg.mxu0
        %2135 = vmatprep.subr.mxu0 0.0
        %2136 = vmatpush1.xpose.msra.mxu0 0.0
        %2137 = vmatprep.subr.mxu0 0.0
        %2138 = vmatpush1.xpose.msra.mxu0 0.0
        %2139 = vmatprep.subr.mxu0 0.0
        %2140 = vmatpush1.xpose.msra.mxu0 0.0
        %2141 = vmatprep.subr.mxu0 0.0
        %2142 = vmatpush1.xpose.msra.mxu0 0.0
        %2143 = vmatprep.subr.mxu0 0.0
        %2144 = vmatpush1.xpose.msra.mxu0 0.0
        %2145 = vmatprep.subr.mxu0 0.0
        %2146 = vmatpush1.xpose.msra.mxu0 0.0
        %2147 = vmatprep.subr.mxu0 0.0
        %2148 = vmatpush1.xpose.msra.mxu0 0.0
        %2149 = vmatprep.subr.mxu0 0.0
        %2150 = vmatpush1.xpose.msra.mxu0 0.0
        %2151 = vmatprep.subr.mxu0 0.0
        %2152 = vmatpush1.xpose.msra.mxu0 0.0
        %2153 = vmatprep.subr.mxu0 0.0
        %2154 = vmatpush1.xpose.msra.mxu0 0.0
        %2155 = vmatprep.subr.mxu0 0.0
        %2156 = vmatpush1.xpose.msra.mxu0 0.0
        %2157 = vmatprep.subr.mxu0 0.0
        %2158 = vmatpush1.xpose.msra.mxu0 0.0
        %v2159 = vand.u32 %v1833, 4294901760
        %2160 = vmatprep.subr.mxu0 %v2159
        %v2161 = vand.u32 %v1832, 4294901760
        %2162 = vmatpush1.xpose.msra.mxu0 %v2161
        %v2163 = vand.u32 %v1831, 4294901760
        %2164 = vmatprep.subr.mxu0 %v2163
        %v2165 = vand.u32 %v1830, 4294901760
        %2166 = vmatpush1.xpose.msra.mxu0 %v2165
        %v2167 = vand.u32 %v1829, 4294901760
        %2168 = vmatprep.subr.mxu0 %v2167
        %v2169 = vand.u32 %v1828, 4294901760
        %2170 = vmatpush1.xpose.msra.mxu0 %v2169
        %v2171 = vand.u32 %v1827, 4294901760
        %2172 = vmatprep.subr.mxu0 %v2171
        %v2173 = vand.u32 %v1826, 4294901760
        %2174 = vmatpush1.xpose.msra.mxu0 %v2173
        %2175 = vmatprep.subr.mxu0 0.0
        %2176 = vmatpush2.xpose.msra.mxu0 0.0
        %2177 = vmatprep.subr.mxu0 0.0
        %2178 = vmatpush2.xpose.msra.mxu0 0.0
        %2179 = vmatprep.subr.mxu0 0.0
        %2180 = vmatpush2.xpose.msra.mxu0 0.0
        %2181 = vmatprep.subr.mxu0 0.0
        %2182 = vmatpush2.xpose.msra.mxu0 0.0
        %2183 = vmatprep.subr.mxu0 0.0
        %2184 = vmatpush2.xpose.msra.mxu0 0.0
        %2185 = vmatprep.subr.mxu0 0.0
        %2186 = vmatpush2.xpose.msra.mxu0 0.0
        %2187 = vmatprep.subr.mxu0 0.0
        %2188 = vmatpush2.xpose.msra.mxu0 0.0
        %2189 = vmatprep.subr.mxu0 0.0
        %2190 = vmatpush2.xpose.msra.mxu0 0.0
        %2191 = vmatprep.subr.mxu0 0.0
        %2192 = vmatpush2.xpose.msra.mxu0 0.0
        %2193 = vmatprep.subr.mxu0 0.0
        %2194 = vmatpush2.xpose.msra.mxu0 0.0
        %2195 = vmatprep.subr.mxu0 0.0
        %2196 = vmatpush2.xpose.msra.mxu0 0.0
        %2197 = vmatprep.subr.mxu0 0.0
        %2198 = vmatpush2.xpose.msra.mxu0 0.0
        %2199 = vmatprep.subr.mxu0 0.0
        %2200 = vmatpush2.xpose.msra.mxu0 0.0
        %2201 = vmatprep.subr.mxu0 0.0
        %2202 = vmatpush2.xpose.msra.mxu0 0.0
        %2203 = vmatprep.subr.mxu0 0.0
        %2204 = vmatpush2.xpose.msra.mxu0 0.0
        %2205 = vmatprep.subr.mxu0 0.0
        %2206 = vmatpush2.xpose.msra.mxu0 0.0
        %v2207 = vand.u32 %v1842, 4294901760
        %v2208 = vsub.f32 %v1842, %v2207
        %v2209 = vand.u32 %v2208, 4294901760
        %2210 = vmatprep.mubr.f32.mxu0 %v2209
        %v2211 = vand.u32 %v1838, 4294901760
        %v2212 = vsub.f32 %v1838, %v2211
        %v2213 = vand.u32 %v2212, 4294901760
        %2214 = vmatmul.mubr.f32.gmra.mxu0 %v2213
        %v2215 = vpop.f32.mrf.mxu0
        %v2216 = vadd.f32 %v2132, %v2215
        %v2217 = vpop.f32.mrf.mxu0
        %2218 = vdwg.mxu0
        %2219 = vmatprep.subr.mxu0 0.0
        %2220 = vmatpush1.xpose.msra.mxu0 0.0
        %2221 = vmatprep.subr.mxu0 0.0
        %2222 = vmatpush1.xpose.msra.mxu0 0.0
        %2223 = vmatprep.subr.mxu0 0.0
        %2224 = vmatpush1.xpose.msra.mxu0 0.0
        %2225 = vmatprep.subr.mxu0 0.0
        %2226 = vmatpush1.xpose.msra.mxu0 0.0
        %2227 = vmatprep.subr.mxu0 0.0
        %2228 = vmatpush1.xpose.msra.mxu0 0.0
        %2229 = vmatprep.subr.mxu0 0.0
        %2230 = vmatpush1.xpose.msra.mxu0 0.0
        %2231 = vmatprep.subr.mxu0 0.0
        %2232 = vmatpush1.xpose.msra.mxu0 0.0
        %2233 = vmatprep.subr.mxu0 0.0
        %2234 = vmatpush1.xpose.msra.mxu0 0.0
        %2235 = vmatprep.subr.mxu0 0.0
        %2236 = vmatpush1.xpose.msra.mxu0 0.0
        %2237 = vmatprep.subr.mxu0 0.0
        %2238 = vmatpush1.xpose.msra.mxu0 0.0
        %2239 = vmatprep.subr.mxu0 0.0
        %2240 = vmatpush1.xpose.msra.mxu0 0.0
        %2241 = vmatprep.subr.mxu0 0.0
        %2242 = vmatpush1.xpose.msra.mxu0 0.0
        %v2243 = vand.u32 %v1833, 4294901760
        %v2244 = vsub.f32 %v1833, %v2243
        %v2245 = vand.u32 %v2244, 4294901760
        %2246 = vmatprep.subr.mxu0 %v2245
        %v2247 = vand.u32 %v1832, 4294901760
        %v2248 = vsub.f32 %v1832, %v2247
        %v2249 = vand.u32 %v2248, 4294901760
        %2250 = vmatpush1.xpose.msra.mxu0 %v2249
        %v2251 = vand.u32 %v1831, 4294901760
        %v2252 = vsub.f32 %v1831, %v2251
        %v2253 = vand.u32 %v2252, 4294901760
        %2254 = vmatprep.subr.mxu0 %v2253
        %v2255 = vand.u32 %v1830, 4294901760
        %v2256 = vsub.f32 %v1830, %v2255
        %v2257 = vand.u32 %v2256, 4294901760
        %2258 = vmatpush1.xpose.msra.mxu0 %v2257
        %v2259 = vand.u32 %v1829, 4294901760
        %v2260 = vsub.f32 %v1829, %v2259
        %v2261 = vand.u32 %v2260, 4294901760
        %2262 = vmatprep.subr.mxu0 %v2261
        %v2263 = vand.u32 %v1828, 4294901760
        %v2264 = vsub.f32 %v1828, %v2263
        %v2265 = vand.u32 %v2264, 4294901760
        %2266 = vmatpush1.xpose.msra.mxu0 %v2265
        %v2267 = vand.u32 %v1827, 4294901760
        %v2268 = vsub.f32 %v1827, %v2267
        %v2269 = vand.u32 %v2268, 4294901760
        %2270 = vmatprep.subr.mxu0 %v2269
        %v2271 = vand.u32 %v1826, 4294901760
        %v2272 = vsub.f32 %v1826, %v2271
        %v2273 = vand.u32 %v2272, 4294901760
        %2274 = vmatpush1.xpose.msra.mxu0 %v2273
        %2275 = vmatprep.subr.mxu0 0.0
        %2276 = vmatpush2.xpose.msra.mxu0 0.0
        %2277 = vmatprep.subr.mxu0 0.0
        %2278 = vmatpush2.xpose.msra.mxu0 0.0
        %2279 = vmatprep.subr.mxu0 0.0
        %2280 = vmatpush2.xpose.msra.mxu0 0.0
        %2281 = vmatprep.subr.mxu0 0.0
        %2282 = vmatpush2.xpose.msra.mxu0 0.0
        %2283 = vmatprep.subr.mxu0 0.0
        %2284 = vmatpush2.xpose.msra.mxu0 0.0
        %2285 = vmatprep.subr.mxu0 0.0
        %2286 = vmatpush2.xpose.msra.mxu0 0.0
        %2287 = vmatprep.subr.mxu0 0.0
        %2288 = vmatpush2.xpose.msra.mxu0 0.0
        %2289 = vmatprep.subr.mxu0 0.0
        %2290 = vmatpush2.xpose.msra.mxu0 0.0
        %2291 = vmatprep.subr.mxu0 0.0
        %2292 = vmatpush2.xpose.msra.mxu0 0.0
        %2293 = vmatprep.subr.mxu0 0.0
        %2294 = vmatpush2.xpose.msra.mxu0 0.0
        %2295 = vmatprep.subr.mxu0 0.0
        %2296 = vmatpush2.xpose.msra.mxu0 0.0
        %2297 = vmatprep.subr.mxu0 0.0
        %2298 = vmatpush2.xpose.msra.mxu0 0.0
        %2299 = vmatprep.subr.mxu0 0.0
        %2300 = vmatpush2.xpose.msra.mxu0 0.0
        %2301 = vmatprep.subr.mxu0 0.0
        %2302 = vmatpush2.xpose.msra.mxu0 0.0
        %2303 = vmatprep.subr.mxu0 0.0
        %2304 = vmatpush2.xpose.msra.mxu0 0.0
        %2305 = vmatprep.subr.mxu0 0.0
        %2306 = vmatpush2.xpose.msra.mxu0 0.0
        %v2307 = vand.u32 %v1842, 4294901760
        %2308 = vmatprep.mubr.f32.mxu0 %v2307
        %v2309 = vand.u32 %v1838, 4294901760
        %2310 = vmatmul.mubr.f32.gmra.mxu0 %v2309
        %v2311 = vpop.f32.mrf.mxu0
        %v2312 = vadd.f32 %v2216, %v2311
        %v2313 = vpop.f32.mrf.mxu0
        %2314 = vdwg.mxu0
        %2315 = vmatprep.subr.mxu0 0.0
        %2316 = vmatpush1.xpose.msra.mxu0 0.0
        %2317 = vmatprep.subr.mxu0 0.0
        %2318 = vmatpush1.xpose.msra.mxu0 0.0
        %2319 = vmatprep.subr.mxu0 0.0
        %2320 = vmatpush1.xpose.msra.mxu0 0.0
        %2321 = vmatprep.subr.mxu0 0.0
        %2322 = vmatpush1.xpose.msra.mxu0 0.0
        %2323 = vmatprep.subr.mxu0 0.0
        %2324 = vmatpush1.xpose.msra.mxu0 0.0
        %2325 = vmatprep.subr.mxu0 0.0
        %2326 = vmatpush1.xpose.msra.mxu0 0.0
        %2327 = vmatprep.subr.mxu0 0.0
        %2328 = vmatpush1.xpose.msra.mxu0 0.0
        %2329 = vmatprep.subr.mxu0 0.0
        %2330 = vmatpush1.xpose.msra.mxu0 0.0
        %2331 = vmatprep.subr.mxu0 0.0
        %2332 = vmatpush1.xpose.msra.mxu0 0.0
        %2333 = vmatprep.subr.mxu0 0.0
        %2334 = vmatpush1.xpose.msra.mxu0 0.0
        %2335 = vmatprep.subr.mxu0 0.0
        %2336 = vmatpush1.xpose.msra.mxu0 0.0
        %2337 = vmatprep.subr.mxu0 0.0
        %2338 = vmatpush1.xpose.msra.mxu0 0.0
        %v2339 = vand.u32 %v1833, 4294901760
        %2340 = vmatprep.subr.mxu0 %v2339
        %v2341 = vand.u32 %v1832, 4294901760
        %2342 = vmatpush1.xpose.msra.mxu0 %v2341
        %v2343 = vand.u32 %v1831, 4294901760
        %2344 = vmatprep.subr.mxu0 %v2343
        %v2345 = vand.u32 %v1830, 4294901760
        %2346 = vmatpush1.xpose.msra.mxu0 %v2345
        %v2347 = vand.u32 %v1829, 4294901760
        %2348 = vmatprep.subr.mxu0 %v2347
        %v2349 = vand.u32 %v1828, 4294901760
        %2350 = vmatpush1.xpose.msra.mxu0 %v2349
        %v2351 = vand.u32 %v1827, 4294901760
        %2352 = vmatprep.subr.mxu0 %v2351
        %v2353 = vand.u32 %v1826, 4294901760
        %2354 = vmatpush1.xpose.msra.mxu0 %v2353
        %2355 = vmatprep.subr.mxu0 0.0
        %2356 = vmatpush2.xpose.msra.mxu0 0.0
        %2357 = vmatprep.subr.mxu0 0.0
        %2358 = vmatpush2.xpose.msra.mxu0 0.0
        %2359 = vmatprep.subr.mxu0 0.0
        %2360 = vmatpush2.xpose.msra.mxu0 0.0
        %2361 = vmatprep.subr.mxu0 0.0
        %2362 = vmatpush2.xpose.msra.mxu0 0.0
        %2363 = vmatprep.subr.mxu0 0.0
        %2364 = vmatpush2.xpose.msra.mxu0 0.0
        %2365 = vmatprep.subr.mxu0 0.0
        %2366 = vmatpush2.xpose.msra.mxu0 0.0
        %2367 = vmatprep.subr.mxu0 0.0
        %2368 = vmatpush2.xpose.msra.mxu0 0.0
        %2369 = vmatprep.subr.mxu0 0.0
        %2370 = vmatpush2.xpose.msra.mxu0 0.0
        %2371 = vmatprep.subr.mxu0 0.0
        %2372 = vmatpush2.xpose.msra.mxu0 0.0
        %2373 = vmatprep.subr.mxu0 0.0
        %2374 = vmatpush2.xpose.msra.mxu0 0.0
        %2375 = vmatprep.subr.mxu0 0.0
        %2376 = vmatpush2.xpose.msra.mxu0 0.0
        %2377 = vmatprep.subr.mxu0 0.0
        %2378 = vmatpush2.xpose.msra.mxu0 0.0
        %2379 = vmatprep.subr.mxu0 0.0
        %2380 = vmatpush2.xpose.msra.mxu0 0.0
        %2381 = vmatprep.subr.mxu0 0.0
        %2382 = vmatpush2.xpose.msra.mxu0 0.0
        %2383 = vmatprep.subr.mxu0 0.0
        %2384 = vmatpush2.xpose.msra.mxu0 0.0
        %2385 = vmatprep.subr.mxu0 0.0
        %2386 = vmatpush2.xpose.msra.mxu0 0.0
        %v2387 = vand.u32 %v1842, 4294901760
        %2388 = vmatprep.mubr.f32.mxu0 %v2387
        %v2389 = vand.u32 %v1838, 4294901760
        %2390 = vmatmul.mubr.f32.gmra.mxu0 %v2389
        %v2391 = vpop.f32.mrf.mxu0
        %v2392 = vadd.f32 %v2312, %v2391
        %v2393 = vpop.f32.mrf.mxu0
        %2394 = vdwg.mxu0
        %v2395 = vmul.f32 %v2392, 0.00390625
        %v2396 = vld [vmem:[#allocation8] sm:$0xff]
        %v2397 = vld [vmem:[#allocation8 + $0x8] sm:$0xff]
        %v2398 = vld [vmem:[#allocation8 + $0x10] sm:$0xff]
        %v2399 = vld [vmem:[#allocation8 + $0x18] sm:$0xff]
        %v2400 = vld [vmem:[%s4] sm:$0x1]
        %v2402 = vsel %vm278, %v2395, 0
        %v2405 = vsel %vm278, %v2396, 0
        %v2408 = vsel %vm278, %v2397, 0
        %v2411 = vsel %vm278, %v2398, 0
        %v2414 = vsel %vm278, %v2399, 0
        %2416 = vmatprep.subr.mxu0 0.0
        %2417 = vmatpush1.xpose.msra.mxu0 0.0
        %2418 = vmatprep.subr.mxu0 0.0
        %2419 = vmatpush1.xpose.msra.mxu0 0.0
        %2420 = vmatprep.subr.mxu0 0.0
        %2421 = vmatpush1.xpose.msra.mxu0 0.0
        %2422 = vmatprep.subr.mxu0 0.0
        %2423 = vmatpush1.xpose.msra.mxu0 0.0
        %2424 = vmatprep.subr.mxu0 0.0
        %2425 = vmatpush1.xpose.msra.mxu0 0.0
        %2426 = vmatprep.subr.mxu0 0.0
        %2427 = vmatpush1.xpose.msra.mxu0 0.0
        %2428 = vmatprep.subr.mxu0 0.0
        %2429 = vmatpush1.xpose.msra.mxu0 0.0
        %2430 = vmatprep.subr.mxu0 0.0
        %2431 = vmatpush1.xpose.msra.mxu0 0.0
        %2432 = vmatprep.subr.mxu0 0.0
        %2433 = vmatpush1.xpose.msra.mxu0 0.0
        %2434 = vmatprep.subr.mxu0 0.0
        %2435 = vmatpush1.xpose.msra.mxu0 0.0
        %2436 = vmatprep.subr.mxu0 0.0
        %2437 = vmatpush1.xpose.msra.mxu0 0.0
        %2438 = vmatprep.subr.mxu0 0.0
        %2439 = vmatpush1.xpose.msra.mxu0 0.0
        %2440 = vmatprep.subr.mxu0 0.0
        %v2441 = vand.u32 %v2414, 4294901760
        %2442 = vmatpush1.xpose.msra.mxu0 %v2441
        %2443 = vmatprep.subr.mxu0 0.0
        %v2444 = vand.u32 %v2411, 4294901760
        %2445 = vmatpush1.xpose.msra.mxu0 %v2444
        %2446 = vmatprep.subr.mxu0 0.0
        %v2447 = vand.u32 %v2408, 4294901760
        %2448 = vmatpush1.xpose.msra.mxu0 %v2447
        %2449 = vmatprep.subr.mxu0 0.0
        %v2450 = vand.u32 %v2405, 4294901760
        %2451 = vmatpush1.xpose.msra.mxu0 %v2450
        %2452 = vmatprep.subr.mxu0 0.0
        %2453 = vmatpush2.xpose.msra.mxu0 0.0
        %2454 = vmatprep.subr.mxu0 0.0
        %2455 = vmatpush2.xpose.msra.mxu0 0.0
        %2456 = vmatprep.subr.mxu0 0.0
        %2457 = vmatpush2.xpose.msra.mxu0 0.0
        %2458 = vmatprep.subr.mxu0 0.0
        %2459 = vmatpush2.xpose.msra.mxu0 0.0
        %2460 = vmatprep.subr.mxu0 0.0
        %2461 = vmatpush2.xpose.msra.mxu0 0.0
        %2462 = vmatprep.subr.mxu0 0.0
        %2463 = vmatpush2.xpose.msra.mxu0 0.0
        %2464 = vmatprep.subr.mxu0 0.0
        %2465 = vmatpush2.xpose.msra.mxu0 0.0
        %2466 = vmatprep.subr.mxu0 0.0
        %2467 = vmatpush2.xpose.msra.mxu0 0.0
        %2468 = vmatprep.subr.mxu0 0.0
        %2469 = vmatpush2.xpose.msra.mxu0 0.0
        %2470 = vmatprep.subr.mxu0 0.0
        %2471 = vmatpush2.xpose.msra.mxu0 0.0
        %2472 = vmatprep.subr.mxu0 0.0
        %2473 = vmatpush2.xpose.msra.mxu0 0.0
        %2474 = vmatprep.subr.mxu0 0.0
        %2475 = vmatpush2.xpose.msra.mxu0 0.0
        %2476 = vmatprep.subr.mxu0 0.0
        %2477 = vmatpush2.xpose.msra.mxu0 0.0
        %2478 = vmatprep.subr.mxu0 0.0
        %2479 = vmatpush2.xpose.msra.mxu0 0.0
        %2480 = vmatprep.subr.mxu0 0.0
        %2481 = vmatpush2.xpose.msra.mxu0 0.0
        %2482 = vmatprep.subr.mxu0 0.0
        %2483 = vmatpush2.xpose.msra.mxu0 0.0
        %2484 = vmatprep.mubr.f32.mxu0 0.0
        %v2485 = vand.u32 %v2402, 4294901760
        %v2486 = vsub.f32 %v2402, %v2485
        %v2487 = vand.u32 %v2486, 4294901760
        %v2488 = vsub.f32 %v2486, %v2487
        %v2489 = vand.u32 %v2488, 4294901760
        %2490 = vmatmul.mubr.f32.gmra.mxu0 %v2489
        %v2491 = vpop.f32.mrf.mxu0
        %v2492 = vadd.f32 %v2400, %v2491
        %v2493 = vpop.f32.mrf.mxu0
        %2494 = vdwg.mxu0
        %2495 = vmatprep.subr.mxu0 0.0
        %2496 = vmatpush1.xpose.msra.mxu0 0.0
        %2497 = vmatprep.subr.mxu0 0.0
        %2498 = vmatpush1.xpose.msra.mxu0 0.0
        %2499 = vmatprep.subr.mxu0 0.0
        %2500 = vmatpush1.xpose.msra.mxu0 0.0
        %2501 = vmatprep.subr.mxu0 0.0
        %2502 = vmatpush1.xpose.msra.mxu0 0.0
        %2503 = vmatprep.subr.mxu0 0.0
        %2504 = vmatpush1.xpose.msra.mxu0 0.0
        %2505 = vmatprep.subr.mxu0 0.0
        %2506 = vmatpush1.xpose.msra.mxu0 0.0
        %2507 = vmatprep.subr.mxu0 0.0
        %2508 = vmatpush1.xpose.msra.mxu0 0.0
        %2509 = vmatprep.subr.mxu0 0.0
        %2510 = vmatpush1.xpose.msra.mxu0 0.0
        %2511 = vmatprep.subr.mxu0 0.0
        %2512 = vmatpush1.xpose.msra.mxu0 0.0
        %2513 = vmatprep.subr.mxu0 0.0
        %2514 = vmatpush1.xpose.msra.mxu0 0.0
        %2515 = vmatprep.subr.mxu0 0.0
        %2516 = vmatpush1.xpose.msra.mxu0 0.0
        %2517 = vmatprep.subr.mxu0 0.0
        %2518 = vmatpush1.xpose.msra.mxu0 0.0
        %2519 = vmatprep.subr.mxu0 0.0
        %v2520 = vand.u32 %v2414, 4294901760
        %v2521 = vsub.f32 %v2414, %v2520
        %v2522 = vand.u32 %v2521, 4294901760
        %v2523 = vsub.f32 %v2521, %v2522
        %v2524 = vand.u32 %v2523, 4294901760
        %2525 = vmatpush1.xpose.msra.mxu0 %v2524
        %2526 = vmatprep.subr.mxu0 0.0
        %v2527 = vand.u32 %v2411, 4294901760
        %v2528 = vsub.f32 %v2411, %v2527
        %v2529 = vand.u32 %v2528, 4294901760
        %v2530 = vsub.f32 %v2528, %v2529
        %v2531 = vand.u32 %v2530, 4294901760
        %2532 = vmatpush1.xpose.msra.mxu0 %v2531
        %2533 = vmatprep.subr.mxu0 0.0
        %v2534 = vand.u32 %v2408, 4294901760
        %v2535 = vsub.f32 %v2408, %v2534
        %v2536 = vand.u32 %v2535, 4294901760
        %v2537 = vsub.f32 %v2535, %v2536
        %v2538 = vand.u32 %v2537, 4294901760
        %2539 = vmatpush1.xpose.msra.mxu0 %v2538
        %2540 = vmatprep.subr.mxu0 0.0
        %v2541 = vand.u32 %v2405, 4294901760
        %v2542 = vsub.f32 %v2405, %v2541
        %v2543 = vand.u32 %v2542, 4294901760
        %v2544 = vsub.f32 %v2542, %v2543
        %v2545 = vand.u32 %v2544, 4294901760
        %2546 = vmatpush1.xpose.msra.mxu0 %v2545
        %2547 = vmatprep.subr.mxu0 0.0
        %2548 = vmatpush2.xpose.msra.mxu0 0.0
        %2549 = vmatprep.subr.mxu0 0.0
        %2550 = vmatpush2.xpose.msra.mxu0 0.0
        %2551 = vmatprep.subr.mxu0 0.0
        %2552 = vmatpush2.xpose.msra.mxu0 0.0
        %2553 = vmatprep.subr.mxu0 0.0
        %2554 = vmatpush2.xpose.msra.mxu0 0.0
        %2555 = vmatprep.subr.mxu0 0.0
        %2556 = vmatpush2.xpose.msra.mxu0 0.0
        %2557 = vmatprep.subr.mxu0 0.0
        %2558 = vmatpush2.xpose.msra.mxu0 0.0
        %2559 = vmatprep.subr.mxu0 0.0
        %2560 = vmatpush2.xpose.msra.mxu0 0.0
        %2561 = vmatprep.subr.mxu0 0.0
        %2562 = vmatpush2.xpose.msra.mxu0 0.0
        %2563 = vmatprep.subr.mxu0 0.0
        %2564 = vmatpush2.xpose.msra.mxu0 0.0
        %2565 = vmatprep.subr.mxu0 0.0
        %2566 = vmatpush2.xpose.msra.mxu0 0.0
        %2567 = vmatprep.subr.mxu0 0.0
        %2568 = vmatpush2.xpose.msra.mxu0 0.0
        %2569 = vmatprep.subr.mxu0 0.0
        %2570 = vmatpush2.xpose.msra.mxu0 0.0
        %2571 = vmatprep.subr.mxu0 0.0
        %2572 = vmatpush2.xpose.msra.mxu0 0.0
        %2573 = vmatprep.subr.mxu0 0.0
        %2574 = vmatpush2.xpose.msra.mxu0 0.0
        %2575 = vmatprep.subr.mxu0 0.0
        %2576 = vmatpush2.xpose.msra.mxu0 0.0
        %2577 = vmatprep.subr.mxu0 0.0
        %2578 = vmatpush2.xpose.msra.mxu0 0.0
        %2579 = vmatprep.mubr.f32.mxu0 0.0
        %v2580 = vand.u32 %v2402, 4294901760
        %2581 = vmatmul.mubr.f32.gmra.mxu0 %v2580
        %v2582 = vpop.f32.mrf.mxu0
        %v2583 = vadd.f32 %v2492, %v2582
        %v2584 = vpop.f32.mrf.mxu0
        %2585 = vdwg.mxu0
        %2586 = vmatprep.subr.mxu0 0.0
        %2587 = vmatpush1.xpose.msra.mxu0 0.0
        %2588 = vmatprep.subr.mxu0 0.0
        %2589 = vmatpush1.xpose.msra.mxu0 0.0
        %2590 = vmatprep.subr.mxu0 0.0
        %2591 = vmatpush1.xpose.msra.mxu0 0.0
        %2592 = vmatprep.subr.mxu0 0.0
        %2593 = vmatpush1.xpose.msra.mxu0 0.0
        %2594 = vmatprep.subr.mxu0 0.0
        %2595 = vmatpush1.xpose.msra.mxu0 0.0
        %2596 = vmatprep.subr.mxu0 0.0
        %2597 = vmatpush1.xpose.msra.mxu0 0.0
        %2598 = vmatprep.subr.mxu0 0.0
        %2599 = vmatpush1.xpose.msra.mxu0 0.0
        %2600 = vmatprep.subr.mxu0 0.0
        %2601 = vmatpush1.xpose.msra.mxu0 0.0
        %2602 = vmatprep.subr.mxu0 0.0
        %2603 = vmatpush1.xpose.msra.mxu0 0.0
        %2604 = vmatprep.subr.mxu0 0.0
        %2605 = vmatpush1.xpose.msra.mxu0 0.0
        %2606 = vmatprep.subr.mxu0 0.0
        %2607 = vmatpush1.xpose.msra.mxu0 0.0
        %2608 = vmatprep.subr.mxu0 0.0
        %2609 = vmatpush1.xpose.msra.mxu0 0.0
        %2610 = vmatprep.subr.mxu0 0.0
        %v2611 = vand.u32 %v2414, 4294901760
        %v2612 = vsub.f32 %v2414, %v2611
        %2613 = vmatpush1.xpose.msra.mxu0 %v2612
        %2614 = vmatprep.subr.mxu0 0.0
        %v2615 = vand.u32 %v2411, 4294901760
        %v2616 = vsub.f32 %v2411, %v2615
        %2617 = vmatpush1.xpose.msra.mxu0 %v2616
        %2618 = vmatprep.subr.mxu0 0.0
        %v2619 = vand.u32 %v2408, 4294901760
        %v2620 = vsub.f32 %v2408, %v2619
        %2621 = vmatpush1.xpose.msra.mxu0 %v2620
        %2622 = vmatprep.subr.mxu0 0.0
        %v2623 = vand.u32 %v2405, 4294901760
        %v2624 = vsub.f32 %v2405, %v2623
        %2625 = vmatpush1.xpose.msra.mxu0 %v2624
        %2626 = vmatprep.subr.mxu0 0.0
        %2627 = vmatpush2.xpose.msra.mxu0 0.0
        %2628 = vmatprep.subr.mxu0 0.0
        %2629 = vmatpush2.xpose.msra.mxu0 0.0
        %2630 = vmatprep.subr.mxu0 0.0
        %2631 = vmatpush2.xpose.msra.mxu0 0.0
        %2632 = vmatprep.subr.mxu0 0.0
        %2633 = vmatpush2.xpose.msra.mxu0 0.0
        %2634 = vmatprep.subr.mxu0 0.0
        %2635 = vmatpush2.xpose.msra.mxu0 0.0
        %2636 = vmatprep.subr.mxu0 0.0
        %2637 = vmatpush2.xpose.msra.mxu0 0.0
        %2638 = vmatprep.subr.mxu0 0.0
        %2639 = vmatpush2.xpose.msra.mxu0 0.0
        %2640 = vmatprep.subr.mxu0 0.0
        %2641 = vmatpush2.xpose.msra.mxu0 0.0
        %2642 = vmatprep.subr.mxu0 0.0
        %2643 = vmatpush2.xpose.msra.mxu0 0.0
        %2644 = vmatprep.subr.mxu0 0.0
        %2645 = vmatpush2.xpose.msra.mxu0 0.0
        %2646 = vmatprep.subr.mxu0 0.0
        %2647 = vmatpush2.xpose.msra.mxu0 0.0
        %2648 = vmatprep.subr.mxu0 0.0
        %2649 = vmatpush2.xpose.msra.mxu0 0.0
        %2650 = vmatprep.subr.mxu0 0.0
        %2651 = vmatpush2.xpose.msra.mxu0 0.0
        %2652 = vmatprep.subr.mxu0 0.0
        %2653 = vmatpush2.xpose.msra.mxu0 0.0
        %2654 = vmatprep.subr.mxu0 0.0
        %2655 = vmatpush2.xpose.msra.mxu0 0.0
        %2656 = vmatprep.subr.mxu0 0.0
        %2657 = vmatpush2.xpose.msra.mxu0 0.0
        %2658 = vmatprep.mubr.f32.mxu0 0.0
        %v2659 = vand.u32 %v2402, 4294901760
        %v2660 = vsub.f32 %v2402, %v2659
        %2661 = vmatmul.mubr.f32.gmra.mxu0 %v2660
        %v2662 = vpop.f32.mrf.mxu0
        %v2663 = vadd.f32 %v2583, %v2662
        %v2664 = vpop.f32.mrf.mxu0
        %2665 = vdwg.mxu0
        %2666 = vmatprep.subr.mxu0 0.0
        %2667 = vmatpush1.xpose.msra.mxu0 0.0
        %2668 = vmatprep.subr.mxu0 0.0
        %2669 = vmatpush1.xpose.msra.mxu0 0.0
        %2670 = vmatprep.subr.mxu0 0.0
        %2671 = vmatpush1.xpose.msra.mxu0 0.0
        %2672 = vmatprep.subr.mxu0 0.0
        %2673 = vmatpush1.xpose.msra.mxu0 0.0
        %2674 = vmatprep.subr.mxu0 0.0
        %2675 = vmatpush1.xpose.msra.mxu0 0.0
        %2676 = vmatprep.subr.mxu0 0.0
        %2677 = vmatpush1.xpose.msra.mxu0 0.0
        %2678 = vmatprep.subr.mxu0 0.0
        %2679 = vmatpush1.xpose.msra.mxu0 0.0
        %2680 = vmatprep.subr.mxu0 0.0
        %2681 = vmatpush1.xpose.msra.mxu0 0.0
        %2682 = vmatprep.subr.mxu0 0.0
        %2683 = vmatpush1.xpose.msra.mxu0 0.0
        %2684 = vmatprep.subr.mxu0 0.0
        %2685 = vmatpush1.xpose.msra.mxu0 0.0
        %2686 = vmatprep.subr.mxu0 0.0
        %2687 = vmatpush1.xpose.msra.mxu0 0.0
        %2688 = vmatprep.subr.mxu0 0.0
        %2689 = vmatpush1.xpose.msra.mxu0 0.0
        %2690 = vmatprep.subr.mxu0 0.0
        %v2691 = vand.u32 %v2414, 4294901760
        %2692 = vmatpush1.xpose.msra.mxu0 %v2691
        %2693 = vmatprep.subr.mxu0 0.0
        %v2694 = vand.u32 %v2411, 4294901760
        %2695 = vmatpush1.xpose.msra.mxu0 %v2694
        %2696 = vmatprep.subr.mxu0 0.0
        %v2697 = vand.u32 %v2408, 4294901760
        %2698 = vmatpush1.xpose.msra.mxu0 %v2697
        %2699 = vmatprep.subr.mxu0 0.0
        %v2700 = vand.u32 %v2405, 4294901760
        %2701 = vmatpush1.xpose.msra.mxu0 %v2700
        %2702 = vmatprep.subr.mxu0 0.0
        %2703 = vmatpush2.xpose.msra.mxu0 0.0
        %2704 = vmatprep.subr.mxu0 0.0
        %2705 = vmatpush2.xpose.msra.mxu0 0.0
        %2706 = vmatprep.subr.mxu0 0.0
        %2707 = vmatpush2.xpose.msra.mxu0 0.0
        %2708 = vmatprep.subr.mxu0 0.0
        %2709 = vmatpush2.xpose.msra.mxu0 0.0
        %2710 = vmatprep.subr.mxu0 0.0
        %2711 = vmatpush2.xpose.msra.mxu0 0.0
        %2712 = vmatprep.subr.mxu0 0.0
        %2713 = vmatpush2.xpose.msra.mxu0 0.0
        %2714 = vmatprep.subr.mxu0 0.0
        %2715 = vmatpush2.xpose.msra.mxu0 0.0
        %2716 = vmatprep.subr.mxu0 0.0
        %2717 = vmatpush2.xpose.msra.mxu0 0.0
        %2718 = vmatprep.subr.mxu0 0.0
        %2719 = vmatpush2.xpose.msra.mxu0 0.0
        %2720 = vmatprep.subr.mxu0 0.0
        %2721 = vmatpush2.xpose.msra.mxu0 0.0
        %2722 = vmatprep.subr.mxu0 0.0
        %2723 = vmatpush2.xpose.msra.mxu0 0.0
        %2724 = vmatprep.subr.mxu0 0.0
        %2725 = vmatpush2.xpose.msra.mxu0 0.0
        %2726 = vmatprep.subr.mxu0 0.0
        %2727 = vmatpush2.xpose.msra.mxu0 0.0
        %2728 = vmatprep.subr.mxu0 0.0
        %2729 = vmatpush2.xpose.msra.mxu0 0.0
        %2730 = vmatprep.subr.mxu0 0.0
        %2731 = vmatpush2.xpose.msra.mxu0 0.0
        %2732 = vmatprep.subr.mxu0 0.0
        %2733 = vmatpush2.xpose.msra.mxu0 0.0
        %2734 = vmatprep.mubr.f32.mxu0 0.0
        %v2735 = vand.u32 %v2402, 4294901760
        %v2736 = vsub.f32 %v2402, %v2735
        %v2737 = vand.u32 %v2736, 4294901760
        %2738 = vmatmul.mubr.f32.gmra.mxu0 %v2737
        %v2739 = vpop.f32.mrf.mxu0
        %v2740 = vadd.f32 %v2663, %v2739
        %v2741 = vpop.f32.mrf.mxu0
        %2742 = vdwg.mxu0
        %2743 = vmatprep.subr.mxu0 0.0
        %2744 = vmatpush1.xpose.msra.mxu0 0.0
        %2745 = vmatprep.subr.mxu0 0.0
        %2746 = vmatpush1.xpose.msra.mxu0 0.0
        %2747 = vmatprep.subr.mxu0 0.0
        %2748 = vmatpush1.xpose.msra.mxu0 0.0
        %2749 = vmatprep.subr.mxu0 0.0
        %2750 = vmatpush1.xpose.msra.mxu0 0.0
        %2751 = vmatprep.subr.mxu0 0.0
        %2752 = vmatpush1.xpose.msra.mxu0 0.0
        %2753 = vmatprep.subr.mxu0 0.0
        %2754 = vmatpush1.xpose.msra.mxu0 0.0
        %2755 = vmatprep.subr.mxu0 0.0
        %2756 = vmatpush1.xpose.msra.mxu0 0.0
        %2757 = vmatprep.subr.mxu0 0.0
        %2758 = vmatpush1.xpose.msra.mxu0 0.0
        %2759 = vmatprep.subr.mxu0 0.0
        %2760 = vmatpush1.xpose.msra.mxu0 0.0
        %2761 = vmatprep.subr.mxu0 0.0
        %2762 = vmatpush1.xpose.msra.mxu0 0.0
        %2763 = vmatprep.subr.mxu0 0.0
        %2764 = vmatpush1.xpose.msra.mxu0 0.0
        %2765 = vmatprep.subr.mxu0 0.0
        %2766 = vmatpush1.xpose.msra.mxu0 0.0
        %2767 = vmatprep.subr.mxu0 0.0
        %v2768 = vand.u32 %v2414, 4294901760
        %v2769 = vsub.f32 %v2414, %v2768
        %v2770 = vand.u32 %v2769, 4294901760
        %2771 = vmatpush1.xpose.msra.mxu0 %v2770
        %2772 = vmatprep.subr.mxu0 0.0
        %v2773 = vand.u32 %v2411, 4294901760
        %v2774 = vsub.f32 %v2411, %v2773
        %v2775 = vand.u32 %v2774, 4294901760
        %2776 = vmatpush1.xpose.msra.mxu0 %v2775
        %2777 = vmatprep.subr.mxu0 0.0
        %v2778 = vand.u32 %v2408, 4294901760
        %v2779 = vsub.f32 %v2408, %v2778
        %v2780 = vand.u32 %v2779, 4294901760
        %2781 = vmatpush1.xpose.msra.mxu0 %v2780
        %2782 = vmatprep.subr.mxu0 0.0
        %v2783 = vand.u32 %v2405, 4294901760
        %v2784 = vsub.f32 %v2405, %v2783
        %v2785 = vand.u32 %v2784, 4294901760
        %2786 = vmatpush1.xpose.msra.mxu0 %v2785
        %2787 = vmatprep.subr.mxu0 0.0
        %2788 = vmatpush2.xpose.msra.mxu0 0.0
        %2789 = vmatprep.subr.mxu0 0.0
        %2790 = vmatpush2.xpose.msra.mxu0 0.0
        %2791 = vmatprep.subr.mxu0 0.0
        %2792 = vmatpush2.xpose.msra.mxu0 0.0
        %2793 = vmatprep.subr.mxu0 0.0
        %2794 = vmatpush2.xpose.msra.mxu0 0.0
        %2795 = vmatprep.subr.mxu0 0.0
        %2796 = vmatpush2.xpose.msra.mxu0 0.0
        %2797 = vmatprep.subr.mxu0 0.0
        %2798 = vmatpush2.xpose.msra.mxu0 0.0
        %2799 = vmatprep.subr.mxu0 0.0
        %2800 = vmatpush2.xpose.msra.mxu0 0.0
        %2801 = vmatprep.subr.mxu0 0.0
        %2802 = vmatpush2.xpose.msra.mxu0 0.0
        %2803 = vmatprep.subr.mxu0 0.0
        %2804 = vmatpush2.xpose.msra.mxu0 0.0
        %2805 = vmatprep.subr.mxu0 0.0
        %2806 = vmatpush2.xpose.msra.mxu0 0.0
        %2807 = vmatprep.subr.mxu0 0.0
        %2808 = vmatpush2.xpose.msra.mxu0 0.0
        %2809 = vmatprep.subr.mxu0 0.0
        %2810 = vmatpush2.xpose.msra.mxu0 0.0
        %2811 = vmatprep.subr.mxu0 0.0
        %2812 = vmatpush2.xpose.msra.mxu0 0.0
        %2813 = vmatprep.subr.mxu0 0.0
        %2814 = vmatpush2.xpose.msra.mxu0 0.0
        %2815 = vmatprep.subr.mxu0 0.0
        %2816 = vmatpush2.xpose.msra.mxu0 0.0
        %2817 = vmatprep.subr.mxu0 0.0
        %2818 = vmatpush2.xpose.msra.mxu0 0.0
        %2819 = vmatprep.mubr.f32.mxu0 0.0
        %v2820 = vand.u32 %v2402, 4294901760
        %2821 = vmatmul.mubr.f32.gmra.mxu0 %v2820
        %v2822 = vpop.f32.mrf.mxu0
        %v2823 = vadd.f32 %v2740, %v2822
        %v2824 = vpop.f32.mrf.mxu0
        %2825 = vdwg.mxu0
        %2826 = vmatprep.subr.mxu0 0.0
        %2827 = vmatpush1.xpose.msra.mxu0 0.0
        %2828 = vmatprep.subr.mxu0 0.0
        %2829 = vmatpush1.xpose.msra.mxu0 0.0
        %2830 = vmatprep.subr.mxu0 0.0
        %2831 = vmatpush1.xpose.msra.mxu0 0.0
        %2832 = vmatprep.subr.mxu0 0.0
        %2833 = vmatpush1.xpose.msra.mxu0 0.0
        %2834 = vmatprep.subr.mxu0 0.0
        %2835 = vmatpush1.xpose.msra.mxu0 0.0
        %2836 = vmatprep.subr.mxu0 0.0
        %2837 = vmatpush1.xpose.msra.mxu0 0.0
        %2838 = vmatprep.subr.mxu0 0.0
        %2839 = vmatpush1.xpose.msra.mxu0 0.0
        %2840 = vmatprep.subr.mxu0 0.0
        %2841 = vmatpush1.xpose.msra.mxu0 0.0
        %2842 = vmatprep.subr.mxu0 0.0
        %2843 = vmatpush1.xpose.msra.mxu0 0.0
        %2844 = vmatprep.subr.mxu0 0.0
        %2845 = vmatpush1.xpose.msra.mxu0 0.0
        %2846 = vmatprep.subr.mxu0 0.0
        %2847 = vmatpush1.xpose.msra.mxu0 0.0
        %2848 = vmatprep.subr.mxu0 0.0
        %2849 = vmatpush1.xpose.msra.mxu0 0.0
        %2850 = vmatprep.subr.mxu0 0.0
        %v2851 = vand.u32 %v2414, 4294901760
        %2852 = vmatpush1.xpose.msra.mxu0 %v2851
        %2853 = vmatprep.subr.mxu0 0.0
        %v2854 = vand.u32 %v2411, 4294901760
        %2855 = vmatpush1.xpose.msra.mxu0 %v2854
        %2856 = vmatprep.subr.mxu0 0.0
        %v2857 = vand.u32 %v2408, 4294901760
        %2858 = vmatpush1.xpose.msra.mxu0 %v2857
        %2859 = vmatprep.subr.mxu0 0.0
        %v2860 = vand.u32 %v2405, 4294901760
        %2861 = vmatpush1.xpose.msra.mxu0 %v2860
        %2862 = vmatprep.subr.mxu0 0.0
        %2863 = vmatpush2.xpose.msra.mxu0 0.0
        %2864 = vmatprep.subr.mxu0 0.0
        %2865 = vmatpush2.xpose.msra.mxu0 0.0
        %2866 = vmatprep.subr.mxu0 0.0
        %2867 = vmatpush2.xpose.msra.mxu0 0.0
        %2868 = vmatprep.subr.mxu0 0.0
        %2869 = vmatpush2.xpose.msra.mxu0 0.0
        %2870 = vmatprep.subr.mxu0 0.0
        %2871 = vmatpush2.xpose.msra.mxu0 0.0
        %2872 = vmatprep.subr.mxu0 0.0
        %2873 = vmatpush2.xpose.msra.mxu0 0.0
        %2874 = vmatprep.subr.mxu0 0.0
        %2875 = vmatpush2.xpose.msra.mxu0 0.0
        %2876 = vmatprep.subr.mxu0 0.0
        %2877 = vmatpush2.xpose.msra.mxu0 0.0
        %2878 = vmatprep.subr.mxu0 0.0
        %2879 = vmatpush2.xpose.msra.mxu0 0.0
        %2880 = vmatprep.subr.mxu0 0.0
        %2881 = vmatpush2.xpose.msra.mxu0 0.0
        %2882 = vmatprep.subr.mxu0 0.0
        %2883 = vmatpush2.xpose.msra.mxu0 0.0
        %2884 = vmatprep.subr.mxu0 0.0
        %2885 = vmatpush2.xpose.msra.mxu0 0.0
        %2886 = vmatprep.subr.mxu0 0.0
        %2887 = vmatpush2.xpose.msra.mxu0 0.0
        %2888 = vmatprep.subr.mxu0 0.0
        %2889 = vmatpush2.xpose.msra.mxu0 0.0
        %2890 = vmatprep.subr.mxu0 0.0
        %2891 = vmatpush2.xpose.msra.mxu0 0.0
        %2892 = vmatprep.subr.mxu0 0.0
        %2893 = vmatpush2.xpose.msra.mxu0 0.0
        %2894 = vmatprep.mubr.f32.mxu0 0.0
        %v2895 = vand.u32 %v2402, 4294901760
        %2896 = vmatmul.mubr.f32.gmra.mxu0 %v2895
        %v2897 = vpop.f32.mrf.mxu0
        %v2898 = vadd.f32 %v2823, %v2897
        %v2899 = vpop.f32.mrf.mxu0
        %2900 = vdwg.mxu0
        %vm2901 = vcmask 253952
        %2902 = vst.msk [vmem:[%s258] sm:$0x1] %vm2901, %v2898
        %s2903 = sand.u32 %s143, 1
        %s2904 = scalar_lea.sflag [#allocation7], %s2903
        %s2905 = sand.u32 %s143, 1
        %s2906 = scalar_lea.vmem [#allocation10], %s2905
        // Predicated region
        $region49: #{tpu_custom_call.1} parent=39 // pred_check
          %p2907 = pneg %p153
        $region50: #{tpu_custom_call.1} parent=39 // pred_check_branch
          %2909 = sbr.rel (%p2907) target = $region52
        $region51: #{tpu_custom_call.1} parent=39 // pred_region
          %s2911 = ssub.s32 16, 16
          %2912 = vsyncadd %s2904, %s2911
          %s2913 = smul.addr %s25, 16
          %s2914 = scalar_lea.hbm %s5, %s2913
          %s2916 = sshll.u32 %s2906, 4
          %s2917 = int_to_ptr.vmem [resolvable:$true] %s2916
          %2919 = dma.vmem_to_hbm [thread:$0]  %s2917, 16, %s2914, %s2904
        $region52: #{tpu_custom_call.1} parent=39 // pred_fallthru
          _
      $region40: #{tpu_custom_call.1} parent=5 // pred_fallthru
        _
      %p2920 = scmp.le.s32.totalorder 2, %s20
      // Predicated region
      $region53: #{tpu_custom_call.1} parent=5 // pred_check
        %p2921 = pneg %p2920
      $region54: #{tpu_custom_call.1} parent=5 // pred_check_branch
        %2923 = sbr.rel (%p2921) target = $region56
      $region55: #{tpu_custom_call.1} parent=5 // pred_region
        %s2924 = ssub.s32 %s20, 2
        // Predicated region
        $region57: #{tpu_custom_call.1} parent=55 // pred_check
          %p2925 = pneg %p159
        $region58: #{tpu_custom_call.1} parent=55 // pred_check_branch
          %2927 = sbr.rel (%p2925) target = $region60
        $region59: #{tpu_custom_call.1} parent=55 // pred_region
          %s2928 = sand.u32 %s144, 1
          %s2929 = scalar_lea.sflag [#allocation7], %s2928
          %s2930 = sand.u32 %s144, 1
          %s2931 = scalar_lea.vmem [#allocation10], %s2930
          %2932 = dma.done %s2929, 16
        $region60: #{tpu_custom_call.1} parent=55 // pred_fallthru
          _
      $region56: #{tpu_custom_call.1} parent=5 // pred_fallthru
        _
    $region6: #{tpu_custom_call.1} parent=1 // loop_footer
      %s24 = sadd.s32 1, %s20
    $region7: #{tpu_custom_call.1} parent=1 // loop_footer_branch
      %19 = sbr.rel target = $region3
    $region8: #{tpu_custom_call.1} parent=1 // loop_exit
      _
    %2933 = vsyncpa [#allocation6], 1
    %s2934 = scalar_lea.sflag [#allocation6], 1
    %2935 = vsyncpa %s2934, 1
    %2936 = vsyncpa [#allocation9], 1
    %2937 = vsyncpa [#allocation7], 1
    %s2938 = scalar_lea.sflag [#allocation7], 1
    %2939 = vsyncpa %s2938, 1

</llo_original>
